<compile_context>
chip_gen: v6e
topology: v6e:2x2x1
jax: 0.10.0
libtpu: 0.0.40
codegen_flags: <defaults>
</compile_context>

<pallas_src>
import functools

import jax
import jax.numpy as jnp
from jax.experimental import pallas as pl
from jax.experimental.pallas import tpu as pltpu

OUTPUT_DIM = 128        # `output_dim` in the PyTorch file
FEAT_DIM = 32           # base_net.feature_dim (synthetic backbone)
NUM_CLASSES = 10        # size of the incremental fc head (synthetic)
TEMPERATURE = 0.07      # SupConLoss temperature / base_temperature defaults
BASE_TEMPERATURE = 0.07
LANE = 128              # lane-dense padding width

_VMEM = pl.BlockSpec(memory_space=pltpu.MemorySpace.VMEM)


# ------------------------- shared in-kernel helpers -------------------------

def _backbone_block(patches, conv_w, conv_b, head_w, head_b, p2w, p2b,
                    *, n_imgs, hw):
    """conv(im2col matmul) + bias + ReLU + GAP + [fc | proj1] + proj2.

    patches: (n_imgs*hw, 9C) bf16,  conv_w: (9C, LANE) bf16
    head_w:  (LANE, 2*LANE) bf16 = [fc_w | proj1_w],  p2w: (LANE, LANE) bf16
    returns: logits (n_imgs, LANE) f32, proj (n_imgs, LANE) f32
    """
    # single K=9C matmul (bf16 operands, f32 accumulation): acc written once
    acc = jnp.dot(patches, conv_w, preferred_element_type=jnp.float32)
    acc = jnp.maximum(acc + conv_b, 0.0)                      # bias + ReLU (f32)
    # global average pool over the hw spatial positions of each image
    feats = jnp.sum(acc.reshape(n_imgs, hw, LANE), axis=1) * (1.0 / hw)

    fb = feats.astype(jnp.bfloat16)
    # fused fc head + projector layer 1: one (M, 256) matmul, split at lane 128
    head = jnp.dot(fb, head_w, preferred_element_type=jnp.float32) + head_b
    logits = head[:, :LANE]
    h = jnp.maximum(head[:, LANE:], 0.0).astype(jnp.bfloat16)
    proj = jnp.dot(h, p2w, preferred_element_type=jnp.float32) + p2b
    return logits, proj


def _supcon(proj, lab_row, lab_col, *, temperature, base_temperature):
    """F.normalize(dim=1) + SupConLoss over [f1; f2]. Returns (1, 1) f32."""
    n = proj.shape[0]
    inv_sqrt_t = float(temperature) ** -0.5
    sumsq = jnp.sum(proj * proj, axis=1, keepdims=True)
    # rsqrt on the EUP; fold 1/sqrt(T) so sim = (f.f^T)/T directly
    f = proj * (jax.lax.rsqrt(sumsq + 1e-24) * inv_sqrt_t)

    sim = jax.lax.dot_general(f, f, (((1,), (1,)), ((), ())),
                              preferred_element_type=jnp.float32)
    row_max = jnp.max(sim, axis=1, keepdims=True)
    logits = sim - row_max

    row = jax.lax.broadcasted_iota(jnp.int32, (n, n), 0)
    col = jax.lax.broadcasted_iota(jnp.int32, (n, n), 1)
    not_self = jnp.where(row == col, 0.0, 1.0)                # drop self-contrast
    pos = jnp.where(lab_col == lab_row, 1.0, 0.0) * not_self

    exp_logits = jnp.exp(logits) * not_self
    log_prob = logits - jnp.log(jnp.sum(exp_logits, axis=1, keepdims=True))
    pos_cnt = jnp.maximum(jnp.sum(pos, axis=1, keepdims=True), 1.0)  # NaN guard
    mean_log_prob_pos = (jnp.sum(pos * log_prob, axis=1, keepdims=True)
                         * pl.reciprocal(pos_cnt, approx=True))
    loss = -(temperature / base_temperature) * (
        jnp.sum(mean_log_prob_pos, axis=0, keepdims=True) * (1.0 / n))
    return loss                                               # (1, 1)


# ----------------------------- Pallas kernels ------------------------------

def _fused_kernel(patches_ref, cw_ref, cb_ref, hw_ref, hb_ref, p2w_ref, p2b_ref,
                  labr_ref, labc_ref, logits_ref, loss_ref, *,
                  n_imgs, hw, temperature, base_temperature):
    """Single-TC path: backbone + projector + SupCon loss in one kernel."""
    logits, proj = _backbone_block(
        patches_ref[...], cw_ref[...], cb_ref[...], hw_ref[...], hb_ref[...],
        p2w_ref[...], p2b_ref[...], n_imgs=n_imgs, hw=hw)
    logits_ref[...] = logits
    loss = _supcon(proj, labr_ref[...], labc_ref[...],
                   temperature=temperature, base_temperature=base_temperature)
    loss_ref[...] = jnp.broadcast_to(loss, loss_ref.shape)    # lane-dense row


def _backbone_kernel(patches_ref, cw_ref, cb_ref, hw_ref, hb_ref,
                     p2w_ref, p2b_ref, logits_ref, proj_ref, *, imgs_blk, hw):
    """Multi-TC (v7x) path: backbone + projector only, parallel over rows."""
    logits, proj = _backbone_block(
        patches_ref[...], cw_ref[...], cb_ref[...], hw_ref[...], hb_ref[...],
        p2w_ref[...], p2b_ref[...], n_imgs=imgs_blk, hw=hw)
    logits_ref[...] = logits
    proj_ref[...] = proj


def _loss_kernel(proj_ref, labr_ref, labc_ref, loss_ref, *,
                 temperature, base_temperature):
    loss = _supcon(proj_ref[...], labr_ref[...], labc_ref[...],
                   temperature=temperature, base_temperature=base_temperature)
    loss_ref[...] = jnp.broadcast_to(loss, loss_ref.shape)


# ------------------------------- wrappers -----------------------------------

def _num_tensorcores_per_chip():
    """2 on v7x (two TensorCores share one device), 1 on v5e/v6e."""
    try:
        kind = jax.devices()[0].device_kind.lower()
    except Exception:
        return 1
    return 2 if "v7" in kind else 1


def _im2col(x_all):
    """(N, C, H, W) f32 -> lane-dense (N*H*W, 9C) bf16 im2col slab (pad=1)."""
    n, c, h, w = x_all.shape
    x_nhwc = jnp.transpose(x_all, (0, 2, 3, 1))
    x_pad = jnp.pad(x_nhwc, ((0, 0), (1, 1), (1, 1), (0, 0)))
    cols = [x_pad[:, kh:kh + h, kw:kw + w, :]
            for kh in range(3) for kw in range(3)]
    patches = jnp.concatenate(cols, axis=-1)                   # (N, H, W, 9C)
    return patches.reshape(n * h * w, 9 * c).astype(jnp.bfloat16)


def fused_forward_loss(params, patches, lab_row, lab_col, n_imgs, hw):
    kernel = functools.partial(_fused_kernel, n_imgs=n_imgs, hw=hw,
                               temperature=TEMPERATURE,
                               base_temperature=BASE_TEMPERATURE)
    logits, loss_row = pl.pallas_call(
        kernel,
        in_specs=[_VMEM] * 9,
        out_specs=(_VMEM, _VMEM),
        out_shape=(jax.ShapeDtypeStruct((n_imgs, LANE), jnp.float32),
                   jax.ShapeDtypeStruct((1, LANE), jnp.float32)),
    )(patches, params["conv_w"], params["conv_b"], params["head_w"],
      params["head_b"], params["proj2_w"], params["proj2_b"], lab_row, lab_col)
    return logits, loss_row[0, 0]


def backbone_projector(params, patches, n_imgs, hw, nblk):
    rows, kdim = patches.shape
    rows_blk = rows // nblk
    imgs_blk = n_imgs // nblk
    rep = lambda i: (0, 0)
    kernel = functools.partial(_backbone_kernel, imgs_blk=imgs_blk, hw=hw)
    return pl.pallas_call(
        kernel,
        grid=(nblk,),
        in_specs=[
            pl.BlockSpec((rows_blk, kdim), lambda i: (i, 0)),   # im2col rows
            pl.BlockSpec((kdim, LANE), rep),                    # conv_w
            pl.BlockSpec((1, LANE), rep),                       # conv_b
            pl.BlockSpec((LANE, 2 * LANE), rep),                # head_w
            pl.BlockSpec((1, 2 * LANE), rep),                   # head_b
            pl.BlockSpec((LANE, LANE), rep),                    # proj2_w
            pl.BlockSpec((1, LANE), rep),                       # proj2_b
        ],
        out_specs=[
            pl.BlockSpec((imgs_blk, LANE), lambda i: (i, 0)),
            pl.BlockSpec((imgs_blk, LANE), lambda i: (i, 0)),
        ],
        out_shape=(jax.ShapeDtypeStruct((n_imgs, LANE), jnp.float32),
                   jax.ShapeDtypeStruct((n_imgs, LANE), jnp.float32)),
        compiler_params=pltpu.CompilerParams(
            dimension_semantics=("parallel",)),
    )(patches, params["conv_w"], params["conv_b"], params["head_w"],
      params["head_b"], params["proj2_w"], params["proj2_b"])


def supcon_loss(proj, lab_row, lab_col):
    loss_row = pl.pallas_call(
        functools.partial(_loss_kernel, temperature=TEMPERATURE,
                          base_temperature=BASE_TEMPERATURE),
        out_shape=jax.ShapeDtypeStruct((1, LANE), jnp.float32),
        in_specs=[_VMEM, _VMEM, _VMEM],
        out_specs=_VMEM,
    )(proj, lab_row, lab_col)
    return loss_row[0, 0]


def _forward(params, x1, x2, target):
    b = x1.shape[0]
    n = 2 * b
    h, w = x1.shape[2], x1.shape[3]
    hw = h * w

    # batch both augmented views -> one backbone/projector pass
    x_all = jnp.concatenate([x1, x2], axis=0)                  # (2B, C, H, W)
    patches = _im2col(x_all)                                   # (2B*H*W, 9C) bf16

    # torch: cat([f1.unsqueeze(1), f2.unsqueeze(1)], 1) -> SupConLoss unbinds
    # views and concatenates along batch => rows of proj are already [f1; f2]
    lab = jnp.concatenate([target, target], axis=0).astype(jnp.int32)
    lab_row = lab.reshape(1, n)
    lab_col = lab.reshape(n, 1)

    ntc = _num_tensorcores_per_chip()                          # static (trace time)
    use_grid = (ntc >= 2 and n % ntc == 0 and (n // ntc) % 8 == 0
                and (n * hw // ntc) % 8 == 0)

    if use_grid:
        # v7x: split rows across the two TensorCores; tiny loss stays separate.
        logits_pad, proj = backbone_projector(params, patches, n, hw, ntc)
        loss = supcon_loss(proj, lab_row, lab_col)
    else:
        # v5e/v6e: single TC -> one kernel, loss fused into the epilogue.
        logits_pad, loss = fused_forward_loss(params, patches, lab_row,
                                              lab_col, n, hw)

    logits = logits_pad[:, :NUM_CLASSES]
    return loss, logits[:b], logits[b:]


simclr_forward = jax.jit(_forward)


def init_params(key, in_channels):
    ks = jax.random.split(key, 4)

    def w(k, shape, fan_in):
        return jax.random.normal(k, shape, jnp.float32) / jnp.sqrt(fan_in)

    kdim = 9 * in_channels
    conv_w = jnp.zeros((kdim, LANE), jnp.float32).at[:, :FEAT_DIM].set(
        w(ks[0], (kdim, FEAT_DIM), kdim))
    fc_w = w(ks[1], (FEAT_DIM, NUM_CLASSES), FEAT_DIM)
    proj1_w = w(ks[2], (FEAT_DIM, FEAT_DIM), FEAT_DIM)
    proj2_w = jnp.zeros((LANE, LANE), jnp.float32).at[:FEAT_DIM, :OUTPUT_DIM].set(
        w(ks[3], (FEAT_DIM, OUTPUT_DIM), FEAT_DIM))

    # fc head and projector layer 1 share the same input -> fuse into one tile
    head_w = jnp.zeros((LANE, 2 * LANE), jnp.float32)
    head_w = head_w.at[:FEAT_DIM, :NUM_CLASSES].set(fc_w)
    head_w = head_w.at[:FEAT_DIM, LANE:LANE + FEAT_DIM].set(proj1_w)

    # weights pre-cast to bf16 host-side; biases stay f32 for the epilogues
    return {
        "conv_w": conv_w.astype(jnp.bfloat16),
        "conv_b": jnp.zeros((1, LANE), jnp.float32),
        "head_w": head_w.astype(jnp.bfloat16),
        "head_b": jnp.zeros((1, 2 * LANE), jnp.float32),
        "proj2_w": proj2_w.astype(jnp.bfloat16),
        "proj2_b": jnp.zeros((1, LANE), jnp.float32),
    }


if __name__ == "__main__":
    key = jax.random.PRNGKey(0)
    kp, k1, k2, kt = jax.random.split(key, 4)

    B, C, H, W = 8, 4, 16, 16           # 2B = 16 rows (one or two 8-row blocks)
    params = init_params(kp, C)
    x1 = jax.random.normal(k1, (B, C, H, W), jnp.float32)
    x2 = jax.random.normal(k2, (B, C, H, W), jnp.float32)
    target = jax.random.randint(kt, (B,), 0, NUM_CLASSES, jnp.int32)

    loss, logit1, logit2 = simclr_forward(params, x1, x2, target)
    jax.block_until_ready((loss, logit1, logit2))

    assert logit1.shape == (B, NUM_CLASSES) and logit2.shape == (B, NUM_CLASSES)
    assert loss.shape == ()
    assert bool(jnp.isfinite(loss))
    print("KERNEL_OK")
</pallas_src>

<mosaic_0001>
module attributes {stable_mosaic.version = 11 : i64} {
  func.func @_fused_kernel(%arg0: memref<4096x36xbf16, #tpu.memory_space<vmem>>, %arg1: memref<36x128xbf16, #tpu.memory_space<vmem>>, %arg2: memref<1x128xf32, #tpu.memory_space<vmem>>, %arg3: memref<128x256xbf16, #tpu.memory_space<vmem>>, %arg4: memref<1x256xf32, #tpu.memory_space<vmem>>, %arg5: memref<128x128xbf16, #tpu.memory_space<vmem>>, %arg6: memref<1x128xf32, #tpu.memory_space<vmem>>, %arg7: memref<1x16xi32, #tpu.memory_space<vmem>>, %arg8: memref<16x1xi32, #tpu.memory_space<vmem>>, %arg9: memref<16x128xf32, #tpu.memory_space<vmem>>, %arg10: memref<1x128xf32, #tpu.memory_space<vmem>>) attributes {dimension_semantics = [], scalar_prefetch = 0 : i64, scratch_operands = 0 : i64, tpu.core_type = #tpu.core_type<tc>} {
    %c0 = arith.constant 0 : index
    %c0_0 = arith.constant 0 : index
    %0 = vector.load %arg0[%c0, %c0_0] : memref<4096x36xbf16, #tpu.memory_space<vmem>>, vector<4096x36xbf16>
    %c0_1 = arith.constant 0 : index
    %c0_2 = arith.constant 0 : index
    %1 = vector.load %arg1[%c0_1, %c0_2] : memref<36x128xbf16, #tpu.memory_space<vmem>>, vector<36x128xbf16>
    %c0_3 = arith.constant 0 : index
    %c0_4 = arith.constant 0 : index
    %2 = vector.load %arg2[%c0_3, %c0_4] : memref<1x128xf32, #tpu.memory_space<vmem>>, vector<1x128xf32>
    %c0_5 = arith.constant 0 : index
    %c0_6 = arith.constant 0 : index
    %3 = vector.load %arg3[%c0_5, %c0_6] : memref<128x256xbf16, #tpu.memory_space<vmem>>, vector<128x256xbf16>
    %c0_7 = arith.constant 0 : index
    %c0_8 = arith.constant 0 : index
    %4 = vector.load %arg4[%c0_7, %c0_8] : memref<1x256xf32, #tpu.memory_space<vmem>>, vector<1x256xf32>
    %c0_9 = arith.constant 0 : index
    %c0_10 = arith.constant 0 : index
    %5 = vector.load %arg5[%c0_9, %c0_10] : memref<128x128xbf16, #tpu.memory_space<vmem>>, vector<128x128xbf16>
    %c0_11 = arith.constant 0 : index
    %c0_12 = arith.constant 0 : index
    %6 = vector.load %arg6[%c0_11, %c0_12] : memref<1x128xf32, #tpu.memory_space<vmem>>, vector<1x128xf32>
    %cst = arith.constant dense<0.000000e+00> : vector<4096x128xf32>
    %7 = tpu.matmul %0, %1, %cst {dimension_numbers = #tpu.dot_dimension_numbers<[1], [0], [0], [1], [0, 0, 1, 1], [], []>} : vector<4096x36xbf16>, vector<36x128xbf16>, vector<4096x128xf32> -> vector<4096x128xf32>
    %8 = vector.broadcast %2 : vector<1x128xf32> to vector<4096x128xf32>
    %9 = arith.addf %7, %8 : vector<4096x128xf32>
    %cst_13 = arith.constant 0.000000e+00 : f32
    %10 = vector.broadcast %cst_13 : f32 to vector<4096x128xf32>
    %11 = arith.maximumf %9, %10 : vector<4096x128xf32>
    %12 = vector.shape_cast %11 : vector<4096x128xf32> to vector<16x256x128xf32>
    %cst_14 = arith.constant dense<0.000000e+00> : vector<16x128xf32>
    %13 = vector.multi_reduction <add>, %12, %cst_14 [1] : vector<16x256x128xf32> to vector<16x128xf32>
    %cst_15 = arith.constant 3.906250e-03 : f32
    %14 = vector.broadcast %cst_15 : f32 to vector<16x128xf32>
    %15 = arith.mulf %13, %14 : vector<16x128xf32>
    %16 = arith.truncf %15 : vector<16x128xf32> to vector<16x128xbf16>
    %cst_16 = arith.constant dense<0.000000e+00> : vector<16x256xf32>
    %17 = tpu.matmul %16, %3, %cst_16 {dimension_numbers = #tpu.dot_dimension_numbers<[1], [0], [0], [1], [0, 0, 1, 1], [], []>} : vector<16x128xbf16>, vector<128x256xbf16>, vector<16x256xf32> -> vector<16x256xf32>
    %18 = vector.broadcast %4 : vector<1x256xf32> to vector<16x256xf32>
    %19 = arith.addf %17, %18 : vector<16x256xf32>
    %20 = vector.extract_strided_slice %19 {offsets = [0, 0], sizes = [16, 128], strides = [1, 1]} : vector<16x256xf32> to vector<16x128xf32>
    %21 = vector.extract_strided_slice %19 {offsets = [0, 128], sizes = [16, 128], strides = [1, 1]} : vector<16x256xf32> to vector<16x128xf32>
    %cst_17 = arith.constant 0.000000e+00 : f32
    %22 = vector.broadcast %cst_17 : f32 to vector<16x128xf32>
    %23 = arith.maximumf %21, %22 : vector<16x128xf32>
    %24 = arith.truncf %23 : vector<16x128xf32> to vector<16x128xbf16>
    %cst_18 = arith.constant dense<0.000000e+00> : vector<16x128xf32>
    %25 = tpu.matmul %24, %5, %cst_18 {dimension_numbers = #tpu.dot_dimension_numbers<[1], [0], [0], [1], [0, 0, 1, 1], [], []>} : vector<16x128xbf16>, vector<128x128xbf16>, vector<16x128xf32> -> vector<16x128xf32>
    %26 = vector.broadcast %6 : vector<1x128xf32> to vector<16x128xf32>
    %27 = arith.addf %25, %26 : vector<16x128xf32>
    %c0_19 = arith.constant 0 : index
    %c0_20 = arith.constant 0 : index
    %28 = vector.load %arg9[%c0_19, %c0_20] : memref<16x128xf32, #tpu.memory_space<vmem>>, vector<16x128xf32>
    tpu.vector_store %arg9[%c0_19, %c0_20], %20 {strides = array<i32>} : memref<16x128xf32, #tpu.memory_space<vmem>>, vector<16x128xf32>,
    %c0_21 = arith.constant 0 : index
    %c0_22 = arith.constant 0 : index
    %29 = vector.load %arg7[%c0_21, %c0_22] : memref<1x16xi32, #tpu.memory_space<vmem>>, vector<1x16xi32>
    %c0_23 = arith.constant 0 : index
    %c0_24 = arith.constant 0 : index
    %30 = vector.load %arg8[%c0_23, %c0_24] : memref<16x1xi32, #tpu.memory_space<vmem>>, vector<16x1xi32>
    %31 = arith.mulf %27, %27 : vector<16x128xf32>
    %cst_25 = arith.constant dense<0.000000e+00> : vector<16xf32>
    %32 = vector.multi_reduction <add>, %31, %cst_25 [1] : vector<16x128xf32> to vector<16xf32>
    %33 = vector.shape_cast %32 : vector<16xf32> to vector<16x1xf32>
    %cst_26 = arith.constant 1.000000e-24 : f32
    %34 = vector.broadcast %cst_26 : f32 to vector<16x1xf32>
    %35 = arith.addf %33, %34 : vector<16x1xf32>
    %36 = math.rsqrt %35 : vector<16x1xf32>
    %cst_27 = arith.constant 3.77964473 : f32
    %37 = vector.broadcast %cst_27 : f32 to vector<16x1xf32>
    %38 = arith.mulf %36, %37 : vector<16x1xf32>
    %39 = vector.broadcast %38 : vector<16x1xf32> to vector<16x128xf32>
    %40 = arith.mulf %27, %39 : vector<16x128xf32>
    %cst_28 = arith.constant dense<0.000000e+00> : vector<16x16xf32>
    %41 = tpu.matmul %40, %40, %cst_28 {dimension_numbers = #tpu.dot_dimension_numbers<[1], [1], [0], [0], [0, 0, 1, 0], [], []>} : vector<16x128xf32>, vector<16x128xf32>, vector<16x16xf32> -> vector<16x16xf32>
    %cst_29 = arith.constant dense<0xFF800000> : vector<16xf32>
    %42 = vector.multi_reduction <maximumf>, %41, %cst_29 [1] : vector<16x16xf32> to vector<16xf32>
    %43 = vector.shape_cast %42 : vector<16xf32> to vector<16x1xf32>
    %44 = vector.broadcast %43 : vector<16x1xf32> to vector<16x16xf32>
    %45 = arith.subf %41, %44 : vector<16x16xf32>
    %46 = tpu.iota {dimensions = array<i32: 0>} : vector<16x16xi32>
    %47 = tpu.iota {dimensions = array<i32: 1>} : vector<16x16xi32>
    %48 = arith.cmpi eq, %46, %47 : vector<16x16xi32>
    %cst_30 = arith.constant 0.000000e+00 : f32
    %cst_31 = arith.constant 1.000000e+00 : f32
    %49 = vector.broadcast %cst_30 : f32 to vector<16x16xf32>
    %50 = vector.broadcast %cst_31 : f32 to vector<16x16xf32>
    %51 = arith.select %48, %49, %50 : vector<16x16xi1>, vector<16x16xf32>
    %52 = vector.broadcast %30 : vector<16x1xi32> to vector<16x16xi32>
    %53 = vector.broadcast %29 : vector<1x16xi32> to vector<16x16xi32>
    %54 = arith.cmpi eq, %52, %53 : vector<16x16xi32>
    %cst_32 = arith.constant 1.000000e+00 : f32
    %cst_33 = arith.constant 0.000000e+00 : f32
    %55 = vector.broadcast %cst_32 : f32 to vector<16x16xf32>
    %56 = vector.broadcast %cst_33 : f32 to vector<16x16xf32>
    %57 = arith.select %54, %55, %56 : vector<16x16xi1>, vector<16x16xf32>
    %58 = arith.mulf %57, %51 : vector<16x16xf32>
    %59 = math.exp %45 : vector<16x16xf32>
    %60 = arith.mulf %59, %51 : vector<16x16xf32>
    %cst_34 = arith.constant dense<0.000000e+00> : vector<16xf32>
    %61 = vector.multi_reduction <add>, %60, %cst_34 [1] : vector<16x16xf32> to vector<16xf32>
    %62 = vector.shape_cast %61 : vector<16xf32> to vector<16x1xf32>
    %63 = math.log %62 : vector<16x1xf32>
    %64 = vector.broadcast %63 : vector<16x1xf32> to vector<16x16xf32>
    %65 = arith.subf %45, %64 : vector<16x16xf32>
    %cst_35 = arith.constant dense<0.000000e+00> : vector<16xf32>
    %66 = vector.multi_reduction <add>, %58, %cst_35 [1] : vector<16x16xf32> to vector<16xf32>
    %67 = vector.shape_cast %66 : vector<16xf32> to vector<16x1xf32>
    %cst_36 = arith.constant 1.000000e+00 : f32
    %68 = vector.broadcast %cst_36 : f32 to vector<16x1xf32>
    %69 = arith.maximumf %67, %68 : vector<16x1xf32>
    %70 = arith.mulf %58, %65 : vector<16x16xf32>
    %cst_37 = arith.constant dense<0.000000e+00> : vector<16xf32>
    %71 = vector.multi_reduction <add>, %70, %cst_37 [1] : vector<16x16xf32> to vector<16xf32>
    %72 = vector.shape_cast %71 : vector<16xf32> to vector<16x1xf32>
    %73 = tpu.reciprocal %69 {approx = true} : vector<16x1xf32> -> vector<16x1xf32>
    %74 = arith.mulf %72, %73 : vector<16x1xf32>
    %cst_38 = arith.constant dense<0.000000e+00> : vector<1xf32>
    %75 = vector.multi_reduction <add>, %74, %cst_38 [0] : vector<16x1xf32> to vector<1xf32>
    %76 = vector.shape_cast %75 : vector<1xf32> to vector<1x1xf32>
    %cst_39 = arith.constant 6.250000e-02 : f32
    %77 = vector.broadcast %cst_39 : f32 to vector<1x1xf32>
    %78 = arith.mulf %76, %77 : vector<1x1xf32>
    %cst_40 = arith.constant -1.000000e+00 : f32
    %79 = vector.broadcast %cst_40 : f32 to vector<1x1xf32>
    %80 = arith.mulf %79, %78 : vector<1x1xf32>
    %81 = vector.shape_cast %80 : vector<1x1xf32> to vector<1x1xf32>
    %82 = vector.broadcast %81 : vector<1x1xf32> to vector<1x128xf32>
    %c0_41 = arith.constant 0 : index
    %c0_42 = arith.constant 0 : index
    %83 = vector.load %arg10[%c0_41, %c0_42] : memref<1x128xf32, #tpu.memory_space<vmem>>, vector<1x128xf32>
    tpu.vector_store %arg10[%c0_41, %c0_42], %82 {strides = array<i32>} : memref<1x128xf32, #tpu.memory_space<vmem>>, vector<1x128xf32>,
    return
  }
}

</mosaic_0001>

<llo_original>
// kernel: _forward.1
$region0: #{_forward.1}
  #allocation0 [shape = 'u32[]', space=smem, size = 0x4, offset = 0x4, fixed_abs, tag = 'smem constant byte address 0x4 - core index']
  #allocation1 [shape = 'u32[144,128]{1,0:T(1,128)}', space=vmem, size = 0x12000, scoped, tag = 'internal scratch']
  %s0 = inlined_call_operand.vmem [shape: bf16[4096,36], index: 0, kind: input, shape index: {}]
  %s1 = inlined_call_operand.vmem [shape: bf16[36,128], index: 1, kind: input, shape index: {}]
  %s2 = inlined_call_operand.vmem [shape: f32[1,128], index: 2, kind: input, shape index: {}]
  %s3 = inlined_call_operand.vmem [shape: bf16[128,256], index: 3, kind: input, shape index: {}]
  %s4 = inlined_call_operand.vmem [shape: f32[1,256], index: 4, kind: input, shape index: {}]
  %s5 = inlined_call_operand.vmem [shape: bf16[128,128], index: 5, kind: input, shape index: {}]
  %s6 = inlined_call_operand.vmem [shape: f32[1,128], index: 6, kind: input, shape index: {}]
  %s7 = inlined_call_operand.vmem [shape: s32[1,16], index: 7, kind: input, shape index: {}]
  %s8 = inlined_call_operand.vmem [shape: s32[16,1], index: 8, kind: input, shape index: {}]
  %s9 = inlined_call_operand.vmem [shape: f32[16,128], index: 9, kind: output, shape index: {0}]
  %s10 = inlined_call_operand.hbm [shape: f32[1,128], index: 10, kind: output, shape index: {1}]
  %11 = xla_tuple %s9, %s10
  %s12 = sld [smem:[#allocation0]]
  $region54: #{_forward.1} parent=0
    _
  %s14 = ssub.s32 1, %s12
  %s15 = scalar_select 0, %s14, %s12
  $region1: #{_forward.1} parent=0
    #allocation2 [shape = 'u8[512]{0}', space=vmem, size = 0x400, scoped, tag = 'output window, operand 1, single buffered']
    #allocation3 [shape = 's32[1]{0}', space=sflag, size = 0x4, scoped, tag = 'scoped memory for _forward.1']
    %16 = vsyncpa [#allocation3], 0
    // Predicated region
    $region2: #{_forward.1} parent=1 // pred_check
      _
    $region3: #{_forward.1} parent=1 // pred_check_branch
      %18 = sbr.rel (0) target = $region5
    $region4: #{_forward.1} parent=1 // pred_region
      _
    $region5: #{_forward.1} parent=1 // pred_fallthru
      _
    // Predicated region
    $region6: #{_forward.1} parent=1 // pred_check
      _
    $region7: #{_forward.1} parent=1 // pred_check_branch
      %20 = sbr.rel (0) target = $region9
    $region8: #{_forward.1} parent=1 // pred_region
      _
    $region9: #{_forward.1} parent=1 // pred_fallthru
      _
    // Predicated region
    $region10: #{_forward.1} parent=1 // pred_check
      _
    $region11: #{_forward.1} parent=1 // pred_check_branch
      %22 = sbr.rel (0) target = $region13
    $region12: #{_forward.1} parent=1 // pred_region
      _
    $region13: #{_forward.1} parent=1 // pred_fallthru
      _
    // Predicated region
    $region14: #{_forward.1} parent=1 // pred_check
      _
    $region15: #{_forward.1} parent=1 // pred_check_branch
      %24 = sbr.rel (0) target = $region17
    $region16: #{_forward.1} parent=1 // pred_region
      _
    $region17: #{_forward.1} parent=1 // pred_fallthru
      _
    // Predicated region
    $region18: #{_forward.1} parent=1 // pred_check
      _
    $region19: #{_forward.1} parent=1 // pred_check_branch
      %26 = sbr.rel (0) target = $region21
    $region20: #{_forward.1} parent=1 // pred_region
      _
    $region21: #{_forward.1} parent=1 // pred_fallthru
      _
    // Predicated region
    $region22: #{_forward.1} parent=1 // pred_check
      _
    $region23: #{_forward.1} parent=1 // pred_check_branch
      %28 = sbr.rel (0) target = $region25
    $region24: #{_forward.1} parent=1 // pred_region
      _
    $region25: #{_forward.1} parent=1 // pred_fallthru
      _
    // Predicated region
    $region26: #{_forward.1} parent=1 // pred_check
      _
    $region27: #{_forward.1} parent=1 // pred_check_branch
      %30 = sbr.rel (0) target = $region29
    $region28: #{_forward.1} parent=1 // pred_region
      _
    $region29: #{_forward.1} parent=1 // pred_fallthru
      _
    // Predicated region
    $region30: #{_forward.1} parent=1 // pred_check
      _
    $region31: #{_forward.1} parent=1 // pred_check_branch
      %32 = sbr.rel (0) target = $region33
    $region32: #{_forward.1} parent=1 // pred_region
      _
    $region33: #{_forward.1} parent=1 // pred_fallthru
      _
    // Predicated region
    $region34: #{_forward.1} parent=1 // pred_check
      _
    $region35: #{_forward.1} parent=1 // pred_check_branch
      %34 = sbr.rel (0) target = $region37
    $region36: #{_forward.1} parent=1 // pred_region
      _
    $region37: #{_forward.1} parent=1 // pred_fallthru
      _
    %v36 = vld [vmem:[%s0] sm:$0xf]
    %v37 = vld [vmem:[%s0 + $0x4] sm:$0xf]
    %v38 = vld [vmem:[%s0 + $0x8] sm:$0xf]
    %v39 = vld [vmem:[%s0 + $0xc] sm:$0xf]
    %v40 = vld [vmem:[%s0 + $0x10] sm:$0xf]
    %v41 = vld [vmem:[%s0 + $0x14] sm:$0xf]
    %v42 = vld [vmem:[%s0 + $0x18] sm:$0xf]
    %v43 = vld [vmem:[%s0 + $0x1c] sm:$0xf]
    %v44 = vld [vmem:[%s0 + $0x20] sm:$0xf]
    %v45 = vld [vmem:[%s0 + $0x24] sm:$0xf]
    %v46 = vld [vmem:[%s0 + $0x28] sm:$0xf]
    %v47 = vld [vmem:[%s0 + $0x2c] sm:$0xf]
    %v48 = vld [vmem:[%s0 + $0x30] sm:$0xf]
    %v49 = vld [vmem:[%s0 + $0x34] sm:$0xf]
    %v50 = vld [vmem:[%s0 + $0x38] sm:$0xf]
    %v51 = vld [vmem:[%s0 + $0x3c] sm:$0xf]
    %v52 = vld [vmem:[%s0 + $0x40] sm:$0xf]
    %v53 = vld [vmem:[%s0 + $0x44] sm:$0xf]
    %v54 = vld [vmem:[%s0 + $0x48] sm:$0xf]
    %v55 = vld [vmem:[%s0 + $0x4c] sm:$0xf]
    %v56 = vld [vmem:[%s0 + $0x50] sm:$0xf]
    %v57 = vld [vmem:[%s0 + $0x54] sm:$0xf]
    %v58 = vld [vmem:[%s0 + $0x58] sm:$0xf]
    %v59 = vld [vmem:[%s0 + $0x5c] sm:$0xf]
    %v60 = vld [vmem:[%s0 + $0x60] sm:$0xf]
    %v61 = vld [vmem:[%s0 + $0x64] sm:$0xf]
    %v62 = vld [vmem:[%s0 + $0x68] sm:$0xf]
    %v63 = vld [vmem:[%s0 + $0x6c] sm:$0xf]
    %v64 = vld [vmem:[%s0 + $0x70] sm:$0xf]
    %v65 = vld [vmem:[%s0 + $0x74] sm:$0xf]
    %v66 = vld [vmem:[%s0 + $0x78] sm:$0xf]
    %v67 = vld [vmem:[%s0 + $0x7c] sm:$0xf]
    %v68 = vld [vmem:[%s0 + $0x80] sm:$0xf]
    %v69 = vld [vmem:[%s0 + $0x84] sm:$0xf]
    %v70 = vld [vmem:[%s0 + $0x88] sm:$0xf]
    %v71 = vld [vmem:[%s0 + $0x8c] sm:$0xf]
    %v72 = vld [vmem:[%s0 + $0x90] sm:$0xf]
    %v73 = vld [vmem:[%s0 + $0x94] sm:$0xf]
    %v74 = vld [vmem:[%s0 + $0x98] sm:$0xf]
    %v75 = vld [vmem:[%s0 + $0x9c] sm:$0xf]
    %v76 = vld [vmem:[%s0 + $0xa0] sm:$0xf]
    %v77 = vld [vmem:[%s0 + $0xa4] sm:$0xf]
    %v78 = vld [vmem:[%s0 + $0xa8] sm:$0xf]
    %v79 = vld [vmem:[%s0 + $0xac] sm:$0xf]
    %v80 = vld [vmem:[%s0 + $0xb0] sm:$0xf]
    %v81 = vld [vmem:[%s0 + $0xb4] sm:$0xf]
    %v82 = vld [vmem:[%s0 + $0xb8] sm:$0xf]
    %v83 = vld [vmem:[%s0 + $0xbc] sm:$0xf]
    %v84 = vld [vmem:[%s0 + $0xc0] sm:$0xf]
    %v85 = vld [vmem:[%s0 + $0xc4] sm:$0xf]
    %v86 = vld [vmem:[%s0 + $0xc8] sm:$0xf]
    %v87 = vld [vmem:[%s0 + $0xcc] sm:$0xf]
    %v88 = vld [vmem:[%s0 + $0xd0] sm:$0xf]
    %v89 = vld [vmem:[%s0 + $0xd4] sm:$0xf]
    %v90 = vld [vmem:[%s0 + $0xd8] sm:$0xf]
    %v91 = vld [vmem:[%s0 + $0xdc] sm:$0xf]
    %v92 = vld [vmem:[%s0 + $0xe0] sm:$0xf]
    %v93 = vld [vmem:[%s0 + $0xe4] sm:$0xf]
    %v94 = vld [vmem:[%s0 + $0xe8] sm:$0xf]
    %v95 = vld [vmem:[%s0 + $0xec] sm:$0xf]
    %v96 = vld [vmem:[%s0 + $0xf0] sm:$0xf]
    %v97 = vld [vmem:[%s0 + $0xf4] sm:$0xf]
    %v98 = vld [vmem:[%s0 + $0xf8] sm:$0xf]
    %v99 = vld [vmem:[%s0 + $0xfc] sm:$0xf]
    %v100 = vld [vmem:[%s0 + $0x100] sm:$0xf]
    %v101 = vld [vmem:[%s0 + $0x104] sm:$0xf]
    %v102 = vld [vmem:[%s0 + $0x108] sm:$0xf]
    %v103 = vld [vmem:[%s0 + $0x10c] sm:$0xf]
    %v104 = vld [vmem:[%s0 + $0x110] sm:$0xf]
    %v105 = vld [vmem:[%s0 + $0x114] sm:$0xf]
    %v106 = vld [vmem:[%s0 + $0x118] sm:$0xf]
    %v107 = vld [vmem:[%s0 + $0x11c] sm:$0xf]
    %v108 = vld [vmem:[%s0 + $0x120] sm:$0xf]
    %v109 = vld [vmem:[%s0 + $0x124] sm:$0xf]
    %v110 = vld [vmem:[%s0 + $0x128] sm:$0xf]
    %v111 = vld [vmem:[%s0 + $0x12c] sm:$0xf]
    %v112 = vld [vmem:[%s0 + $0x130] sm:$0xf]
    %v113 = vld [vmem:[%s0 + $0x134] sm:$0xf]
    %v114 = vld [vmem:[%s0 + $0x138] sm:$0xf]
    %v115 = vld [vmem:[%s0 + $0x13c] sm:$0xf]
    %v116 = vld [vmem:[%s0 + $0x140] sm:$0xf]
    %v117 = vld [vmem:[%s0 + $0x144] sm:$0xf]
    %v118 = vld [vmem:[%s0 + $0x148] sm:$0xf]
    %v119 = vld [vmem:[%s0 + $0x14c] sm:$0xf]
    %v120 = vld [vmem:[%s0 + $0x150] sm:$0xf]
    %v121 = vld [vmem:[%s0 + $0x154] sm:$0xf]
    %v122 = vld [vmem:[%s0 + $0x158] sm:$0xf]
    %v123 = vld [vmem:[%s0 + $0x15c] sm:$0xf]
    %v124 = vld [vmem:[%s0 + $0x160] sm:$0xf]
    %v125 = vld [vmem:[%s0 + $0x164] sm:$0xf]
    %v126 = vld [vmem:[%s0 + $0x168] sm:$0xf]
    %v127 = vld [vmem:[%s0 + $0x16c] sm:$0xf]
    %v128 = vld [vmem:[%s0 + $0x170] sm:$0xf]
    %v129 = vld [vmem:[%s0 + $0x174] sm:$0xf]
    %v130 = vld [vmem:[%s0 + $0x178] sm:$0xf]
    %v131 = vld [vmem:[%s0 + $0x17c] sm:$0xf]
    %v132 = vld [vmem:[%s0 + $0x180] sm:$0xf]
    %v133 = vld [vmem:[%s0 + $0x184] sm:$0xf]
    %v134 = vld [vmem:[%s0 + $0x188] sm:$0xf]
    %v135 = vld [vmem:[%s0 + $0x18c] sm:$0xf]
    %v136 = vld [vmem:[%s0 + $0x190] sm:$0xf]
    %v137 = vld [vmem:[%s0 + $0x194] sm:$0xf]
    %v138 = vld [vmem:[%s0 + $0x198] sm:$0xf]
    %v139 = vld [vmem:[%s0 + $0x19c] sm:$0xf]
    %v140 = vld [vmem:[%s0 + $0x1a0] sm:$0xf]
    %v141 = vld [vmem:[%s0 + $0x1a4] sm:$0xf]
    %v142 = vld [vmem:[%s0 + $0x1a8] sm:$0xf]
    %v143 = vld [vmem:[%s0 + $0x1ac] sm:$0xf]
    %v144 = vld [vmem:[%s0 + $0x1b0] sm:$0xf]
    %v145 = vld [vmem:[%s0 + $0x1b4] sm:$0xf]
    %v146 = vld [vmem:[%s0 + $0x1b8] sm:$0xf]
    %v147 = vld [vmem:[%s0 + $0x1bc] sm:$0xf]
    %v148 = vld [vmem:[%s0 + $0x1c0] sm:$0xf]
    %v149 = vld [vmem:[%s0 + $0x1c4] sm:$0xf]
    %v150 = vld [vmem:[%s0 + $0x1c8] sm:$0xf]
    %v151 = vld [vmem:[%s0 + $0x1cc] sm:$0xf]
    %v152 = vld [vmem:[%s0 + $0x1d0] sm:$0xf]
    %v153 = vld [vmem:[%s0 + $0x1d4] sm:$0xf]
    %v154 = vld [vmem:[%s0 + $0x1d8] sm:$0xf]
    %v155 = vld [vmem:[%s0 + $0x1dc] sm:$0xf]
    %v156 = vld [vmem:[%s0 + $0x1e0] sm:$0xf]
    %v157 = vld [vmem:[%s0 + $0x1e4] sm:$0xf]
    %v158 = vld [vmem:[%s0 + $0x1e8] sm:$0xf]
    %v159 = vld [vmem:[%s0 + $0x1ec] sm:$0xf]
    %v160 = vld [vmem:[%s0 + $0x1f0] sm:$0xf]
    %v161 = vld [vmem:[%s0 + $0x1f4] sm:$0xf]
    %v162 = vld [vmem:[%s0 + $0x1f8] sm:$0xf]
    %v163 = vld [vmem:[%s0 + $0x1fc] sm:$0xf]
    %v164 = vld [vmem:[%s0 + $0x200] sm:$0xf]
    %v165 = vld [vmem:[%s0 + $0x204] sm:$0xf]
    %v166 = vld [vmem:[%s0 + $0x208] sm:$0xf]
    %v167 = vld [vmem:[%s0 + $0x20c] sm:$0xf]
    %v168 = vld [vmem:[%s0 + $0x210] sm:$0xf]
    %v169 = vld [vmem:[%s0 + $0x214] sm:$0xf]
    %v170 = vld [vmem:[%s0 + $0x218] sm:$0xf]
    %v171 = vld [vmem:[%s0 + $0x21c] sm:$0xf]
    %v172 = vld [vmem:[%s0 + $0x220] sm:$0xf]
    %v173 = vld [vmem:[%s0 + $0x224] sm:$0xf]
    %v174 = vld [vmem:[%s0 + $0x228] sm:$0xf]
    %v175 = vld [vmem:[%s0 + $0x22c] sm:$0xf]
    %v176 = vld [vmem:[%s0 + $0x230] sm:$0xf]
    %v177 = vld [vmem:[%s0 + $0x234] sm:$0xf]
    %v178 = vld [vmem:[%s0 + $0x238] sm:$0xf]
    %v179 = vld [vmem:[%s0 + $0x23c] sm:$0xf]
    %v180 = vld [vmem:[%s0 + $0x240] sm:$0xf]
    %v181 = vld [vmem:[%s0 + $0x244] sm:$0xf]
    %v182 = vld [vmem:[%s0 + $0x248] sm:$0xf]
    %v183 = vld [vmem:[%s0 + $0x24c] sm:$0xf]
    %v184 = vld [vmem:[%s0 + $0x250] sm:$0xf]
    %v185 = vld [vmem:[%s0 + $0x254] sm:$0xf]
    %v186 = vld [vmem:[%s0 + $0x258] sm:$0xf]
    %v187 = vld [vmem:[%s0 + $0x25c] sm:$0xf]
    %v188 = vld [vmem:[%s0 + $0x260] sm:$0xf]
    %v189 = vld [vmem:[%s0 + $0x264] sm:$0xf]
    %v190 = vld [vmem:[%s0 + $0x268] sm:$0xf]
    %v191 = vld [vmem:[%s0 + $0x26c] sm:$0xf]
    %v192 = vld [vmem:[%s0 + $0x270] sm:$0xf]
    %v193 = vld [vmem:[%s0 + $0x274] sm:$0xf]
    %v194 = vld [vmem:[%s0 + $0x278] sm:$0xf]
    %v195 = vld [vmem:[%s0 + $0x27c] sm:$0xf]
    %v196 = vld [vmem:[%s0 + $0x280] sm:$0xf]
    %v197 = vld [vmem:[%s0 + $0x284] sm:$0xf]
    %v198 = vld [vmem:[%s0 + $0x288] sm:$0xf]
    %v199 = vld [vmem:[%s0 + $0x28c] sm:$0xf]
    %v200 = vld [vmem:[%s0 + $0x290] sm:$0xf]
    %v201 = vld [vmem:[%s0 + $0x294] sm:$0xf]
    %v202 = vld [vmem:[%s0 + $0x298] sm:$0xf]
    %v203 = vld [vmem:[%s0 + $0x29c] sm:$0xf]
    %v204 = vld [vmem:[%s0 + $0x2a0] sm:$0xf]
    %v205 = vld [vmem:[%s0 + $0x2a4] sm:$0xf]
    %v206 = vld [vmem:[%s0 + $0x2a8] sm:$0xf]
    %v207 = vld [vmem:[%s0 + $0x2ac] sm:$0xf]
    %v208 = vld [vmem:[%s0 + $0x2b0] sm:$0xf]
    %v209 = vld [vmem:[%s0 + $0x2b4] sm:$0xf]
    %v210 = vld [vmem:[%s0 + $0x2b8] sm:$0xf]
    %v211 = vld [vmem:[%s0 + $0x2bc] sm:$0xf]
    %v212 = vld [vmem:[%s0 + $0x2c0] sm:$0xf]
    %v213 = vld [vmem:[%s0 + $0x2c4] sm:$0xf]
    %v214 = vld [vmem:[%s0 + $0x2c8] sm:$0xf]
    %v215 = vld [vmem:[%s0 + $0x2cc] sm:$0xf]
    %v216 = vld [vmem:[%s0 + $0x2d0] sm:$0xf]
    %v217 = vld [vmem:[%s0 + $0x2d4] sm:$0xf]
    %v218 = vld [vmem:[%s0 + $0x2d8] sm:$0xf]
    %v219 = vld [vmem:[%s0 + $0x2dc] sm:$0xf]
    %v220 = vld [vmem:[%s0 + $0x2e0] sm:$0xf]
    %v221 = vld [vmem:[%s0 + $0x2e4] sm:$0xf]
    %v222 = vld [vmem:[%s0 + $0x2e8] sm:$0xf]
    %v223 = vld [vmem:[%s0 + $0x2ec] sm:$0xf]
    %v224 = vld [vmem:[%s0 + $0x2f0] sm:$0xf]
    %v225 = vld [vmem:[%s0 + $0x2f4] sm:$0xf]
    %v226 = vld [vmem:[%s0 + $0x2f8] sm:$0xf]
    %v227 = vld [vmem:[%s0 + $0x2fc] sm:$0xf]
    %v228 = vld [vmem:[%s0 + $0x300] sm:$0xf]
    %v229 = vld [vmem:[%s0 + $0x304] sm:$0xf]
    %v230 = vld [vmem:[%s0 + $0x308] sm:$0xf]
    %v231 = vld [vmem:[%s0 + $0x30c] sm:$0xf]
    %v232 = vld [vmem:[%s0 + $0x310] sm:$0xf]
    %v233 = vld [vmem:[%s0 + $0x314] sm:$0xf]
    %v234 = vld [vmem:[%s0 + $0x318] sm:$0xf]
    %v235 = vld [vmem:[%s0 + $0x31c] sm:$0xf]
    %v236 = vld [vmem:[%s0 + $0x320] sm:$0xf]
    %v237 = vld [vmem:[%s0 + $0x324] sm:$0xf]
    %v238 = vld [vmem:[%s0 + $0x328] sm:$0xf]
    %v239 = vld [vmem:[%s0 + $0x32c] sm:$0xf]
    %v240 = vld [vmem:[%s0 + $0x330] sm:$0xf]
    %v241 = vld [vmem:[%s0 + $0x334] sm:$0xf]
    %v242 = vld [vmem:[%s0 + $0x338] sm:$0xf]
    %v243 = vld [vmem:[%s0 + $0x33c] sm:$0xf]
    %v244 = vld [vmem:[%s0 + $0x340] sm:$0xf]
    %v245 = vld [vmem:[%s0 + $0x344] sm:$0xf]
    %v246 = vld [vmem:[%s0 + $0x348] sm:$0xf]
    %v247 = vld [vmem:[%s0 + $0x34c] sm:$0xf]
    %v248 = vld [vmem:[%s0 + $0x350] sm:$0xf]
    %v249 = vld [vmem:[%s0 + $0x354] sm:$0xf]
    %v250 = vld [vmem:[%s0 + $0x358] sm:$0xf]
    %v251 = vld [vmem:[%s0 + $0x35c] sm:$0xf]
    %v252 = vld [vmem:[%s0 + $0x360] sm:$0xf]
    %v253 = vld [vmem:[%s0 + $0x364] sm:$0xf]
    %v254 = vld [vmem:[%s0 + $0x368] sm:$0xf]
    %v255 = vld [vmem:[%s0 + $0x36c] sm:$0xf]
    %v256 = vld [vmem:[%s0 + $0x370] sm:$0xf]
    %v257 = vld [vmem:[%s0 + $0x374] sm:$0xf]
    %v258 = vld [vmem:[%s0 + $0x378] sm:$0xf]
    %v259 = vld [vmem:[%s0 + $0x37c] sm:$0xf]
    %v260 = vld [vmem:[%s0 + $0x380] sm:$0xf]
    %v261 = vld [vmem:[%s0 + $0x384] sm:$0xf]
    %v262 = vld [vmem:[%s0 + $0x388] sm:$0xf]
    %v263 = vld [vmem:[%s0 + $0x38c] sm:$0xf]
    %v264 = vld [vmem:[%s0 + $0x390] sm:$0xf]
    %v265 = vld [vmem:[%s0 + $0x394] sm:$0xf]
    %v266 = vld [vmem:[%s0 + $0x398] sm:$0xf]
    %v267 = vld [vmem:[%s0 + $0x39c] sm:$0xf]
    %v268 = vld [vmem:[%s0 + $0x3a0] sm:$0xf]
    %v269 = vld [vmem:[%s0 + $0x3a4] sm:$0xf]
    %v270 = vld [vmem:[%s0 + $0x3a8] sm:$0xf]
    %v271 = vld [vmem:[%s0 + $0x3ac] sm:$0xf]
    %v272 = vld [vmem:[%s0 + $0x3b0] sm:$0xf]
    %v273 = vld [vmem:[%s0 + $0x3b4] sm:$0xf]
    %v274 = vld [vmem:[%s0 + $0x3b8] sm:$0xf]
    %v275 = vld [vmem:[%s0 + $0x3bc] sm:$0xf]
    %v276 = vld [vmem:[%s0 + $0x3c0] sm:$0xf]
    %v277 = vld [vmem:[%s0 + $0x3c4] sm:$0xf]
    %v278 = vld [vmem:[%s0 + $0x3c8] sm:$0xf]
    %v279 = vld [vmem:[%s0 + $0x3cc] sm:$0xf]
    %v280 = vld [vmem:[%s0 + $0x3d0] sm:$0xf]
    %v281 = vld [vmem:[%s0 + $0x3d4] sm:$0xf]
    %v282 = vld [vmem:[%s0 + $0x3d8] sm:$0xf]
    %v283 = vld [vmem:[%s0 + $0x3dc] sm:$0xf]
    %v284 = vld [vmem:[%s0 + $0x3e0] sm:$0xf]
    %v285 = vld [vmem:[%s0 + $0x3e4] sm:$0xf]
    %v286 = vld [vmem:[%s0 + $0x3e8] sm:$0xf]
    %v287 = vld [vmem:[%s0 + $0x3ec] sm:$0xf]
    %v288 = vld [vmem:[%s0 + $0x3f0] sm:$0xf]
    %v289 = vld [vmem:[%s0 + $0x3f4] sm:$0xf]
    %v290 = vld [vmem:[%s0 + $0x3f8] sm:$0xf]
    %v291 = vld [vmem:[%s0 + $0x3fc] sm:$0xf]
    %v292 = vld [vmem:[%s0 + $0x400] sm:$0xf]
    %v293 = vld [vmem:[%s0 + $0x404] sm:$0xf]
    %v294 = vld [vmem:[%s0 + $0x408] sm:$0xf]
    %v295 = vld [vmem:[%s0 + $0x40c] sm:$0xf]
    %v296 = vld [vmem:[%s0 + $0x410] sm:$0xf]
    %v297 = vld [vmem:[%s0 + $0x414] sm:$0xf]
    %v298 = vld [vmem:[%s0 + $0x418] sm:$0xf]
    %v299 = vld [vmem:[%s0 + $0x41c] sm:$0xf]
    %v300 = vld [vmem:[%s0 + $0x420] sm:$0xf]
    %v301 = vld [vmem:[%s0 + $0x424] sm:$0xf]
    %v302 = vld [vmem:[%s0 + $0x428] sm:$0xf]
    %v303 = vld [vmem:[%s0 + $0x42c] sm:$0xf]
    %v304 = vld [vmem:[%s0 + $0x430] sm:$0xf]
    %v305 = vld [vmem:[%s0 + $0x434] sm:$0xf]
    %v306 = vld [vmem:[%s0 + $0x438] sm:$0xf]
    %v307 = vld [vmem:[%s0 + $0x43c] sm:$0xf]
    %v308 = vld [vmem:[%s0 + $0x440] sm:$0xf]
    %v309 = vld [vmem:[%s0 + $0x444] sm:$0xf]
    %v310 = vld [vmem:[%s0 + $0x448] sm:$0xf]
    %v311 = vld [vmem:[%s0 + $0x44c] sm:$0xf]
    %v312 = vld [vmem:[%s0 + $0x450] sm:$0xf]
    %v313 = vld [vmem:[%s0 + $0x454] sm:$0xf]
    %v314 = vld [vmem:[%s0 + $0x458] sm:$0xf]
    %v315 = vld [vmem:[%s0 + $0x45c] sm:$0xf]
    %v316 = vld [vmem:[%s0 + $0x460] sm:$0xf]
    %v317 = vld [vmem:[%s0 + $0x464] sm:$0xf]
    %v318 = vld [vmem:[%s0 + $0x468] sm:$0xf]
    %v319 = vld [vmem:[%s0 + $0x46c] sm:$0xf]
    %v320 = vld [vmem:[%s0 + $0x470] sm:$0xf]
    %v321 = vld [vmem:[%s0 + $0x474] sm:$0xf]
    %v322 = vld [vmem:[%s0 + $0x478] sm:$0xf]
    %v323 = vld [vmem:[%s0 + $0x47c] sm:$0xf]
    %v324 = vld [vmem:[%s0 + $0x480] sm:$0xf]
    %v325 = vld [vmem:[%s0 + $0x484] sm:$0xf]
    %v326 = vld [vmem:[%s0 + $0x488] sm:$0xf]
    %v327 = vld [vmem:[%s0 + $0x48c] sm:$0xf]
    %v328 = vld [vmem:[%s0 + $0x490] sm:$0xf]
    %v329 = vld [vmem:[%s0 + $0x494] sm:$0xf]
    %v330 = vld [vmem:[%s0 + $0x498] sm:$0xf]
    %v331 = vld [vmem:[%s0 + $0x49c] sm:$0xf]
    %v332 = vld [vmem:[%s0 + $0x4a0] sm:$0xf]
    %v333 = vld [vmem:[%s0 + $0x4a4] sm:$0xf]
    %v334 = vld [vmem:[%s0 + $0x4a8] sm:$0xf]
    %v335 = vld [vmem:[%s0 + $0x4ac] sm:$0xf]
    %v336 = vld [vmem:[%s0 + $0x4b0] sm:$0xf]
    %v337 = vld [vmem:[%s0 + $0x4b4] sm:$0xf]
    %v338 = vld [vmem:[%s0 + $0x4b8] sm:$0xf]
    %v339 = vld [vmem:[%s0 + $0x4bc] sm:$0xf]
    %v340 = vld [vmem:[%s0 + $0x4c0] sm:$0xf]
    %v341 = vld [vmem:[%s0 + $0x4c4] sm:$0xf]
    %v342 = vld [vmem:[%s0 + $0x4c8] sm:$0xf]
    %v343 = vld [vmem:[%s0 + $0x4cc] sm:$0xf]
    %v344 = vld [vmem:[%s0 + $0x4d0] sm:$0xf]
    %v345 = vld [vmem:[%s0 + $0x4d4] sm:$0xf]
    %v346 = vld [vmem:[%s0 + $0x4d8] sm:$0xf]
    %v347 = vld [vmem:[%s0 + $0x4dc] sm:$0xf]
    %v348 = vld [vmem:[%s0 + $0x4e0] sm:$0xf]
    %v349 = vld [vmem:[%s0 + $0x4e4] sm:$0xf]
    %v350 = vld [vmem:[%s0 + $0x4e8] sm:$0xf]
    %v351 = vld [vmem:[%s0 + $0x4ec] sm:$0xf]
    %v352 = vld [vmem:[%s0 + $0x4f0] sm:$0xf]
    %v353 = vld [vmem:[%s0 + $0x4f4] sm:$0xf]
    %v354 = vld [vmem:[%s0 + $0x4f8] sm:$0xf]
    %v355 = vld [vmem:[%s0 + $0x4fc] sm:$0xf]
    %v356 = vld [vmem:[%s0 + $0x500] sm:$0xf]
    %v357 = vld [vmem:[%s0 + $0x504] sm:$0xf]
    %v358 = vld [vmem:[%s0 + $0x508] sm:$0xf]
    %v359 = vld [vmem:[%s0 + $0x50c] sm:$0xf]
    %v360 = vld [vmem:[%s0 + $0x510] sm:$0xf]
    %v361 = vld [vmem:[%s0 + $0x514] sm:$0xf]
    %v362 = vld [vmem:[%s0 + $0x518] sm:$0xf]
    %v363 = vld [vmem:[%s0 + $0x51c] sm:$0xf]
    %v364 = vld [vmem:[%s0 + $0x520] sm:$0xf]
    %v365 = vld [vmem:[%s0 + $0x524] sm:$0xf]
    %v366 = vld [vmem:[%s0 + $0x528] sm:$0xf]
    %v367 = vld [vmem:[%s0 + $0x52c] sm:$0xf]
    %v368 = vld [vmem:[%s0 + $0x530] sm:$0xf]
    %v369 = vld [vmem:[%s0 + $0x534] sm:$0xf]
    %v370 = vld [vmem:[%s0 + $0x538] sm:$0xf]
    %v371 = vld [vmem:[%s0 + $0x53c] sm:$0xf]
    %v372 = vld [vmem:[%s0 + $0x540] sm:$0xf]
    %v373 = vld [vmem:[%s0 + $0x544] sm:$0xf]
    %v374 = vld [vmem:[%s0 + $0x548] sm:$0xf]
    %v375 = vld [vmem:[%s0 + $0x54c] sm:$0xf]
    %v376 = vld [vmem:[%s0 + $0x550] sm:$0xf]
    %v377 = vld [vmem:[%s0 + $0x554] sm:$0xf]
    %v378 = vld [vmem:[%s0 + $0x558] sm:$0xf]
    %v379 = vld [vmem:[%s0 + $0x55c] sm:$0xf]
    %v380 = vld [vmem:[%s0 + $0x560] sm:$0xf]
    %v381 = vld [vmem:[%s0 + $0x564] sm:$0xf]
    %v382 = vld [vmem:[%s0 + $0x568] sm:$0xf]
    %v383 = vld [vmem:[%s0 + $0x56c] sm:$0xf]
    %v384 = vld [vmem:[%s0 + $0x570] sm:$0xf]
    %v385 = vld [vmem:[%s0 + $0x574] sm:$0xf]
    %v386 = vld [vmem:[%s0 + $0x578] sm:$0xf]
    %v387 = vld [vmem:[%s0 + $0x57c] sm:$0xf]
    %v388 = vld [vmem:[%s0 + $0x580] sm:$0xf]
    %v389 = vld [vmem:[%s0 + $0x584] sm:$0xf]
    %v390 = vld [vmem:[%s0 + $0x588] sm:$0xf]
    %v391 = vld [vmem:[%s0 + $0x58c] sm:$0xf]
    %v392 = vld [vmem:[%s0 + $0x590] sm:$0xf]
    %v393 = vld [vmem:[%s0 + $0x594] sm:$0xf]
    %v394 = vld [vmem:[%s0 + $0x598] sm:$0xf]
    %v395 = vld [vmem:[%s0 + $0x59c] sm:$0xf]
    %v396 = vld [vmem:[%s0 + $0x5a0] sm:$0xf]
    %v397 = vld [vmem:[%s0 + $0x5a4] sm:$0xf]
    %v398 = vld [vmem:[%s0 + $0x5a8] sm:$0xf]
    %v399 = vld [vmem:[%s0 + $0x5ac] sm:$0xf]
    %v400 = vld [vmem:[%s0 + $0x5b0] sm:$0xf]
    %v401 = vld [vmem:[%s0 + $0x5b4] sm:$0xf]
    %v402 = vld [vmem:[%s0 + $0x5b8] sm:$0xf]
    %v403 = vld [vmem:[%s0 + $0x5bc] sm:$0xf]
    %v404 = vld [vmem:[%s0 + $0x5c0] sm:$0xf]
    %v405 = vld [vmem:[%s0 + $0x5c4] sm:$0xf]
    %v406 = vld [vmem:[%s0 + $0x5c8] sm:$0xf]
    %v407 = vld [vmem:[%s0 + $0x5cc] sm:$0xf]
    %v408 = vld [vmem:[%s0 + $0x5d0] sm:$0xf]
    %v409 = vld [vmem:[%s0 + $0x5d4] sm:$0xf]
    %v410 = vld [vmem:[%s0 + $0x5d8] sm:$0xf]
    %v411 = vld [vmem:[%s0 + $0x5dc] sm:$0xf]
    %v412 = vld [vmem:[%s0 + $0x5e0] sm:$0xf]
    %v413 = vld [vmem:[%s0 + $0x5e4] sm:$0xf]
    %v414 = vld [vmem:[%s0 + $0x5e8] sm:$0xf]
    %v415 = vld [vmem:[%s0 + $0x5ec] sm:$0xf]
    %v416 = vld [vmem:[%s0 + $0x5f0] sm:$0xf]
    %v417 = vld [vmem:[%s0 + $0x5f4] sm:$0xf]
    %v418 = vld [vmem:[%s0 + $0x5f8] sm:$0xf]
    %v419 = vld [vmem:[%s0 + $0x5fc] sm:$0xf]
    %v420 = vld [vmem:[%s0 + $0x600] sm:$0xf]
    %v421 = vld [vmem:[%s0 + $0x604] sm:$0xf]
    %v422 = vld [vmem:[%s0 + $0x608] sm:$0xf]
    %v423 = vld [vmem:[%s0 + $0x60c] sm:$0xf]
    %v424 = vld [vmem:[%s0 + $0x610] sm:$0xf]
    %v425 = vld [vmem:[%s0 + $0x614] sm:$0xf]
    %v426 = vld [vmem:[%s0 + $0x618] sm:$0xf]
    %v427 = vld [vmem:[%s0 + $0x61c] sm:$0xf]
    %v428 = vld [vmem:[%s0 + $0x620] sm:$0xf]
    %v429 = vld [vmem:[%s0 + $0x624] sm:$0xf]
    %v430 = vld [vmem:[%s0 + $0x628] sm:$0xf]
    %v431 = vld [vmem:[%s0 + $0x62c] sm:$0xf]
    %v432 = vld [vmem:[%s0 + $0x630] sm:$0xf]
    %v433 = vld [vmem:[%s0 + $0x634] sm:$0xf]
    %v434 = vld [vmem:[%s0 + $0x638] sm:$0xf]
    %v435 = vld [vmem:[%s0 + $0x63c] sm:$0xf]
    %v436 = vld [vmem:[%s0 + $0x640] sm:$0xf]
    %v437 = vld [vmem:[%s0 + $0x644] sm:$0xf]
    %v438 = vld [vmem:[%s0 + $0x648] sm:$0xf]
    %v439 = vld [vmem:[%s0 + $0x64c] sm:$0xf]
    %v440 = vld [vmem:[%s0 + $0x650] sm:$0xf]
    %v441 = vld [vmem:[%s0 + $0x654] sm:$0xf]
    %v442 = vld [vmem:[%s0 + $0x658] sm:$0xf]
    %v443 = vld [vmem:[%s0 + $0x65c] sm:$0xf]
    %v444 = vld [vmem:[%s0 + $0x660] sm:$0xf]
    %v445 = vld [vmem:[%s0 + $0x664] sm:$0xf]
    %v446 = vld [vmem:[%s0 + $0x668] sm:$0xf]
    %v447 = vld [vmem:[%s0 + $0x66c] sm:$0xf]
    %v448 = vld [vmem:[%s0 + $0x670] sm:$0xf]
    %v449 = vld [vmem:[%s0 + $0x674] sm:$0xf]
    %v450 = vld [vmem:[%s0 + $0x678] sm:$0xf]
    %v451 = vld [vmem:[%s0 + $0x67c] sm:$0xf]
    %v452 = vld [vmem:[%s0 + $0x680] sm:$0xf]
    %v453 = vld [vmem:[%s0 + $0x684] sm:$0xf]
    %v454 = vld [vmem:[%s0 + $0x688] sm:$0xf]
    %v455 = vld [vmem:[%s0 + $0x68c] sm:$0xf]
    %v456 = vld [vmem:[%s0 + $0x690] sm:$0xf]
    %v457 = vld [vmem:[%s0 + $0x694] sm:$0xf]
    %v458 = vld [vmem:[%s0 + $0x698] sm:$0xf]
    %v459 = vld [vmem:[%s0 + $0x69c] sm:$0xf]
    %v460 = vld [vmem:[%s0 + $0x6a0] sm:$0xf]
    %v461 = vld [vmem:[%s0 + $0x6a4] sm:$0xf]
    %v462 = vld [vmem:[%s0 + $0x6a8] sm:$0xf]
    %v463 = vld [vmem:[%s0 + $0x6ac] sm:$0xf]
    %v464 = vld [vmem:[%s0 + $0x6b0] sm:$0xf]
    %v465 = vld [vmem:[%s0 + $0x6b4] sm:$0xf]
    %v466 = vld [vmem:[%s0 + $0x6b8] sm:$0xf]
    %v467 = vld [vmem:[%s0 + $0x6bc] sm:$0xf]
    %v468 = vld [vmem:[%s0 + $0x6c0] sm:$0xf]
    %v469 = vld [vmem:[%s0 + $0x6c4] sm:$0xf]
    %v470 = vld [vmem:[%s0 + $0x6c8] sm:$0xf]
    %v471 = vld [vmem:[%s0 + $0x6cc] sm:$0xf]
    %v472 = vld [vmem:[%s0 + $0x6d0] sm:$0xf]
    %v473 = vld [vmem:[%s0 + $0x6d4] sm:$0xf]
    %v474 = vld [vmem:[%s0 + $0x6d8] sm:$0xf]
    %v475 = vld [vmem:[%s0 + $0x6dc] sm:$0xf]
    %v476 = vld [vmem:[%s0 + $0x6e0] sm:$0xf]
    %v477 = vld [vmem:[%s0 + $0x6e4] sm:$0xf]
    %v478 = vld [vmem:[%s0 + $0x6e8] sm:$0xf]
    %v479 = vld [vmem:[%s0 + $0x6ec] sm:$0xf]
    %v480 = vld [vmem:[%s0 + $0x6f0] sm:$0xf]
    %v481 = vld [vmem:[%s0 + $0x6f4] sm:$0xf]
    %v482 = vld [vmem:[%s0 + $0x6f8] sm:$0xf]
    %v483 = vld [vmem:[%s0 + $0x6fc] sm:$0xf]
    %v484 = vld [vmem:[%s0 + $0x700] sm:$0xf]
    %v485 = vld [vmem:[%s0 + $0x704] sm:$0xf]
    %v486 = vld [vmem:[%s0 + $0x708] sm:$0xf]
    %v487 = vld [vmem:[%s0 + $0x70c] sm:$0xf]
    %v488 = vld [vmem:[%s0 + $0x710] sm:$0xf]
    %v489 = vld [vmem:[%s0 + $0x714] sm:$0xf]
    %v490 = vld [vmem:[%s0 + $0x718] sm:$0xf]
    %v491 = vld [vmem:[%s0 + $0x71c] sm:$0xf]
    %v492 = vld [vmem:[%s0 + $0x720] sm:$0xf]
    %v493 = vld [vmem:[%s0 + $0x724] sm:$0xf]
    %v494 = vld [vmem:[%s0 + $0x728] sm:$0xf]
    %v495 = vld [vmem:[%s0 + $0x72c] sm:$0xf]
    %v496 = vld [vmem:[%s0 + $0x730] sm:$0xf]
    %v497 = vld [vmem:[%s0 + $0x734] sm:$0xf]
    %v498 = vld [vmem:[%s0 + $0x738] sm:$0xf]
    %v499 = vld [vmem:[%s0 + $0x73c] sm:$0xf]
    %v500 = vld [vmem:[%s0 + $0x740] sm:$0xf]
    %v501 = vld [vmem:[%s0 + $0x744] sm:$0xf]
    %v502 = vld [vmem:[%s0 + $0x748] sm:$0xf]
    %v503 = vld [vmem:[%s0 + $0x74c] sm:$0xf]
    %v504 = vld [vmem:[%s0 + $0x750] sm:$0xf]
    %v505 = vld [vmem:[%s0 + $0x754] sm:$0xf]
    %v506 = vld [vmem:[%s0 + $0x758] sm:$0xf]
    %v507 = vld [vmem:[%s0 + $0x75c] sm:$0xf]
    %v508 = vld [vmem:[%s0 + $0x760] sm:$0xf]
    %v509 = vld [vmem:[%s0 + $0x764] sm:$0xf]
    %v510 = vld [vmem:[%s0 + $0x768] sm:$0xf]
    %v511 = vld [vmem:[%s0 + $0x76c] sm:$0xf]
    %v512 = vld [vmem:[%s0 + $0x770] sm:$0xf]
    %v513 = vld [vmem:[%s0 + $0x774] sm:$0xf]
    %v514 = vld [vmem:[%s0 + $0x778] sm:$0xf]
    %v515 = vld [vmem:[%s0 + $0x77c] sm:$0xf]
    %v516 = vld [vmem:[%s0 + $0x780] sm:$0xf]
    %v517 = vld [vmem:[%s0 + $0x784] sm:$0xf]
    %v518 = vld [vmem:[%s0 + $0x788] sm:$0xf]
    %v519 = vld [vmem:[%s0 + $0x78c] sm:$0xf]
    %v520 = vld [vmem:[%s0 + $0x790] sm:$0xf]
    %v521 = vld [vmem:[%s0 + $0x794] sm:$0xf]
    %v522 = vld [vmem:[%s0 + $0x798] sm:$0xf]
    %v523 = vld [vmem:[%s0 + $0x79c] sm:$0xf]
    %v524 = vld [vmem:[%s0 + $0x7a0] sm:$0xf]
    %v525 = vld [vmem:[%s0 + $0x7a4] sm:$0xf]
    %v526 = vld [vmem:[%s0 + $0x7a8] sm:$0xf]
    %v527 = vld [vmem:[%s0 + $0x7ac] sm:$0xf]
    %v528 = vld [vmem:[%s0 + $0x7b0] sm:$0xf]
    %v529 = vld [vmem:[%s0 + $0x7b4] sm:$0xf]
    %v530 = vld [vmem:[%s0 + $0x7b8] sm:$0xf]
    %v531 = vld [vmem:[%s0 + $0x7bc] sm:$0xf]
    %v532 = vld [vmem:[%s0 + $0x7c0] sm:$0xf]
    %v533 = vld [vmem:[%s0 + $0x7c4] sm:$0xf]
    %v534 = vld [vmem:[%s0 + $0x7c8] sm:$0xf]
    %v535 = vld [vmem:[%s0 + $0x7cc] sm:$0xf]
    %v536 = vld [vmem:[%s0 + $0x7d0] sm:$0xf]
    %v537 = vld [vmem:[%s0 + $0x7d4] sm:$0xf]
    %v538 = vld [vmem:[%s0 + $0x7d8] sm:$0xf]
    %v539 = vld [vmem:[%s0 + $0x7dc] sm:$0xf]
    %v540 = vld [vmem:[%s0 + $0x7e0] sm:$0xf]
    %v541 = vld [vmem:[%s0 + $0x7e4] sm:$0xf]
    %v542 = vld [vmem:[%s0 + $0x7e8] sm:$0xf]
    %v543 = vld [vmem:[%s0 + $0x7ec] sm:$0xf]
    %v544 = vld [vmem:[%s0 + $0x7f0] sm:$0xf]
    %v545 = vld [vmem:[%s0 + $0x7f4] sm:$0xf]
    %v546 = vld [vmem:[%s0 + $0x7f8] sm:$0xf]
    %v547 = vld [vmem:[%s0 + $0x7fc] sm:$0xf]
    %v548 = vld [vmem:[%s1] sm:$0xf]
    %v549 = vld [vmem:[%s1 + $0x4] sm:$0xf]
    %v550 = vld [vmem:[%s1 + $0x8] sm:$0xf]
    %v551 = vld [vmem:[%s1 + $0xc] sm:$0xf]
    %v552 = vld [vmem:[%s1 + $0x10] sm:$0x3]
    %v553 = vld [vmem:[%s2] sm:$0x1]
    %v554 = vld [vmem:[%s3] sm:$0xff]
    %v555 = vld [vmem:[%s3 + $0x8] sm:$0xff]
    %v556 = vld [vmem:[%s3 + $0x10] sm:$0xff]
    %v557 = vld [vmem:[%s3 + $0x18] sm:$0xff]
    %v558 = vld [vmem:[%s3 + $0x20] sm:$0xff]
    %v559 = vld [vmem:[%s3 + $0x28] sm:$0xff]
    %v560 = vld [vmem:[%s3 + $0x30] sm:$0xff]
    %v561 = vld [vmem:[%s3 + $0x38] sm:$0xff]
    %v562 = vld [vmem:[%s3 + $0x40] sm:$0xff]
    %v563 = vld [vmem:[%s3 + $0x48] sm:$0xff]
    %v564 = vld [vmem:[%s3 + $0x50] sm:$0xff]
    %v565 = vld [vmem:[%s3 + $0x58] sm:$0xff]
    %v566 = vld [vmem:[%s3 + $0x60] sm:$0xff]
    %v567 = vld [vmem:[%s3 + $0x68] sm:$0xff]
    %v568 = vld [vmem:[%s3 + $0x70] sm:$0xff]
    %v569 = vld [vmem:[%s3 + $0x78] sm:$0xff]
    %v570 = vld [vmem:[%s4] sm:$0x3]
    %v571 = vld [vmem:[%s5] sm:$0xf]
    %v572 = vld [vmem:[%s5 + $0x4] sm:$0xf]
    %v573 = vld [vmem:[%s5 + $0x8] sm:$0xf]
    %v574 = vld [vmem:[%s5 + $0xc] sm:$0xf]
    %v575 = vld [vmem:[%s5 + $0x10] sm:$0xf]
    %v576 = vld [vmem:[%s5 + $0x14] sm:$0xf]
    %v577 = vld [vmem:[%s5 + $0x18] sm:$0xf]
    %v578 = vld [vmem:[%s5 + $0x1c] sm:$0xf]
    %v579 = vld [vmem:[%s5 + $0x20] sm:$0xf]
    %v580 = vld [vmem:[%s5 + $0x24] sm:$0xf]
    %v581 = vld [vmem:[%s5 + $0x28] sm:$0xf]
    %v582 = vld [vmem:[%s5 + $0x2c] sm:$0xf]
    %v583 = vld [vmem:[%s5 + $0x30] sm:$0xf]
    %v584 = vld [vmem:[%s5 + $0x34] sm:$0xf]
    %v585 = vld [vmem:[%s5 + $0x38] sm:$0xf]
    %v586 = vld [vmem:[%s5 + $0x3c] sm:$0xf]
    %v587 = vld [vmem:[%s6] sm:$0x1]
    %v589 = vlaneseq
    %v590 = vshrl.u32 %v589, 7
    %v591 = vsub.s32 0, %v590
    %v592 = vrot.slane %v553, %v591
    %v1106 = vunpack.c.l.b16 %v36
    %v1107 = vunpack.c.l.b16 %v37
    %v1108 = vunpack.c.l.b16 %v38
    %v1109 = vunpack.c.l.b16 %v39
    %v1110 = vunpack.c.l.b16 %v40
    %v1111 = vunpack.c.l.b16 %v41
    %v1112 = vunpack.c.l.b16 %v42
    %v1113 = vunpack.c.l.b16 %v43
    %v1114 = vunpack.c.l.b16 %v44
    %v1115 = vunpack.c.l.b16 %v45
    %v1116 = vunpack.c.l.b16 %v46
    %v1117 = vunpack.c.l.b16 %v47
    %v1118 = vunpack.c.l.b16 %v48
    %v1119 = vunpack.c.l.b16 %v49
    %v1120 = vunpack.c.l.b16 %v50
    %v1121 = vunpack.c.l.b16 %v51
    %v1122 = vunpack.c.l.b16 %v52
    %v1123 = vunpack.c.l.b16 %v53
    %v1124 = vunpack.c.l.b16 %v54
    %v1125 = vunpack.c.l.b16 %v55
    %v1126 = vunpack.c.l.b16 %v56
    %v1127 = vunpack.c.l.b16 %v57
    %v1128 = vunpack.c.l.b16 %v58
    %v1129 = vunpack.c.l.b16 %v59
    %v1130 = vunpack.c.l.b16 %v60
    %v1131 = vunpack.c.l.b16 %v61
    %v1132 = vunpack.c.l.b16 %v62
    %v1133 = vunpack.c.l.b16 %v63
    %v1134 = vunpack.c.l.b16 %v64
    %v1135 = vunpack.c.l.b16 %v65
    %v1136 = vunpack.c.l.b16 %v66
    %v1137 = vunpack.c.l.b16 %v67
    %v1138 = vunpack.c.l.b16 %v68
    %v1139 = vunpack.c.l.b16 %v69
    %v1140 = vunpack.c.l.b16 %v70
    %v1141 = vunpack.c.l.b16 %v71
    %v1142 = vunpack.c.l.b16 %v72
    %v1143 = vunpack.c.l.b16 %v73
    %v1144 = vunpack.c.l.b16 %v74
    %v1145 = vunpack.c.l.b16 %v75
    %v1146 = vunpack.c.l.b16 %v76
    %v1147 = vunpack.c.l.b16 %v77
    %v1148 = vunpack.c.l.b16 %v78
    %v1149 = vunpack.c.l.b16 %v79
    %v1150 = vunpack.c.l.b16 %v80
    %v1151 = vunpack.c.l.b16 %v81
    %v1152 = vunpack.c.l.b16 %v82
    %v1153 = vunpack.c.l.b16 %v83
    %v1154 = vunpack.c.l.b16 %v84
    %v1155 = vunpack.c.l.b16 %v85
    %v1156 = vunpack.c.l.b16 %v86
    %v1157 = vunpack.c.l.b16 %v87
    %v1158 = vunpack.c.l.b16 %v88
    %v1159 = vunpack.c.l.b16 %v89
    %v1160 = vunpack.c.l.b16 %v90
    %v1161 = vunpack.c.l.b16 %v91
    %v1162 = vunpack.c.l.b16 %v92
    %v1163 = vunpack.c.l.b16 %v93
    %v1164 = vunpack.c.l.b16 %v94
    %v1165 = vunpack.c.l.b16 %v95
    %v1166 = vunpack.c.l.b16 %v96
    %v1167 = vunpack.c.l.b16 %v97
    %v1168 = vunpack.c.l.b16 %v98
    %v1169 = vunpack.c.l.b16 %v99
    %v1170 = vunpack.c.l.b16 %v100
    %v1171 = vunpack.c.l.b16 %v101
    %v1172 = vunpack.c.l.b16 %v102
    %v1173 = vunpack.c.l.b16 %v103
    %v1174 = vunpack.c.l.b16 %v104
    %v1175 = vunpack.c.l.b16 %v105
    %v1176 = vunpack.c.l.b16 %v106
    %v1177 = vunpack.c.l.b16 %v107
    %v1178 = vunpack.c.l.b16 %v108
    %v1179 = vunpack.c.l.b16 %v109
    %v1180 = vunpack.c.l.b16 %v110
    %v1181 = vunpack.c.l.b16 %v111
    %v1182 = vunpack.c.l.b16 %v112
    %v1183 = vunpack.c.l.b16 %v113
    %v1184 = vunpack.c.l.b16 %v114
    %v1185 = vunpack.c.l.b16 %v115
    %v1186 = vunpack.c.l.b16 %v116
    %v1187 = vunpack.c.l.b16 %v117
    %v1188 = vunpack.c.l.b16 %v118
    %v1189 = vunpack.c.l.b16 %v119
    %v1190 = vunpack.c.l.b16 %v120
    %v1191 = vunpack.c.l.b16 %v121
    %v1192 = vunpack.c.l.b16 %v122
    %v1193 = vunpack.c.l.b16 %v123
    %v1194 = vunpack.c.l.b16 %v124
    %v1195 = vunpack.c.l.b16 %v125
    %v1196 = vunpack.c.l.b16 %v126
    %v1197 = vunpack.c.l.b16 %v127
    %v1198 = vunpack.c.l.b16 %v128
    %v1199 = vunpack.c.l.b16 %v129
    %v1200 = vunpack.c.l.b16 %v130
    %v1201 = vunpack.c.l.b16 %v131
    %v1202 = vunpack.c.l.b16 %v132
    %v1203 = vunpack.c.l.b16 %v133
    %v1204 = vunpack.c.l.b16 %v134
    %v1205 = vunpack.c.l.b16 %v135
    %v1206 = vunpack.c.l.b16 %v136
    %v1207 = vunpack.c.l.b16 %v137
    %v1208 = vunpack.c.l.b16 %v138
    %v1209 = vunpack.c.l.b16 %v139
    %v1210 = vunpack.c.l.b16 %v140
    %v1211 = vunpack.c.l.b16 %v141
    %v1212 = vunpack.c.l.b16 %v142
    %v1213 = vunpack.c.l.b16 %v143
    %v1214 = vunpack.c.l.b16 %v144
    %v1215 = vunpack.c.l.b16 %v145
    %v1216 = vunpack.c.l.b16 %v146
    %v1217 = vunpack.c.l.b16 %v147
    %v1218 = vunpack.c.l.b16 %v148
    %v1219 = vunpack.c.l.b16 %v149
    %v1220 = vunpack.c.l.b16 %v150
    %v1221 = vunpack.c.l.b16 %v151
    %v1222 = vunpack.c.l.b16 %v152
    %v1223 = vunpack.c.l.b16 %v153
    %v1224 = vunpack.c.l.b16 %v154
    %v1225 = vunpack.c.l.b16 %v155
    %v1226 = vunpack.c.l.b16 %v156
    %v1227 = vunpack.c.l.b16 %v157
    %v1228 = vunpack.c.l.b16 %v158
    %v1229 = vunpack.c.l.b16 %v159
    %v1230 = vunpack.c.l.b16 %v160
    %v1231 = vunpack.c.l.b16 %v161
    %v1232 = vunpack.c.l.b16 %v162
    %v1233 = vunpack.c.l.b16 %v163
    %v1234 = vunpack.c.l.b16 %v164
    %v1235 = vunpack.c.l.b16 %v165
    %v1236 = vunpack.c.l.b16 %v166
    %v1237 = vunpack.c.l.b16 %v167
    %v1238 = vunpack.c.l.b16 %v168
    %v1239 = vunpack.c.l.b16 %v169
    %v1240 = vunpack.c.l.b16 %v170
    %v1241 = vunpack.c.l.b16 %v171
    %v1242 = vunpack.c.l.b16 %v172
    %v1243 = vunpack.c.l.b16 %v173
    %v1244 = vunpack.c.l.b16 %v174
    %v1245 = vunpack.c.l.b16 %v175
    %v1246 = vunpack.c.l.b16 %v176
    %v1247 = vunpack.c.l.b16 %v177
    %v1248 = vunpack.c.l.b16 %v178
    %v1249 = vunpack.c.l.b16 %v179
    %v1250 = vunpack.c.l.b16 %v180
    %v1251 = vunpack.c.l.b16 %v181
    %v1252 = vunpack.c.l.b16 %v182
    %v1253 = vunpack.c.l.b16 %v183
    %v1254 = vunpack.c.l.b16 %v184
    %v1255 = vunpack.c.l.b16 %v185
    %v1256 = vunpack.c.l.b16 %v186
    %v1257 = vunpack.c.l.b16 %v187
    %v1258 = vunpack.c.l.b16 %v188
    %v1259 = vunpack.c.l.b16 %v189
    %v1260 = vunpack.c.l.b16 %v190
    %v1261 = vunpack.c.l.b16 %v191
    %v1262 = vunpack.c.l.b16 %v192
    %v1263 = vunpack.c.l.b16 %v193
    %v1264 = vunpack.c.l.b16 %v194
    %v1265 = vunpack.c.l.b16 %v195
    %v1266 = vunpack.c.l.b16 %v196
    %v1267 = vunpack.c.l.b16 %v197
    %v1268 = vunpack.c.l.b16 %v198
    %v1269 = vunpack.c.l.b16 %v199
    %v1270 = vunpack.c.l.b16 %v200
    %v1271 = vunpack.c.l.b16 %v201
    %v1272 = vunpack.c.l.b16 %v202
    %v1273 = vunpack.c.l.b16 %v203
    %v1274 = vunpack.c.l.b16 %v204
    %v1275 = vunpack.c.l.b16 %v205
    %v1276 = vunpack.c.l.b16 %v206
    %v1277 = vunpack.c.l.b16 %v207
    %v1278 = vunpack.c.l.b16 %v208
    %v1279 = vunpack.c.l.b16 %v209
    %v1280 = vunpack.c.l.b16 %v210
    %v1281 = vunpack.c.l.b16 %v211
    %v1282 = vunpack.c.l.b16 %v212
    %v1283 = vunpack.c.l.b16 %v213
    %v1284 = vunpack.c.l.b16 %v214
    %v1285 = vunpack.c.l.b16 %v215
    %v1286 = vunpack.c.l.b16 %v216
    %v1287 = vunpack.c.l.b16 %v217
    %v1288 = vunpack.c.l.b16 %v218
    %v1289 = vunpack.c.l.b16 %v219
    %v1290 = vunpack.c.l.b16 %v220
    %v1291 = vunpack.c.l.b16 %v221
    %v1292 = vunpack.c.l.b16 %v222
    %v1293 = vunpack.c.l.b16 %v223
    %v1294 = vunpack.c.l.b16 %v224
    %v1295 = vunpack.c.l.b16 %v225
    %v1296 = vunpack.c.l.b16 %v226
    %v1297 = vunpack.c.l.b16 %v227
    %v1298 = vunpack.c.l.b16 %v228
    %v1299 = vunpack.c.l.b16 %v229
    %v1300 = vunpack.c.l.b16 %v230
    %v1301 = vunpack.c.l.b16 %v231
    %v1302 = vunpack.c.l.b16 %v232
    %v1303 = vunpack.c.l.b16 %v233
    %v1304 = vunpack.c.l.b16 %v234
    %v1305 = vunpack.c.l.b16 %v235
    %v1306 = vunpack.c.l.b16 %v236
    %v1307 = vunpack.c.l.b16 %v237
    %v1308 = vunpack.c.l.b16 %v238
    %v1309 = vunpack.c.l.b16 %v239
    %v1310 = vunpack.c.l.b16 %v240
    %v1311 = vunpack.c.l.b16 %v241
    %v1312 = vunpack.c.l.b16 %v242
    %v1313 = vunpack.c.l.b16 %v243
    %v1314 = vunpack.c.l.b16 %v244
    %v1315 = vunpack.c.l.b16 %v245
    %v1316 = vunpack.c.l.b16 %v246
    %v1317 = vunpack.c.l.b16 %v247
    %v1318 = vunpack.c.l.b16 %v248
    %v1319 = vunpack.c.l.b16 %v249
    %v1320 = vunpack.c.l.b16 %v250
    %v1321 = vunpack.c.l.b16 %v251
    %v1322 = vunpack.c.l.b16 %v252
    %v1323 = vunpack.c.l.b16 %v253
    %v1324 = vunpack.c.l.b16 %v254
    %v1325 = vunpack.c.l.b16 %v255
    %v1326 = vunpack.c.l.b16 %v256
    %v1327 = vunpack.c.l.b16 %v257
    %v1328 = vunpack.c.l.b16 %v258
    %v1329 = vunpack.c.l.b16 %v259
    %v1330 = vunpack.c.l.b16 %v260
    %v1331 = vunpack.c.l.b16 %v261
    %v1332 = vunpack.c.l.b16 %v262
    %v1333 = vunpack.c.l.b16 %v263
    %v1334 = vunpack.c.l.b16 %v264
    %v1335 = vunpack.c.l.b16 %v265
    %v1336 = vunpack.c.l.b16 %v266
    %v1337 = vunpack.c.l.b16 %v267
    %v1338 = vunpack.c.l.b16 %v268
    %v1339 = vunpack.c.l.b16 %v269
    %v1340 = vunpack.c.l.b16 %v270
    %v1341 = vunpack.c.l.b16 %v271
    %v1342 = vunpack.c.l.b16 %v272
    %v1343 = vunpack.c.l.b16 %v273
    %v1344 = vunpack.c.l.b16 %v274
    %v1345 = vunpack.c.l.b16 %v275
    %v1346 = vunpack.c.l.b16 %v276
    %v1347 = vunpack.c.l.b16 %v277
    %v1348 = vunpack.c.l.b16 %v278
    %v1349 = vunpack.c.l.b16 %v279
    %v1350 = vunpack.c.l.b16 %v280
    %v1351 = vunpack.c.l.b16 %v281
    %v1352 = vunpack.c.l.b16 %v282
    %v1353 = vunpack.c.l.b16 %v283
    %v1354 = vunpack.c.l.b16 %v284
    %v1355 = vunpack.c.l.b16 %v285
    %v1356 = vunpack.c.l.b16 %v286
    %v1357 = vunpack.c.l.b16 %v287
    %v1358 = vunpack.c.l.b16 %v288
    %v1359 = vunpack.c.l.b16 %v289
    %v1360 = vunpack.c.l.b16 %v290
    %v1361 = vunpack.c.l.b16 %v291
    %v1362 = vunpack.c.l.b16 %v292
    %v1363 = vunpack.c.l.b16 %v293
    %v1364 = vunpack.c.l.b16 %v294
    %v1365 = vunpack.c.l.b16 %v295
    %v1366 = vunpack.c.l.b16 %v296
    %v1367 = vunpack.c.l.b16 %v297
    %v1368 = vunpack.c.l.b16 %v298
    %v1369 = vunpack.c.l.b16 %v299
    %v1370 = vunpack.c.l.b16 %v300
    %v1371 = vunpack.c.l.b16 %v301
    %v1372 = vunpack.c.l.b16 %v302
    %v1373 = vunpack.c.l.b16 %v303
    %v1374 = vunpack.c.l.b16 %v304
    %v1375 = vunpack.c.l.b16 %v305
    %v1376 = vunpack.c.l.b16 %v306
    %v1377 = vunpack.c.l.b16 %v307
    %v1378 = vunpack.c.l.b16 %v308
    %v1379 = vunpack.c.l.b16 %v309
    %v1380 = vunpack.c.l.b16 %v310
    %v1381 = vunpack.c.l.b16 %v311
    %v1382 = vunpack.c.l.b16 %v312
    %v1383 = vunpack.c.l.b16 %v313
    %v1384 = vunpack.c.l.b16 %v314
    %v1385 = vunpack.c.l.b16 %v315
    %v1386 = vunpack.c.l.b16 %v316
    %v1387 = vunpack.c.l.b16 %v317
    %v1388 = vunpack.c.l.b16 %v318
    %v1389 = vunpack.c.l.b16 %v319
    %v1390 = vunpack.c.l.b16 %v320
    %v1391 = vunpack.c.l.b16 %v321
    %v1392 = vunpack.c.l.b16 %v322
    %v1393 = vunpack.c.l.b16 %v323
    %v1394 = vunpack.c.l.b16 %v324
    %v1395 = vunpack.c.l.b16 %v325
    %v1396 = vunpack.c.l.b16 %v326
    %v1397 = vunpack.c.l.b16 %v327
    %v1398 = vunpack.c.l.b16 %v328
    %v1399 = vunpack.c.l.b16 %v329
    %v1400 = vunpack.c.l.b16 %v330
    %v1401 = vunpack.c.l.b16 %v331
    %v1402 = vunpack.c.l.b16 %v332
    %v1403 = vunpack.c.l.b16 %v333
    %v1404 = vunpack.c.l.b16 %v334
    %v1405 = vunpack.c.l.b16 %v335
    %v1406 = vunpack.c.l.b16 %v336
    %v1407 = vunpack.c.l.b16 %v337
    %v1408 = vunpack.c.l.b16 %v338
    %v1409 = vunpack.c.l.b16 %v339
    %v1410 = vunpack.c.l.b16 %v340
    %v1411 = vunpack.c.l.b16 %v341
    %v1412 = vunpack.c.l.b16 %v342
    %v1413 = vunpack.c.l.b16 %v343
    %v1414 = vunpack.c.l.b16 %v344
    %v1415 = vunpack.c.l.b16 %v345
    %v1416 = vunpack.c.l.b16 %v346
    %v1417 = vunpack.c.l.b16 %v347
    %v1418 = vunpack.c.l.b16 %v348
    %v1419 = vunpack.c.l.b16 %v349
    %v1420 = vunpack.c.l.b16 %v350
    %v1421 = vunpack.c.l.b16 %v351
    %v1422 = vunpack.c.l.b16 %v352
    %v1423 = vunpack.c.l.b16 %v353
    %v1424 = vunpack.c.l.b16 %v354
    %v1425 = vunpack.c.l.b16 %v355
    %v1426 = vunpack.c.l.b16 %v356
    %v1427 = vunpack.c.l.b16 %v357
    %v1428 = vunpack.c.l.b16 %v358
    %v1429 = vunpack.c.l.b16 %v359
    %v1430 = vunpack.c.l.b16 %v360
    %v1431 = vunpack.c.l.b16 %v361
    %v1432 = vunpack.c.l.b16 %v362
    %v1433 = vunpack.c.l.b16 %v363
    %v1434 = vunpack.c.l.b16 %v364
    %v1435 = vunpack.c.l.b16 %v365
    %v1436 = vunpack.c.l.b16 %v366
    %v1437 = vunpack.c.l.b16 %v367
    %v1438 = vunpack.c.l.b16 %v368
    %v1439 = vunpack.c.l.b16 %v369
    %v1440 = vunpack.c.l.b16 %v370
    %v1441 = vunpack.c.l.b16 %v371
    %v1442 = vunpack.c.l.b16 %v372
    %v1443 = vunpack.c.l.b16 %v373
    %v1444 = vunpack.c.l.b16 %v374
    %v1445 = vunpack.c.l.b16 %v375
    %v1446 = vunpack.c.l.b16 %v376
    %v1447 = vunpack.c.l.b16 %v377
    %v1448 = vunpack.c.l.b16 %v378
    %v1449 = vunpack.c.l.b16 %v379
    %v1450 = vunpack.c.l.b16 %v380
    %v1451 = vunpack.c.l.b16 %v381
    %v1452 = vunpack.c.l.b16 %v382
    %v1453 = vunpack.c.l.b16 %v383
    %v1454 = vunpack.c.l.b16 %v384
    %v1455 = vunpack.c.l.b16 %v385
    %v1456 = vunpack.c.l.b16 %v386
    %v1457 = vunpack.c.l.b16 %v387
    %v1458 = vunpack.c.l.b16 %v388
    %v1459 = vunpack.c.l.b16 %v389
    %v1460 = vunpack.c.l.b16 %v390
    %v1461 = vunpack.c.l.b16 %v391
    %v1462 = vunpack.c.l.b16 %v392
    %v1463 = vunpack.c.l.b16 %v393
    %v1464 = vunpack.c.l.b16 %v394
    %v1465 = vunpack.c.l.b16 %v395
    %v1466 = vunpack.c.l.b16 %v396
    %v1467 = vunpack.c.l.b16 %v397
    %v1468 = vunpack.c.l.b16 %v398
    %v1469 = vunpack.c.l.b16 %v399
    %v1470 = vunpack.c.l.b16 %v400
    %v1471 = vunpack.c.l.b16 %v401
    %v1472 = vunpack.c.l.b16 %v402
    %v1473 = vunpack.c.l.b16 %v403
    %v1474 = vunpack.c.l.b16 %v404
    %v1475 = vunpack.c.l.b16 %v405
    %v1476 = vunpack.c.l.b16 %v406
    %v1477 = vunpack.c.l.b16 %v407
    %v1478 = vunpack.c.l.b16 %v408
    %v1479 = vunpack.c.l.b16 %v409
    %v1480 = vunpack.c.l.b16 %v410
    %v1481 = vunpack.c.l.b16 %v411
    %v1482 = vunpack.c.l.b16 %v412
    %v1483 = vunpack.c.l.b16 %v413
    %v1484 = vunpack.c.l.b16 %v414
    %v1485 = vunpack.c.l.b16 %v415
    %v1486 = vunpack.c.l.b16 %v416
    %v1487 = vunpack.c.l.b16 %v417
    %v1488 = vunpack.c.l.b16 %v418
    %v1489 = vunpack.c.l.b16 %v419
    %v1490 = vunpack.c.l.b16 %v420
    %v1491 = vunpack.c.l.b16 %v421
    %v1492 = vunpack.c.l.b16 %v422
    %v1493 = vunpack.c.l.b16 %v423
    %v1494 = vunpack.c.l.b16 %v424
    %v1495 = vunpack.c.l.b16 %v425
    %v1496 = vunpack.c.l.b16 %v426
    %v1497 = vunpack.c.l.b16 %v427
    %v1498 = vunpack.c.l.b16 %v428
    %v1499 = vunpack.c.l.b16 %v429
    %v1500 = vunpack.c.l.b16 %v430
    %v1501 = vunpack.c.l.b16 %v431
    %v1502 = vunpack.c.l.b16 %v432
    %v1503 = vunpack.c.l.b16 %v433
    %v1504 = vunpack.c.l.b16 %v434
    %v1505 = vunpack.c.l.b16 %v435
    %v1506 = vunpack.c.l.b16 %v436
    %v1507 = vunpack.c.l.b16 %v437
    %v1508 = vunpack.c.l.b16 %v438
    %v1509 = vunpack.c.l.b16 %v439
    %v1510 = vunpack.c.l.b16 %v440
    %v1511 = vunpack.c.l.b16 %v441
    %v1512 = vunpack.c.l.b16 %v442
    %v1513 = vunpack.c.l.b16 %v443
    %v1514 = vunpack.c.l.b16 %v444
    %v1515 = vunpack.c.l.b16 %v445
    %v1516 = vunpack.c.l.b16 %v446
    %v1517 = vunpack.c.l.b16 %v447
    %v1518 = vunpack.c.l.b16 %v448
    %v1519 = vunpack.c.l.b16 %v449
    %v1520 = vunpack.c.l.b16 %v450
    %v1521 = vunpack.c.l.b16 %v451
    %v1522 = vunpack.c.l.b16 %v452
    %v1523 = vunpack.c.l.b16 %v453
    %v1524 = vunpack.c.l.b16 %v454
    %v1525 = vunpack.c.l.b16 %v455
    %v1526 = vunpack.c.l.b16 %v456
    %v1527 = vunpack.c.l.b16 %v457
    %v1528 = vunpack.c.l.b16 %v458
    %v1529 = vunpack.c.l.b16 %v459
    %v1530 = vunpack.c.l.b16 %v460
    %v1531 = vunpack.c.l.b16 %v461
    %v1532 = vunpack.c.l.b16 %v462
    %v1533 = vunpack.c.l.b16 %v463
    %v1534 = vunpack.c.l.b16 %v464
    %v1535 = vunpack.c.l.b16 %v465
    %v1536 = vunpack.c.l.b16 %v466
    %v1537 = vunpack.c.l.b16 %v467
    %v1538 = vunpack.c.l.b16 %v468
    %v1539 = vunpack.c.l.b16 %v469
    %v1540 = vunpack.c.l.b16 %v470
    %v1541 = vunpack.c.l.b16 %v471
    %v1542 = vunpack.c.l.b16 %v472
    %v1543 = vunpack.c.l.b16 %v473
    %v1544 = vunpack.c.l.b16 %v474
    %v1545 = vunpack.c.l.b16 %v475
    %v1546 = vunpack.c.l.b16 %v476
    %v1547 = vunpack.c.l.b16 %v477
    %v1548 = vunpack.c.l.b16 %v478
    %v1549 = vunpack.c.l.b16 %v479
    %v1550 = vunpack.c.l.b16 %v480
    %v1551 = vunpack.c.l.b16 %v481
    %v1552 = vunpack.c.l.b16 %v482
    %v1553 = vunpack.c.l.b16 %v483
    %v1554 = vunpack.c.l.b16 %v484
    %v1555 = vunpack.c.l.b16 %v485
    %v1556 = vunpack.c.l.b16 %v486
    %v1557 = vunpack.c.l.b16 %v487
    %v1558 = vunpack.c.l.b16 %v488
    %v1559 = vunpack.c.l.b16 %v489
    %v1560 = vunpack.c.l.b16 %v490
    %v1561 = vunpack.c.l.b16 %v491
    %v1562 = vunpack.c.l.b16 %v492
    %v1563 = vunpack.c.l.b16 %v493
    %v1564 = vunpack.c.l.b16 %v494
    %v1565 = vunpack.c.l.b16 %v495
    %v1566 = vunpack.c.l.b16 %v496
    %v1567 = vunpack.c.l.b16 %v497
    %v1568 = vunpack.c.l.b16 %v498
    %v1569 = vunpack.c.l.b16 %v499
    %v1570 = vunpack.c.l.b16 %v500
    %v1571 = vunpack.c.l.b16 %v501
    %v1572 = vunpack.c.l.b16 %v502
    %v1573 = vunpack.c.l.b16 %v503
    %v1574 = vunpack.c.l.b16 %v504
    %v1575 = vunpack.c.l.b16 %v505
    %v1576 = vunpack.c.l.b16 %v506
    %v1577 = vunpack.c.l.b16 %v507
    %v1578 = vunpack.c.l.b16 %v508
    %v1579 = vunpack.c.l.b16 %v509
    %v1580 = vunpack.c.l.b16 %v510
    %v1581 = vunpack.c.l.b16 %v511
    %v1582 = vunpack.c.l.b16 %v512
    %v1583 = vunpack.c.l.b16 %v513
    %v1584 = vunpack.c.l.b16 %v514
    %v1585 = vunpack.c.l.b16 %v515
    %v1586 = vunpack.c.l.b16 %v516
    %v1587 = vunpack.c.l.b16 %v517
    %v1588 = vunpack.c.l.b16 %v518
    %v1589 = vunpack.c.l.b16 %v519
    %v1590 = vunpack.c.l.b16 %v520
    %v1591 = vunpack.c.l.b16 %v521
    %v1592 = vunpack.c.l.b16 %v522
    %v1593 = vunpack.c.l.b16 %v523
    %v1594 = vunpack.c.l.b16 %v524
    %v1595 = vunpack.c.l.b16 %v525
    %v1596 = vunpack.c.l.b16 %v526
    %v1597 = vunpack.c.l.b16 %v527
    %v1598 = vunpack.c.l.b16 %v528
    %v1599 = vunpack.c.l.b16 %v529
    %v1600 = vunpack.c.l.b16 %v530
    %v1601 = vunpack.c.l.b16 %v531
    %v1602 = vunpack.c.l.b16 %v532
    %v1603 = vunpack.c.l.b16 %v533
    %v1604 = vunpack.c.l.b16 %v534
    %v1605 = vunpack.c.l.b16 %v535
    %v1606 = vunpack.c.l.b16 %v536
    %v1607 = vunpack.c.l.b16 %v537
    %v1608 = vunpack.c.l.b16 %v538
    %v1609 = vunpack.c.l.b16 %v539
    %v1610 = vunpack.c.l.b16 %v540
    %v1611 = vunpack.c.l.b16 %v541
    %v1612 = vunpack.c.l.b16 %v542
    %v1613 = vunpack.c.l.b16 %v543
    %v1614 = vunpack.c.l.b16 %v544
    %v1615 = vunpack.c.l.b16 %v545
    %v1616 = vunpack.c.l.b16 %v546
    %v1617 = vunpack.c.l.b16 %v547
    %v1618 = vpack.c.b16 %v1107, %v1106
    %v1619 = vpack.c.b16 %v1109, %v1108
    %v1620 = vpack.c.b16 %v1111, %v1110
    %v1621 = vpack.c.b16 %v1113, %v1112
    %v1622 = vpack.c.b16 %v1115, %v1114
    %v1623 = vpack.c.b16 %v1117, %v1116
    %v1624 = vpack.c.b16 %v1119, %v1118
    %v1625 = vpack.c.b16 %v1121, %v1120
    %v1626 = vpack.c.b16 %v1123, %v1122
    %v1627 = vpack.c.b16 %v1125, %v1124
    %v1628 = vpack.c.b16 %v1127, %v1126
    %v1629 = vpack.c.b16 %v1129, %v1128
    %v1630 = vpack.c.b16 %v1131, %v1130
    %v1631 = vpack.c.b16 %v1133, %v1132
    %v1632 = vpack.c.b16 %v1135, %v1134
    %v1633 = vpack.c.b16 %v1137, %v1136
    %v1634 = vpack.c.b16 %v1139, %v1138
    %v1635 = vpack.c.b16 %v1141, %v1140
    %v1636 = vpack.c.b16 %v1143, %v1142
    %v1637 = vpack.c.b16 %v1145, %v1144
    %v1638 = vpack.c.b16 %v1147, %v1146
    %v1639 = vpack.c.b16 %v1149, %v1148
    %v1640 = vpack.c.b16 %v1151, %v1150
    %v1641 = vpack.c.b16 %v1153, %v1152
    %v1642 = vpack.c.b16 %v1155, %v1154
    %v1643 = vpack.c.b16 %v1157, %v1156
    %v1644 = vpack.c.b16 %v1159, %v1158
    %v1645 = vpack.c.b16 %v1161, %v1160
    %v1646 = vpack.c.b16 %v1163, %v1162
    %v1647 = vpack.c.b16 %v1165, %v1164
    %v1648 = vpack.c.b16 %v1167, %v1166
    %v1649 = vpack.c.b16 %v1169, %v1168
    %v1650 = vpack.c.b16 %v1171, %v1170
    %v1651 = vpack.c.b16 %v1173, %v1172
    %v1652 = vpack.c.b16 %v1175, %v1174
    %v1653 = vpack.c.b16 %v1177, %v1176
    %v1654 = vpack.c.b16 %v1179, %v1178
    %v1655 = vpack.c.b16 %v1181, %v1180
    %v1656 = vpack.c.b16 %v1183, %v1182
    %v1657 = vpack.c.b16 %v1185, %v1184
    %v1658 = vpack.c.b16 %v1187, %v1186
    %v1659 = vpack.c.b16 %v1189, %v1188
    %v1660 = vpack.c.b16 %v1191, %v1190
    %v1661 = vpack.c.b16 %v1193, %v1192
    %v1662 = vpack.c.b16 %v1195, %v1194
    %v1663 = vpack.c.b16 %v1197, %v1196
    %v1664 = vpack.c.b16 %v1199, %v1198
    %v1665 = vpack.c.b16 %v1201, %v1200
    %v1666 = vpack.c.b16 %v1203, %v1202
    %v1667 = vpack.c.b16 %v1205, %v1204
    %v1668 = vpack.c.b16 %v1207, %v1206
    %v1669 = vpack.c.b16 %v1209, %v1208
    %v1670 = vpack.c.b16 %v1211, %v1210
    %v1671 = vpack.c.b16 %v1213, %v1212
    %v1672 = vpack.c.b16 %v1215, %v1214
    %v1673 = vpack.c.b16 %v1217, %v1216
    %v1674 = vpack.c.b16 %v1219, %v1218
    %v1675 = vpack.c.b16 %v1221, %v1220
    %v1676 = vpack.c.b16 %v1223, %v1222
    %v1677 = vpack.c.b16 %v1225, %v1224
    %v1678 = vpack.c.b16 %v1227, %v1226
    %v1679 = vpack.c.b16 %v1229, %v1228
    %v1680 = vpack.c.b16 %v1231, %v1230
    %v1681 = vpack.c.b16 %v1233, %v1232
    %v1682 = vpack.c.b16 %v1235, %v1234
    %v1683 = vpack.c.b16 %v1237, %v1236
    %v1684 = vpack.c.b16 %v1239, %v1238
    %v1685 = vpack.c.b16 %v1241, %v1240
    %v1686 = vpack.c.b16 %v1243, %v1242
    %v1687 = vpack.c.b16 %v1245, %v1244
    %v1688 = vpack.c.b16 %v1247, %v1246
    %v1689 = vpack.c.b16 %v1249, %v1248
    %v1690 = vpack.c.b16 %v1251, %v1250
    %v1691 = vpack.c.b16 %v1253, %v1252
    %v1692 = vpack.c.b16 %v1255, %v1254
    %v1693 = vpack.c.b16 %v1257, %v1256
    %v1694 = vpack.c.b16 %v1259, %v1258
    %v1695 = vpack.c.b16 %v1261, %v1260
    %v1696 = vpack.c.b16 %v1263, %v1262
    %v1697 = vpack.c.b16 %v1265, %v1264
    %v1698 = vpack.c.b16 %v1267, %v1266
    %v1699 = vpack.c.b16 %v1269, %v1268
    %v1700 = vpack.c.b16 %v1271, %v1270
    %v1701 = vpack.c.b16 %v1273, %v1272
    %v1702 = vpack.c.b16 %v1275, %v1274
    %v1703 = vpack.c.b16 %v1277, %v1276
    %v1704 = vpack.c.b16 %v1279, %v1278
    %v1705 = vpack.c.b16 %v1281, %v1280
    %v1706 = vpack.c.b16 %v1283, %v1282
    %v1707 = vpack.c.b16 %v1285, %v1284
    %v1708 = vpack.c.b16 %v1287, %v1286
    %v1709 = vpack.c.b16 %v1289, %v1288
    %v1710 = vpack.c.b16 %v1291, %v1290
    %v1711 = vpack.c.b16 %v1293, %v1292
    %v1712 = vpack.c.b16 %v1295, %v1294
    %v1713 = vpack.c.b16 %v1297, %v1296
    %v1714 = vpack.c.b16 %v1299, %v1298
    %v1715 = vpack.c.b16 %v1301, %v1300
    %v1716 = vpack.c.b16 %v1303, %v1302
    %v1717 = vpack.c.b16 %v1305, %v1304
    %v1718 = vpack.c.b16 %v1307, %v1306
    %v1719 = vpack.c.b16 %v1309, %v1308
    %v1720 = vpack.c.b16 %v1311, %v1310
    %v1721 = vpack.c.b16 %v1313, %v1312
    %v1722 = vpack.c.b16 %v1315, %v1314
    %v1723 = vpack.c.b16 %v1317, %v1316
    %v1724 = vpack.c.b16 %v1319, %v1318
    %v1725 = vpack.c.b16 %v1321, %v1320
    %v1726 = vpack.c.b16 %v1323, %v1322
    %v1727 = vpack.c.b16 %v1325, %v1324
    %v1728 = vpack.c.b16 %v1327, %v1326
    %v1729 = vpack.c.b16 %v1329, %v1328
    %v1730 = vpack.c.b16 %v1331, %v1330
    %v1731 = vpack.c.b16 %v1333, %v1332
    %v1732 = vpack.c.b16 %v1335, %v1334
    %v1733 = vpack.c.b16 %v1337, %v1336
    %v1734 = vpack.c.b16 %v1339, %v1338
    %v1735 = vpack.c.b16 %v1341, %v1340
    %v1736 = vpack.c.b16 %v1343, %v1342
    %v1737 = vpack.c.b16 %v1345, %v1344
    %v1738 = vpack.c.b16 %v1347, %v1346
    %v1739 = vpack.c.b16 %v1349, %v1348
    %v1740 = vpack.c.b16 %v1351, %v1350
    %v1741 = vpack.c.b16 %v1353, %v1352
    %v1742 = vpack.c.b16 %v1355, %v1354
    %v1743 = vpack.c.b16 %v1357, %v1356
    %v1744 = vpack.c.b16 %v1359, %v1358
    %v1745 = vpack.c.b16 %v1361, %v1360
    %v1746 = vpack.c.b16 %v1363, %v1362
    %v1747 = vpack.c.b16 %v1365, %v1364
    %v1748 = vpack.c.b16 %v1367, %v1366
    %v1749 = vpack.c.b16 %v1369, %v1368
    %v1750 = vpack.c.b16 %v1371, %v1370
    %v1751 = vpack.c.b16 %v1373, %v1372
    %v1752 = vpack.c.b16 %v1375, %v1374
    %v1753 = vpack.c.b16 %v1377, %v1376
    %v1754 = vpack.c.b16 %v1379, %v1378
    %v1755 = vpack.c.b16 %v1381, %v1380
    %v1756 = vpack.c.b16 %v1383, %v1382
    %v1757 = vpack.c.b16 %v1385, %v1384
    %v1758 = vpack.c.b16 %v1387, %v1386
    %v1759 = vpack.c.b16 %v1389, %v1388
    %v1760 = vpack.c.b16 %v1391, %v1390
    %v1761 = vpack.c.b16 %v1393, %v1392
    %v1762 = vpack.c.b16 %v1395, %v1394
    %v1763 = vpack.c.b16 %v1397, %v1396
    %v1764 = vpack.c.b16 %v1399, %v1398
    %v1765 = vpack.c.b16 %v1401, %v1400
    %v1766 = vpack.c.b16 %v1403, %v1402
    %v1767 = vpack.c.b16 %v1405, %v1404
    %v1768 = vpack.c.b16 %v1407, %v1406
    %v1769 = vpack.c.b16 %v1409, %v1408
    %v1770 = vpack.c.b16 %v1411, %v1410
    %v1771 = vpack.c.b16 %v1413, %v1412
    %v1772 = vpack.c.b16 %v1415, %v1414
    %v1773 = vpack.c.b16 %v1417, %v1416
    %v1774 = vpack.c.b16 %v1419, %v1418
    %v1775 = vpack.c.b16 %v1421, %v1420
    %v1776 = vpack.c.b16 %v1423, %v1422
    %v1777 = vpack.c.b16 %v1425, %v1424
    %v1778 = vpack.c.b16 %v1427, %v1426
    %v1779 = vpack.c.b16 %v1429, %v1428
    %v1780 = vpack.c.b16 %v1431, %v1430
    %v1781 = vpack.c.b16 %v1433, %v1432
    %v1782 = vpack.c.b16 %v1435, %v1434
    %v1783 = vpack.c.b16 %v1437, %v1436
    %v1784 = vpack.c.b16 %v1439, %v1438
    %v1785 = vpack.c.b16 %v1441, %v1440
    %v1786 = vpack.c.b16 %v1443, %v1442
    %v1787 = vpack.c.b16 %v1445, %v1444
    %v1788 = vpack.c.b16 %v1447, %v1446
    %v1789 = vpack.c.b16 %v1449, %v1448
    %v1790 = vpack.c.b16 %v1451, %v1450
    %v1791 = vpack.c.b16 %v1453, %v1452
    %v1792 = vpack.c.b16 %v1455, %v1454
    %v1793 = vpack.c.b16 %v1457, %v1456
    %v1794 = vpack.c.b16 %v1459, %v1458
    %v1795 = vpack.c.b16 %v1461, %v1460
    %v1796 = vpack.c.b16 %v1463, %v1462
    %v1797 = vpack.c.b16 %v1465, %v1464
    %v1798 = vpack.c.b16 %v1467, %v1466
    %v1799 = vpack.c.b16 %v1469, %v1468
    %v1800 = vpack.c.b16 %v1471, %v1470
    %v1801 = vpack.c.b16 %v1473, %v1472
    %v1802 = vpack.c.b16 %v1475, %v1474
    %v1803 = vpack.c.b16 %v1477, %v1476
    %v1804 = vpack.c.b16 %v1479, %v1478
    %v1805 = vpack.c.b16 %v1481, %v1480
    %v1806 = vpack.c.b16 %v1483, %v1482
    %v1807 = vpack.c.b16 %v1485, %v1484
    %v1808 = vpack.c.b16 %v1487, %v1486
    %v1809 = vpack.c.b16 %v1489, %v1488
    %v1810 = vpack.c.b16 %v1491, %v1490
    %v1811 = vpack.c.b16 %v1493, %v1492
    %v1812 = vpack.c.b16 %v1495, %v1494
    %v1813 = vpack.c.b16 %v1497, %v1496
    %v1814 = vpack.c.b16 %v1499, %v1498
    %v1815 = vpack.c.b16 %v1501, %v1500
    %v1816 = vpack.c.b16 %v1503, %v1502
    %v1817 = vpack.c.b16 %v1505, %v1504
    %v1818 = vpack.c.b16 %v1507, %v1506
    %v1819 = vpack.c.b16 %v1509, %v1508
    %v1820 = vpack.c.b16 %v1511, %v1510
    %v1821 = vpack.c.b16 %v1513, %v1512
    %v1822 = vpack.c.b16 %v1515, %v1514
    %v1823 = vpack.c.b16 %v1517, %v1516
    %v1824 = vpack.c.b16 %v1519, %v1518
    %v1825 = vpack.c.b16 %v1521, %v1520
    %v1826 = vpack.c.b16 %v1523, %v1522
    %v1827 = vpack.c.b16 %v1525, %v1524
    %v1828 = vpack.c.b16 %v1527, %v1526
    %v1829 = vpack.c.b16 %v1529, %v1528
    %v1830 = vpack.c.b16 %v1531, %v1530
    %v1831 = vpack.c.b16 %v1533, %v1532
    %v1832 = vpack.c.b16 %v1535, %v1534
    %v1833 = vpack.c.b16 %v1537, %v1536
    %v1834 = vpack.c.b16 %v1539, %v1538
    %v1835 = vpack.c.b16 %v1541, %v1540
    %v1836 = vpack.c.b16 %v1543, %v1542
    %v1837 = vpack.c.b16 %v1545, %v1544
    %v1838 = vpack.c.b16 %v1547, %v1546
    %v1839 = vpack.c.b16 %v1549, %v1548
    %v1840 = vpack.c.b16 %v1551, %v1550
    %v1841 = vpack.c.b16 %v1553, %v1552
    %v1842 = vpack.c.b16 %v1555, %v1554
    %v1843 = vpack.c.b16 %v1557, %v1556
    %v1844 = vpack.c.b16 %v1559, %v1558
    %v1845 = vpack.c.b16 %v1561, %v1560
    %v1846 = vpack.c.b16 %v1563, %v1562
    %v1847 = vpack.c.b16 %v1565, %v1564
    %v1848 = vpack.c.b16 %v1567, %v1566
    %v1849 = vpack.c.b16 %v1569, %v1568
    %v1850 = vpack.c.b16 %v1571, %v1570
    %v1851 = vpack.c.b16 %v1573, %v1572
    %v1852 = vpack.c.b16 %v1575, %v1574
    %v1853 = vpack.c.b16 %v1577, %v1576
    %v1854 = vpack.c.b16 %v1579, %v1578
    %v1855 = vpack.c.b16 %v1581, %v1580
    %v1856 = vpack.c.b16 %v1583, %v1582
    %v1857 = vpack.c.b16 %v1585, %v1584
    %v1858 = vpack.c.b16 %v1587, %v1586
    %v1859 = vpack.c.b16 %v1589, %v1588
    %v1860 = vpack.c.b16 %v1591, %v1590
    %v1861 = vpack.c.b16 %v1593, %v1592
    %v1862 = vpack.c.b16 %v1595, %v1594
    %v1863 = vpack.c.b16 %v1597, %v1596
    %v1864 = vpack.c.b16 %v1599, %v1598
    %v1865 = vpack.c.b16 %v1601, %v1600
    %v1866 = vpack.c.b16 %v1603, %v1602
    %v1867 = vpack.c.b16 %v1605, %v1604
    %v1868 = vpack.c.b16 %v1607, %v1606
    %v1869 = vpack.c.b16 %v1609, %v1608
    %v1870 = vpack.c.b16 %v1611, %v1610
    %v1871 = vpack.c.b16 %v1613, %v1612
    %v1872 = vpack.c.b16 %v1615, %v1614
    %v1873 = vpack.c.b16 %v1617, %v1616
    %v1879 = vunpack.c.l.b16 %v548
    %v1880 = vunpack.c.l.b16 %v549
    %v1881 = vunpack.c.l.b16 %v550
    %v1882 = vunpack.c.l.b16 %v551
    %v1883 = vunpack.c.l.b16 %v552
    %v1884 = vpack.c.b16 %v1880, %v1879
    %v1885 = vpack.c.b16 %v1882, %v1881
    %v1886 = vpack.c.b16 %v1883, %v1883
    %vm1889 = vcmask 293888
    %v1891 = vsel %vm1889, %v1618, 0
    %v1894 = vsel %vm1889, %v1619, 0
    %v1897 = vsel %vm1889, %v1620, 0
    %v1900 = vsel %vm1889, %v1621, 0
    %v1903 = vsel %vm1889, %v1622, 0
    %v1906 = vsel %vm1889, %v1623, 0
    %v1909 = vsel %vm1889, %v1624, 0
    %v1912 = vsel %vm1889, %v1625, 0
    %v1915 = vsel %vm1889, %v1626, 0
    %v1918 = vsel %vm1889, %v1627, 0
    %v1921 = vsel %vm1889, %v1628, 0
    %v1924 = vsel %vm1889, %v1629, 0
    %v1927 = vsel %vm1889, %v1630, 0
    %v1930 = vsel %vm1889, %v1631, 0
    %v1933 = vsel %vm1889, %v1632, 0
    %v1936 = vsel %vm1889, %v1633, 0
    %v1939 = vsel %vm1889, %v1634, 0
    %v1942 = vsel %vm1889, %v1635, 0
    %v1945 = vsel %vm1889, %v1636, 0
    %v1948 = vsel %vm1889, %v1637, 0
    %v1951 = vsel %vm1889, %v1638, 0
    %v1954 = vsel %vm1889, %v1639, 0
    %v1957 = vsel %vm1889, %v1640, 0
    %v1960 = vsel %vm1889, %v1641, 0
    %v1963 = vsel %vm1889, %v1642, 0
    %v1966 = vsel %vm1889, %v1643, 0
    %v1969 = vsel %vm1889, %v1644, 0
    %v1972 = vsel %vm1889, %v1645, 0
    %v1975 = vsel %vm1889, %v1646, 0
    %v1978 = vsel %vm1889, %v1647, 0
    %v1981 = vsel %vm1889, %v1648, 0
    %v1984 = vsel %vm1889, %v1649, 0
    %v1987 = vsel %vm1889, %v1650, 0
    %v1990 = vsel %vm1889, %v1651, 0
    %v1993 = vsel %vm1889, %v1652, 0
    %v1996 = vsel %vm1889, %v1653, 0
    %v1999 = vsel %vm1889, %v1654, 0
    %v2002 = vsel %vm1889, %v1655, 0
    %v2005 = vsel %vm1889, %v1656, 0
    %v2008 = vsel %vm1889, %v1657, 0
    %v2011 = vsel %vm1889, %v1658, 0
    %v2014 = vsel %vm1889, %v1659, 0
    %v2017 = vsel %vm1889, %v1660, 0
    %v2020 = vsel %vm1889, %v1661, 0
    %v2023 = vsel %vm1889, %v1662, 0
    %v2026 = vsel %vm1889, %v1663, 0
    %v2029 = vsel %vm1889, %v1664, 0
    %v2032 = vsel %vm1889, %v1665, 0
    %v2035 = vsel %vm1889, %v1666, 0
    %v2038 = vsel %vm1889, %v1667, 0
    %v2041 = vsel %vm1889, %v1668, 0
    %v2044 = vsel %vm1889, %v1669, 0
    %v2047 = vsel %vm1889, %v1670, 0
    %v2050 = vsel %vm1889, %v1671, 0
    %v2053 = vsel %vm1889, %v1672, 0
    %v2056 = vsel %vm1889, %v1673, 0
    %v2059 = vsel %vm1889, %v1674, 0
    %v2062 = vsel %vm1889, %v1675, 0
    %v2065 = vsel %vm1889, %v1676, 0
    %v2068 = vsel %vm1889, %v1677, 0
    %v2071 = vsel %vm1889, %v1678, 0
    %v2074 = vsel %vm1889, %v1679, 0
    %v2077 = vsel %vm1889, %v1680, 0
    %v2080 = vsel %vm1889, %v1681, 0
    %v2083 = vsel %vm1889, %v1682, 0
    %v2086 = vsel %vm1889, %v1683, 0
    %v2089 = vsel %vm1889, %v1684, 0
    %v2092 = vsel %vm1889, %v1685, 0
    %v2095 = vsel %vm1889, %v1686, 0
    %v2098 = vsel %vm1889, %v1687, 0
    %v2101 = vsel %vm1889, %v1688, 0
    %v2104 = vsel %vm1889, %v1689, 0
    %v2107 = vsel %vm1889, %v1690, 0
    %v2110 = vsel %vm1889, %v1691, 0
    %v2113 = vsel %vm1889, %v1692, 0
    %v2116 = vsel %vm1889, %v1693, 0
    %v2119 = vsel %vm1889, %v1694, 0
    %v2122 = vsel %vm1889, %v1695, 0
    %v2125 = vsel %vm1889, %v1696, 0
    %v2128 = vsel %vm1889, %v1697, 0
    %v2131 = vsel %vm1889, %v1698, 0
    %v2134 = vsel %vm1889, %v1699, 0
    %v2137 = vsel %vm1889, %v1700, 0
    %v2140 = vsel %vm1889, %v1701, 0
    %v2143 = vsel %vm1889, %v1702, 0
    %v2146 = vsel %vm1889, %v1703, 0
    %v2149 = vsel %vm1889, %v1704, 0
    %v2152 = vsel %vm1889, %v1705, 0
    %v2155 = vsel %vm1889, %v1706, 0
    %v2158 = vsel %vm1889, %v1707, 0
    %v2161 = vsel %vm1889, %v1708, 0
    %v2164 = vsel %vm1889, %v1709, 0
    %v2167 = vsel %vm1889, %v1710, 0
    %v2170 = vsel %vm1889, %v1711, 0
    %v2173 = vsel %vm1889, %v1712, 0
    %v2176 = vsel %vm1889, %v1713, 0
    %v2179 = vsel %vm1889, %v1714, 0
    %v2182 = vsel %vm1889, %v1715, 0
    %v2185 = vsel %vm1889, %v1716, 0
    %v2188 = vsel %vm1889, %v1717, 0
    %v2191 = vsel %vm1889, %v1718, 0
    %v2194 = vsel %vm1889, %v1719, 0
    %v2197 = vsel %vm1889, %v1720, 0
    %v2200 = vsel %vm1889, %v1721, 0
    %v2203 = vsel %vm1889, %v1722, 0
    %v2206 = vsel %vm1889, %v1723, 0
    %v2209 = vsel %vm1889, %v1724, 0
    %v2212 = vsel %vm1889, %v1725, 0
    %v2215 = vsel %vm1889, %v1726, 0
    %v2218 = vsel %vm1889, %v1727, 0
    %v2221 = vsel %vm1889, %v1728, 0
    %v2224 = vsel %vm1889, %v1729, 0
    %v2227 = vsel %vm1889, %v1730, 0
    %v2230 = vsel %vm1889, %v1731, 0
    %v2233 = vsel %vm1889, %v1732, 0
    %v2236 = vsel %vm1889, %v1733, 0
    %v2239 = vsel %vm1889, %v1734, 0
    %v2242 = vsel %vm1889, %v1735, 0
    %v2245 = vsel %vm1889, %v1736, 0
    %v2248 = vsel %vm1889, %v1737, 0
    %v2251 = vsel %vm1889, %v1738, 0
    %v2254 = vsel %vm1889, %v1739, 0
    %v2257 = vsel %vm1889, %v1740, 0
    %v2260 = vsel %vm1889, %v1741, 0
    %v2263 = vsel %vm1889, %v1742, 0
    %v2266 = vsel %vm1889, %v1743, 0
    %v2269 = vsel %vm1889, %v1744, 0
    %v2272 = vsel %vm1889, %v1745, 0
    %v2275 = vsel %vm1889, %v1746, 0
    %v2278 = vsel %vm1889, %v1747, 0
    %v2281 = vsel %vm1889, %v1748, 0
    %v2284 = vsel %vm1889, %v1749, 0
    %v2287 = vsel %vm1889, %v1750, 0
    %v2290 = vsel %vm1889, %v1751, 0
    %v2293 = vsel %vm1889, %v1752, 0
    %v2296 = vsel %vm1889, %v1753, 0
    %v2299 = vsel %vm1889, %v1754, 0
    %v2302 = vsel %vm1889, %v1755, 0
    %v2305 = vsel %vm1889, %v1756, 0
    %v2308 = vsel %vm1889, %v1757, 0
    %v2311 = vsel %vm1889, %v1758, 0
    %v2314 = vsel %vm1889, %v1759, 0
    %v2317 = vsel %vm1889, %v1760, 0
    %v2320 = vsel %vm1889, %v1761, 0
    %v2323 = vsel %vm1889, %v1762, 0
    %v2326 = vsel %vm1889, %v1763, 0
    %v2329 = vsel %vm1889, %v1764, 0
    %v2332 = vsel %vm1889, %v1765, 0
    %v2335 = vsel %vm1889, %v1766, 0
    %v2338 = vsel %vm1889, %v1767, 0
    %v2341 = vsel %vm1889, %v1768, 0
    %v2344 = vsel %vm1889, %v1769, 0
    %v2347 = vsel %vm1889, %v1770, 0
    %v2350 = vsel %vm1889, %v1771, 0
    %v2353 = vsel %vm1889, %v1772, 0
    %v2356 = vsel %vm1889, %v1773, 0
    %v2359 = vsel %vm1889, %v1774, 0
    %v2362 = vsel %vm1889, %v1775, 0
    %v2365 = vsel %vm1889, %v1776, 0
    %v2368 = vsel %vm1889, %v1777, 0
    %v2371 = vsel %vm1889, %v1778, 0
    %v2374 = vsel %vm1889, %v1779, 0
    %v2377 = vsel %vm1889, %v1780, 0
    %v2380 = vsel %vm1889, %v1781, 0
    %v2383 = vsel %vm1889, %v1782, 0
    %v2386 = vsel %vm1889, %v1783, 0
    %v2389 = vsel %vm1889, %v1784, 0
    %v2392 = vsel %vm1889, %v1785, 0
    %v2395 = vsel %vm1889, %v1786, 0
    %v2398 = vsel %vm1889, %v1787, 0
    %v2401 = vsel %vm1889, %v1788, 0
    %v2404 = vsel %vm1889, %v1789, 0
    %v2407 = vsel %vm1889, %v1790, 0
    %v2410 = vsel %vm1889, %v1791, 0
    %v2413 = vsel %vm1889, %v1792, 0
    %v2416 = vsel %vm1889, %v1793, 0
    %v2419 = vsel %vm1889, %v1794, 0
    %v2422 = vsel %vm1889, %v1795, 0
    %v2425 = vsel %vm1889, %v1796, 0
    %v2428 = vsel %vm1889, %v1797, 0
    %v2431 = vsel %vm1889, %v1798, 0
    %v2434 = vsel %vm1889, %v1799, 0
    %v2437 = vsel %vm1889, %v1800, 0
    %v2440 = vsel %vm1889, %v1801, 0
    %v2443 = vsel %vm1889, %v1802, 0
    %v2446 = vsel %vm1889, %v1803, 0
    %v2449 = vsel %vm1889, %v1804, 0
    %v2452 = vsel %vm1889, %v1805, 0
    %v2455 = vsel %vm1889, %v1806, 0
    %v2458 = vsel %vm1889, %v1807, 0
    %v2461 = vsel %vm1889, %v1808, 0
    %v2464 = vsel %vm1889, %v1809, 0
    %v2467 = vsel %vm1889, %v1810, 0
    %v2470 = vsel %vm1889, %v1811, 0
    %v2473 = vsel %vm1889, %v1812, 0
    %v2476 = vsel %vm1889, %v1813, 0
    %v2479 = vsel %vm1889, %v1814, 0
    %v2482 = vsel %vm1889, %v1815, 0
    %v2485 = vsel %vm1889, %v1816, 0
    %v2488 = vsel %vm1889, %v1817, 0
    %v2491 = vsel %vm1889, %v1818, 0
    %v2494 = vsel %vm1889, %v1819, 0
    %v2497 = vsel %vm1889, %v1820, 0
    %v2500 = vsel %vm1889, %v1821, 0
    %v2503 = vsel %vm1889, %v1822, 0
    %v2506 = vsel %vm1889, %v1823, 0
    %v2509 = vsel %vm1889, %v1824, 0
    %v2512 = vsel %vm1889, %v1825, 0
    %v2515 = vsel %vm1889, %v1826, 0
    %v2518 = vsel %vm1889, %v1827, 0
    %v2521 = vsel %vm1889, %v1828, 0
    %v2524 = vsel %vm1889, %v1829, 0
    %v2527 = vsel %vm1889, %v1830, 0
    %v2530 = vsel %vm1889, %v1831, 0
    %v2533 = vsel %vm1889, %v1832, 0
    %v2536 = vsel %vm1889, %v1833, 0
    %v2539 = vsel %vm1889, %v1834, 0
    %v2542 = vsel %vm1889, %v1835, 0
    %v2545 = vsel %vm1889, %v1836, 0
    %v2548 = vsel %vm1889, %v1837, 0
    %v2551 = vsel %vm1889, %v1838, 0
    %v2554 = vsel %vm1889, %v1839, 0
    %v2557 = vsel %vm1889, %v1840, 0
    %v2560 = vsel %vm1889, %v1841, 0
    %v2563 = vsel %vm1889, %v1842, 0
    %v2566 = vsel %vm1889, %v1843, 0
    %v2569 = vsel %vm1889, %v1844, 0
    %v2572 = vsel %vm1889, %v1845, 0
    %v2575 = vsel %vm1889, %v1846, 0
    %v2578 = vsel %vm1889, %v1847, 0
    %v2581 = vsel %vm1889, %v1848, 0
    %v2584 = vsel %vm1889, %v1849, 0
    %v2587 = vsel %vm1889, %v1850, 0
    %v2590 = vsel %vm1889, %v1851, 0
    %v2593 = vsel %vm1889, %v1852, 0
    %v2596 = vsel %vm1889, %v1853, 0
    %v2599 = vsel %vm1889, %v1854, 0
    %v2602 = vsel %vm1889, %v1855, 0
    %v2605 = vsel %vm1889, %v1856, 0
    %v2608 = vsel %vm1889, %v1857, 0
    %v2611 = vsel %vm1889, %v1858, 0
    %v2614 = vsel %vm1889, %v1859, 0
    %v2617 = vsel %vm1889, %v1860, 0
    %v2620 = vsel %vm1889, %v1861, 0
    %v2623 = vsel %vm1889, %v1862, 0
    %v2626 = vsel %vm1889, %v1863, 0
    %v2629 = vsel %vm1889, %v1864, 0
    %v2632 = vsel %vm1889, %v1865, 0
    %v2635 = vsel %vm1889, %v1866, 0
    %v2638 = vsel %vm1889, %v1867, 0
    %v2641 = vsel %vm1889, %v1868, 0
    %v2644 = vsel %vm1889, %v1869, 0
    %v2647 = vsel %vm1889, %v1870, 0
    %v2650 = vsel %vm1889, %v1871, 0
    %v2653 = vsel %vm1889, %v1872, 0
    %v2656 = vsel %vm1889, %v1873, 0
    %vm2658 = vcmask 1041408
    %v2660 = vsel %vm2658, %v1886, 0
    %2662 = vmatprep.subr.bf16.mxu0 0
    %2663 = vmatpush1.bf16.msra.mxu0 0
    %2664 = vmatprep.subr.bf16.mxu0 0
    %2665 = vmatpush1.bf16.msra.mxu0 0
    %2666 = vmatprep.subr.bf16.mxu0 0
    %2667 = vmatpush1.bf16.msra.mxu0 0
    %2668 = vmatprep.subr.bf16.mxu0 0
    %2669 = vmatpush1.bf16.msra.mxu0 0
    %2670 = vmatprep.subr.bf16.mxu0 0
    %2671 = vmatpush1.bf16.msra.mxu0 0
    %2672 = vmatprep.subr.bf16.mxu0 0
    %2673 = vmatpush1.bf16.msra.mxu0 %v2660
    %2674 = vmatprep.subr.bf16.mxu0 0
    %2675 = vmatpush1.bf16.msra.mxu0 %v1885
    %2676 = vmatprep.subr.bf16.mxu0 0
    %2677 = vmatpush1.bf16.msra.mxu0 %v1884
    %2678 = vmatprep.subr.bf16.mxu0 0
    %2679 = vmatpush2.bf16.msra.mxu0 0
    %2680 = vmatprep.subr.bf16.mxu0 0
    %2681 = vmatpush2.bf16.msra.mxu0 0
    %2682 = vmatprep.subr.bf16.mxu0 0
    %2683 = vmatpush2.bf16.msra.mxu0 0
    %2684 = vmatprep.subr.bf16.mxu0 0
    %2685 = vmatpush2.bf16.msra.mxu0 0
    %2686 = vmatprep.subr.bf16.mxu0 0
    %2687 = vmatpush2.bf16.msra.mxu0 0
    %2688 = vmatprep.subr.bf16.mxu0 0
    %2689 = vmatpush2.bf16.msra.mxu0 0
    %2690 = vmatprep.subr.bf16.mxu0 0
    %2691 = vmatpush2.bf16.msra.mxu0 0
    %2692 = vmatprep.subr.bf16.mxu0 0
    %2693 = vmatpush2.bf16.msra.mxu0 0
    %2694 = vmatprep.mubr.bf16.mxu0 0
    %2695 = vmatmul.mubr.bf16.gmra.mxu0 %v1891
    %v2696 = vpop.f32.mrf.mxu0
    %v2697 = vadd.f32 %v592, %v2696
    %v2698 = vpop.f32.mrf.mxu0
    %v2699 = vpop.f32.mrf.mxu0
    %v2700 = vadd.f32 %v592, %v2699
    %v2701 = vpop.f32.mrf.mxu0
    %2702 = vmatprep.mubr.bf16.mxu0 0
    %2703 = vmatmul.mubr.bf16.gmra.mxu0 %v1894
    %v2704 = vpop.f32.mrf.mxu0
    %v2705 = vadd.f32 %v592, %v2704
    %v2706 = vpop.f32.mrf.mxu0
    %v2707 = vpop.f32.mrf.mxu0
    %v2708 = vadd.f32 %v592, %v2707
    %v2709 = vpop.f32.mrf.mxu0
    %2710 = vmatprep.mubr.bf16.mxu0 0
    %2711 = vmatmul.mubr.bf16.gmra.mxu0 %v1897
    %v2712 = vpop.f32.mrf.mxu0
    %v2713 = vadd.f32 %v592, %v2712
    %v2714 = vpop.f32.mrf.mxu0
    %v2715 = vpop.f32.mrf.mxu0
    %v2716 = vadd.f32 %v592, %v2715
    %v2717 = vpop.f32.mrf.mxu0
    %2718 = vmatprep.mubr.bf16.mxu0 0
    %2719 = vmatmul.mubr.bf16.gmra.mxu0 %v1900
    %v2720 = vpop.f32.mrf.mxu0
    %v2721 = vadd.f32 %v592, %v2720
    %v2722 = vpop.f32.mrf.mxu0
    %v2723 = vpop.f32.mrf.mxu0
    %v2724 = vadd.f32 %v592, %v2723
    %v2725 = vpop.f32.mrf.mxu0
    %2726 = vmatprep.mubr.bf16.mxu0 0
    %2727 = vmatmul.mubr.bf16.gmra.mxu0 %v1903
    %v2728 = vpop.f32.mrf.mxu0
    %v2729 = vadd.f32 %v592, %v2728
    %v2730 = vpop.f32.mrf.mxu0
    %v2731 = vpop.f32.mrf.mxu0
    %v2732 = vadd.f32 %v592, %v2731
    %v2733 = vpop.f32.mrf.mxu0
    %2734 = vmatprep.mubr.bf16.mxu0 0
    %2735 = vmatmul.mubr.bf16.gmra.mxu0 %v1906
    %v2736 = vpop.f32.mrf.mxu0
    %v2737 = vadd.f32 %v592, %v2736
    %v2738 = vpop.f32.mrf.mxu0
    %v2739 = vpop.f32.mrf.mxu0
    %v2740 = vadd.f32 %v592, %v2739
    %v2741 = vpop.f32.mrf.mxu0
    %2742 = vmatprep.mubr.bf16.mxu0 0
    %2743 = vmatmul.mubr.bf16.gmra.mxu0 %v1909
    %v2744 = vpop.f32.mrf.mxu0
    %v2745 = vadd.f32 %v592, %v2744
    %v2746 = vpop.f32.mrf.mxu0
    %v2747 = vpop.f32.mrf.mxu0
    %v2748 = vadd.f32 %v592, %v2747
    %v2749 = vpop.f32.mrf.mxu0
    %2750 = vmatprep.mubr.bf16.mxu0 0
    %2751 = vmatmul.mubr.bf16.gmra.mxu0 %v1912
    %v2752 = vpop.f32.mrf.mxu0
    %v2753 = vadd.f32 %v592, %v2752
    %v2754 = vpop.f32.mrf.mxu0
    %v2755 = vpop.f32.mrf.mxu0
    %v2756 = vadd.f32 %v592, %v2755
    %v2757 = vpop.f32.mrf.mxu0
    %2758 = vmatprep.mubr.bf16.mxu0 0
    %2759 = vmatmul.mubr.bf16.gmra.mxu0 %v1915
    %v2760 = vpop.f32.mrf.mxu0
    %v2761 = vadd.f32 %v592, %v2760
    %v2762 = vpop.f32.mrf.mxu0
    %v2763 = vpop.f32.mrf.mxu0
    %v2764 = vadd.f32 %v592, %v2763
    %v2765 = vpop.f32.mrf.mxu0
    %2766 = vmatprep.mubr.bf16.mxu0 0
    %2767 = vmatmul.mubr.bf16.gmra.mxu0 %v1918
    %v2768 = vpop.f32.mrf.mxu0
    %v2769 = vadd.f32 %v592, %v2768
    %v2770 = vpop.f32.mrf.mxu0
    %v2771 = vpop.f32.mrf.mxu0
    %v2772 = vadd.f32 %v592, %v2771
    %v2773 = vpop.f32.mrf.mxu0
    %2774 = vmatprep.mubr.bf16.mxu0 0
    %2775 = vmatmul.mubr.bf16.gmra.mxu0 %v1921
    %v2776 = vpop.f32.mrf.mxu0
    %v2777 = vadd.f32 %v592, %v2776
    %v2778 = vpop.f32.mrf.mxu0
    %v2779 = vpop.f32.mrf.mxu0
    %v2780 = vadd.f32 %v592, %v2779
    %v2781 = vpop.f32.mrf.mxu0
    %2782 = vmatprep.mubr.bf16.mxu0 0
    %2783 = vmatmul.mubr.bf16.gmra.mxu0 %v1924
    %v2784 = vpop.f32.mrf.mxu0
    %v2785 = vadd.f32 %v592, %v2784
    %v2786 = vpop.f32.mrf.mxu0
    %v2787 = vpop.f32.mrf.mxu0
    %v2788 = vadd.f32 %v592, %v2787
    %v2789 = vpop.f32.mrf.mxu0
    %2790 = vmatprep.mubr.bf16.mxu0 0
    %2791 = vmatmul.mubr.bf16.gmra.mxu0 %v1927
    %v2792 = vpop.f32.mrf.mxu0
    %v2793 = vadd.f32 %v592, %v2792
    %v2794 = vpop.f32.mrf.mxu0
    %v2795 = vpop.f32.mrf.mxu0
    %v2796 = vadd.f32 %v592, %v2795
    %v2797 = vpop.f32.mrf.mxu0
    %2798 = vmatprep.mubr.bf16.mxu0 0
    %2799 = vmatmul.mubr.bf16.gmra.mxu0 %v1930
    %v2800 = vpop.f32.mrf.mxu0
    %v2801 = vadd.f32 %v592, %v2800
    %v2802 = vpop.f32.mrf.mxu0
    %v2803 = vpop.f32.mrf.mxu0
    %v2804 = vadd.f32 %v592, %v2803
    %v2805 = vpop.f32.mrf.mxu0
    %2806 = vmatprep.mubr.bf16.mxu0 0
    %2807 = vmatmul.mubr.bf16.gmra.mxu0 %v1933
    %v2808 = vpop.f32.mrf.mxu0
    %v2809 = vadd.f32 %v592, %v2808
    %v2810 = vpop.f32.mrf.mxu0
    %v2811 = vpop.f32.mrf.mxu0
    %v2812 = vadd.f32 %v592, %v2811
    %v2813 = vpop.f32.mrf.mxu0
    %2814 = vmatprep.mubr.bf16.mxu0 0
    %2815 = vmatmul.mubr.bf16.gmra.mxu0 %v1936
    %v2816 = vpop.f32.mrf.mxu0
    %v2817 = vadd.f32 %v592, %v2816
    %v2818 = vpop.f32.mrf.mxu0
    %v2819 = vpop.f32.mrf.mxu0
    %v2820 = vadd.f32 %v592, %v2819
    %v2821 = vpop.f32.mrf.mxu0
    %2822 = vmatprep.mubr.bf16.mxu0 0
    %2823 = vmatmul.mubr.bf16.gmra.mxu0 %v1939
    %v2824 = vpop.f32.mrf.mxu0
    %v2825 = vadd.f32 %v592, %v2824
    %v2826 = vpop.f32.mrf.mxu0
    %v2827 = vpop.f32.mrf.mxu0
    %v2828 = vadd.f32 %v592, %v2827
    %v2829 = vpop.f32.mrf.mxu0
    %2830 = vmatprep.mubr.bf16.mxu0 0
    %2831 = vmatmul.mubr.bf16.gmra.mxu0 %v1942
    %v2832 = vpop.f32.mrf.mxu0
    %v2833 = vadd.f32 %v592, %v2832
    %v2834 = vpop.f32.mrf.mxu0
    %v2835 = vpop.f32.mrf.mxu0
    %v2836 = vadd.f32 %v592, %v2835
    %v2837 = vpop.f32.mrf.mxu0
    %2838 = vmatprep.mubr.bf16.mxu0 0
    %2839 = vmatmul.mubr.bf16.gmra.mxu0 %v1945
    %v2840 = vpop.f32.mrf.mxu0
    %v2841 = vadd.f32 %v592, %v2840
    %v2842 = vpop.f32.mrf.mxu0
    %v2843 = vpop.f32.mrf.mxu0
    %v2844 = vadd.f32 %v592, %v2843
    %v2845 = vpop.f32.mrf.mxu0
    %2846 = vmatprep.mubr.bf16.mxu0 0
    %2847 = vmatmul.mubr.bf16.gmra.mxu0 %v1948
    %v2848 = vpop.f32.mrf.mxu0
    %v2849 = vadd.f32 %v592, %v2848
    %v2850 = vpop.f32.mrf.mxu0
    %v2851 = vpop.f32.mrf.mxu0
    %v2852 = vadd.f32 %v592, %v2851
    %v2853 = vpop.f32.mrf.mxu0
    %2854 = vmatprep.mubr.bf16.mxu0 0
    %2855 = vmatmul.mubr.bf16.gmra.mxu0 %v1951
    %v2856 = vpop.f32.mrf.mxu0
    %v2857 = vadd.f32 %v592, %v2856
    %v2858 = vpop.f32.mrf.mxu0
    %v2859 = vpop.f32.mrf.mxu0
    %v2860 = vadd.f32 %v592, %v2859
    %v2861 = vpop.f32.mrf.mxu0
    %2862 = vmatprep.mubr.bf16.mxu0 0
    %2863 = vmatmul.mubr.bf16.gmra.mxu0 %v1954
    %v2864 = vpop.f32.mrf.mxu0
    %v2865 = vadd.f32 %v592, %v2864
    %v2866 = vpop.f32.mrf.mxu0
    %v2867 = vpop.f32.mrf.mxu0
    %v2868 = vadd.f32 %v592, %v2867
    %v2869 = vpop.f32.mrf.mxu0
    %2870 = vmatprep.mubr.bf16.mxu0 0
    %2871 = vmatmul.mubr.bf16.gmra.mxu0 %v1957
    %v2872 = vpop.f32.mrf.mxu0
    %v2873 = vadd.f32 %v592, %v2872
    %v2874 = vpop.f32.mrf.mxu0
    %v2875 = vpop.f32.mrf.mxu0
    %v2876 = vadd.f32 %v592, %v2875
    %v2877 = vpop.f32.mrf.mxu0
    %2878 = vmatprep.mubr.bf16.mxu0 0
    %2879 = vmatmul.mubr.bf16.gmra.mxu0 %v1960
    %v2880 = vpop.f32.mrf.mxu0
    %v2881 = vadd.f32 %v592, %v2880
    %v2882 = vpop.f32.mrf.mxu0
    %v2883 = vpop.f32.mrf.mxu0
    %v2884 = vadd.f32 %v592, %v2883
    %v2885 = vpop.f32.mrf.mxu0
    %2886 = vmatprep.mubr.bf16.mxu0 0
    %2887 = vmatmul.mubr.bf16.gmra.mxu0 %v1963
    %v2888 = vpop.f32.mrf.mxu0
    %v2889 = vadd.f32 %v592, %v2888
    %v2890 = vpop.f32.mrf.mxu0
    %v2891 = vpop.f32.mrf.mxu0
    %v2892 = vadd.f32 %v592, %v2891
    %v2893 = vpop.f32.mrf.mxu0
    %2894 = vmatprep.mubr.bf16.mxu0 0
    %2895 = vmatmul.mubr.bf16.gmra.mxu0 %v1966
    %v2896 = vpop.f32.mrf.mxu0
    %v2897 = vadd.f32 %v592, %v2896
    %v2898 = vpop.f32.mrf.mxu0
    %v2899 = vpop.f32.mrf.mxu0
    %v2900 = vadd.f32 %v592, %v2899
    %v2901 = vpop.f32.mrf.mxu0
    %2902 = vmatprep.mubr.bf16.mxu0 0
    %2903 = vmatmul.mubr.bf16.gmra.mxu0 %v1969
    %v2904 = vpop.f32.mrf.mxu0
    %v2905 = vadd.f32 %v592, %v2904
    %v2906 = vpop.f32.mrf.mxu0
    %v2907 = vpop.f32.mrf.mxu0
    %v2908 = vadd.f32 %v592, %v2907
    %v2909 = vpop.f32.mrf.mxu0
    %2910 = vmatprep.mubr.bf16.mxu0 0
    %2911 = vmatmul.mubr.bf16.gmra.mxu0 %v1972
    %v2912 = vpop.f32.mrf.mxu0
    %v2913 = vadd.f32 %v592, %v2912
    %v2914 = vpop.f32.mrf.mxu0
    %v2915 = vpop.f32.mrf.mxu0
    %v2916 = vadd.f32 %v592, %v2915
    %v2917 = vpop.f32.mrf.mxu0
    %2918 = vmatprep.mubr.bf16.mxu0 0
    %2919 = vmatmul.mubr.bf16.gmra.mxu0 %v1975
    %v2920 = vpop.f32.mrf.mxu0
    %v2921 = vadd.f32 %v592, %v2920
    %v2922 = vpop.f32.mrf.mxu0
    %v2923 = vpop.f32.mrf.mxu0
    %v2924 = vadd.f32 %v592, %v2923
    %v2925 = vpop.f32.mrf.mxu0
    %2926 = vmatprep.mubr.bf16.mxu0 0
    %2927 = vmatmul.mubr.bf16.gmra.mxu0 %v1978
    %v2928 = vpop.f32.mrf.mxu0
    %v2929 = vadd.f32 %v592, %v2928
    %v2930 = vpop.f32.mrf.mxu0
    %v2931 = vpop.f32.mrf.mxu0
    %v2932 = vadd.f32 %v592, %v2931
    %v2933 = vpop.f32.mrf.mxu0
    %2934 = vmatprep.mubr.bf16.mxu0 0
    %2935 = vmatmul.mubr.bf16.gmra.mxu0 %v1981
    %v2936 = vpop.f32.mrf.mxu0
    %v2937 = vadd.f32 %v592, %v2936
    %v2938 = vpop.f32.mrf.mxu0
    %v2939 = vpop.f32.mrf.mxu0
    %v2940 = vadd.f32 %v592, %v2939
    %v2941 = vpop.f32.mrf.mxu0
    %2942 = vmatprep.mubr.bf16.mxu0 0
    %2943 = vmatmul.mubr.bf16.gmra.mxu0 %v1984
    %v2944 = vpop.f32.mrf.mxu0
    %v2945 = vadd.f32 %v592, %v2944
    %v2946 = vpop.f32.mrf.mxu0
    %v2947 = vpop.f32.mrf.mxu0
    %v2948 = vadd.f32 %v592, %v2947
    %v2949 = vpop.f32.mrf.mxu0
    %2950 = vmatprep.mubr.bf16.mxu0 0
    %2951 = vmatmul.mubr.bf16.gmra.mxu0 %v1987
    %v2952 = vpop.f32.mrf.mxu0
    %v2953 = vadd.f32 %v592, %v2952
    %v2954 = vpop.f32.mrf.mxu0
    %v2955 = vpop.f32.mrf.mxu0
    %v2956 = vadd.f32 %v592, %v2955
    %v2957 = vpop.f32.mrf.mxu0
    %2958 = vmatprep.mubr.bf16.mxu0 0
    %2959 = vmatmul.mubr.bf16.gmra.mxu0 %v1990
    %v2960 = vpop.f32.mrf.mxu0
    %v2961 = vadd.f32 %v592, %v2960
    %v2962 = vpop.f32.mrf.mxu0
    %v2963 = vpop.f32.mrf.mxu0
    %v2964 = vadd.f32 %v592, %v2963
    %v2965 = vpop.f32.mrf.mxu0
    %2966 = vmatprep.mubr.bf16.mxu0 0
    %2967 = vmatmul.mubr.bf16.gmra.mxu0 %v1993
    %v2968 = vpop.f32.mrf.mxu0
    %v2969 = vadd.f32 %v592, %v2968
    %v2970 = vpop.f32.mrf.mxu0
    %v2971 = vpop.f32.mrf.mxu0
    %v2972 = vadd.f32 %v592, %v2971
    %v2973 = vpop.f32.mrf.mxu0
    %2974 = vmatprep.mubr.bf16.mxu0 0
    %2975 = vmatmul.mubr.bf16.gmra.mxu0 %v1996
    %v2976 = vpop.f32.mrf.mxu0
    %v2977 = vadd.f32 %v592, %v2976
    %v2978 = vpop.f32.mrf.mxu0
    %v2979 = vpop.f32.mrf.mxu0
    %v2980 = vadd.f32 %v592, %v2979
    %v2981 = vpop.f32.mrf.mxu0
    %2982 = vmatprep.mubr.bf16.mxu0 0
    %2983 = vmatmul.mubr.bf16.gmra.mxu0 %v1999
    %v2984 = vpop.f32.mrf.mxu0
    %v2985 = vadd.f32 %v592, %v2984
    %v2986 = vpop.f32.mrf.mxu0
    %v2987 = vpop.f32.mrf.mxu0
    %v2988 = vadd.f32 %v592, %v2987
    %v2989 = vpop.f32.mrf.mxu0
    %2990 = vmatprep.mubr.bf16.mxu0 0
    %2991 = vmatmul.mubr.bf16.gmra.mxu0 %v2002
    %v2992 = vpop.f32.mrf.mxu0
    %v2993 = vadd.f32 %v592, %v2992
    %v2994 = vpop.f32.mrf.mxu0
    %v2995 = vpop.f32.mrf.mxu0
    %v2996 = vadd.f32 %v592, %v2995
    %v2997 = vpop.f32.mrf.mxu0
    %2998 = vmatprep.mubr.bf16.mxu0 0
    %2999 = vmatmul.mubr.bf16.gmra.mxu0 %v2005
    %v3000 = vpop.f32.mrf.mxu0
    %v3001 = vadd.f32 %v592, %v3000
    %v3002 = vpop.f32.mrf.mxu0
    %v3003 = vpop.f32.mrf.mxu0
    %v3004 = vadd.f32 %v592, %v3003
    %v3005 = vpop.f32.mrf.mxu0
    %3006 = vmatprep.mubr.bf16.mxu0 0
    %3007 = vmatmul.mubr.bf16.gmra.mxu0 %v2008
    %v3008 = vpop.f32.mrf.mxu0
    %v3009 = vadd.f32 %v592, %v3008
    %v3010 = vpop.f32.mrf.mxu0
    %v3011 = vpop.f32.mrf.mxu0
    %v3012 = vadd.f32 %v592, %v3011
    %v3013 = vpop.f32.mrf.mxu0
    %3014 = vmatprep.mubr.bf16.mxu0 0
    %3015 = vmatmul.mubr.bf16.gmra.mxu0 %v2011
    %v3016 = vpop.f32.mrf.mxu0
    %v3017 = vadd.f32 %v592, %v3016
    %v3018 = vpop.f32.mrf.mxu0
    %v3019 = vpop.f32.mrf.mxu0
    %v3020 = vadd.f32 %v592, %v3019
    %v3021 = vpop.f32.mrf.mxu0
    %3022 = vmatprep.mubr.bf16.mxu0 0
    %3023 = vmatmul.mubr.bf16.gmra.mxu0 %v2014
    %v3024 = vpop.f32.mrf.mxu0
    %v3025 = vadd.f32 %v592, %v3024
    %v3026 = vpop.f32.mrf.mxu0
    %v3027 = vpop.f32.mrf.mxu0
    %v3028 = vadd.f32 %v592, %v3027
    %v3029 = vpop.f32.mrf.mxu0
    %3030 = vmatprep.mubr.bf16.mxu0 0
    %3031 = vmatmul.mubr.bf16.gmra.mxu0 %v2017
    %v3032 = vpop.f32.mrf.mxu0
    %v3033 = vadd.f32 %v592, %v3032
    %v3034 = vpop.f32.mrf.mxu0
    %v3035 = vpop.f32.mrf.mxu0
    %v3036 = vadd.f32 %v592, %v3035
    %v3037 = vpop.f32.mrf.mxu0
    %3038 = vmatprep.mubr.bf16.mxu0 0
    %3039 = vmatmul.mubr.bf16.gmra.mxu0 %v2020
    %v3040 = vpop.f32.mrf.mxu0
    %v3041 = vadd.f32 %v592, %v3040
    %v3042 = vpop.f32.mrf.mxu0
    %v3043 = vpop.f32.mrf.mxu0
    %v3044 = vadd.f32 %v592, %v3043
    %v3045 = vpop.f32.mrf.mxu0
    %3046 = vmatprep.mubr.bf16.mxu0 0
    %3047 = vmatmul.mubr.bf16.gmra.mxu0 %v2023
    %v3048 = vpop.f32.mrf.mxu0
    %v3049 = vadd.f32 %v592, %v3048
    %v3050 = vpop.f32.mrf.mxu0
    %v3051 = vpop.f32.mrf.mxu0
    %v3052 = vadd.f32 %v592, %v3051
    %v3053 = vpop.f32.mrf.mxu0
    %3054 = vmatprep.mubr.bf16.mxu0 0
    %3055 = vmatmul.mubr.bf16.gmra.mxu0 %v2026
    %v3056 = vpop.f32.mrf.mxu0
    %v3057 = vadd.f32 %v592, %v3056
    %v3058 = vpop.f32.mrf.mxu0
    %v3059 = vpop.f32.mrf.mxu0
    %v3060 = vadd.f32 %v592, %v3059
    %v3061 = vpop.f32.mrf.mxu0
    %3062 = vmatprep.mubr.bf16.mxu0 0
    %3063 = vmatmul.mubr.bf16.gmra.mxu0 %v2029
    %v3064 = vpop.f32.mrf.mxu0
    %v3065 = vadd.f32 %v592, %v3064
    %v3066 = vpop.f32.mrf.mxu0
    %v3067 = vpop.f32.mrf.mxu0
    %v3068 = vadd.f32 %v592, %v3067
    %v3069 = vpop.f32.mrf.mxu0
    %3070 = vmatprep.mubr.bf16.mxu0 0
    %3071 = vmatmul.mubr.bf16.gmra.mxu0 %v2032
    %v3072 = vpop.f32.mrf.mxu0
    %v3073 = vadd.f32 %v592, %v3072
    %v3074 = vpop.f32.mrf.mxu0
    %v3075 = vpop.f32.mrf.mxu0
    %v3076 = vadd.f32 %v592, %v3075
    %v3077 = vpop.f32.mrf.mxu0
    %3078 = vmatprep.mubr.bf16.mxu0 0
    %3079 = vmatmul.mubr.bf16.gmra.mxu0 %v2035
    %v3080 = vpop.f32.mrf.mxu0
    %v3081 = vadd.f32 %v592, %v3080
    %v3082 = vpop.f32.mrf.mxu0
    %v3083 = vpop.f32.mrf.mxu0
    %v3084 = vadd.f32 %v592, %v3083
    %v3085 = vpop.f32.mrf.mxu0
    %3086 = vmatprep.mubr.bf16.mxu0 0
    %3087 = vmatmul.mubr.bf16.gmra.mxu0 %v2038
    %v3088 = vpop.f32.mrf.mxu0
    %v3089 = vadd.f32 %v592, %v3088
    %v3090 = vpop.f32.mrf.mxu0
    %v3091 = vpop.f32.mrf.mxu0
    %v3092 = vadd.f32 %v592, %v3091
    %v3093 = vpop.f32.mrf.mxu0
    %3094 = vmatprep.mubr.bf16.mxu0 0
    %3095 = vmatmul.mubr.bf16.gmra.mxu0 %v2041
    %v3096 = vpop.f32.mrf.mxu0
    %v3097 = vadd.f32 %v592, %v3096
    %v3098 = vpop.f32.mrf.mxu0
    %v3099 = vpop.f32.mrf.mxu0
    %v3100 = vadd.f32 %v592, %v3099
    %v3101 = vpop.f32.mrf.mxu0
    %3102 = vmatprep.mubr.bf16.mxu0 0
    %3103 = vmatmul.mubr.bf16.gmra.mxu0 %v2044
    %v3104 = vpop.f32.mrf.mxu0
    %v3105 = vadd.f32 %v592, %v3104
    %v3106 = vpop.f32.mrf.mxu0
    %v3107 = vpop.f32.mrf.mxu0
    %v3108 = vadd.f32 %v592, %v3107
    %v3109 = vpop.f32.mrf.mxu0
    %3110 = vmatprep.mubr.bf16.mxu0 0
    %3111 = vmatmul.mubr.bf16.gmra.mxu0 %v2047
    %v3112 = vpop.f32.mrf.mxu0
    %v3113 = vadd.f32 %v592, %v3112
    %v3114 = vpop.f32.mrf.mxu0
    %v3115 = vpop.f32.mrf.mxu0
    %v3116 = vadd.f32 %v592, %v3115
    %v3117 = vpop.f32.mrf.mxu0
    %3118 = vmatprep.mubr.bf16.mxu0 0
    %3119 = vmatmul.mubr.bf16.gmra.mxu0 %v2050
    %v3120 = vpop.f32.mrf.mxu0
    %v3121 = vadd.f32 %v592, %v3120
    %v3122 = vpop.f32.mrf.mxu0
    %v3123 = vpop.f32.mrf.mxu0
    %v3124 = vadd.f32 %v592, %v3123
    %v3125 = vpop.f32.mrf.mxu0
    %3126 = vmatprep.mubr.bf16.mxu0 0
    %3127 = vmatmul.mubr.bf16.gmra.mxu0 %v2053
    %v3128 = vpop.f32.mrf.mxu0
    %v3129 = vadd.f32 %v592, %v3128
    %v3130 = vpop.f32.mrf.mxu0
    %v3131 = vpop.f32.mrf.mxu0
    %v3132 = vadd.f32 %v592, %v3131
    %v3133 = vpop.f32.mrf.mxu0
    %3134 = vmatprep.mubr.bf16.mxu0 0
    %3135 = vmatmul.mubr.bf16.gmra.mxu0 %v2056
    %v3136 = vpop.f32.mrf.mxu0
    %v3137 = vadd.f32 %v592, %v3136
    %v3138 = vpop.f32.mrf.mxu0
    %v3139 = vpop.f32.mrf.mxu0
    %v3140 = vadd.f32 %v592, %v3139
    %v3141 = vpop.f32.mrf.mxu0
    %3142 = vmatprep.mubr.bf16.mxu0 0
    %3143 = vmatmul.mubr.bf16.gmra.mxu0 %v2059
    %v3144 = vpop.f32.mrf.mxu0
    %v3145 = vadd.f32 %v592, %v3144
    %v3146 = vpop.f32.mrf.mxu0
    %v3147 = vpop.f32.mrf.mxu0
    %v3148 = vadd.f32 %v592, %v3147
    %v3149 = vpop.f32.mrf.mxu0
    %3150 = vmatprep.mubr.bf16.mxu0 0
    %3151 = vmatmul.mubr.bf16.gmra.mxu0 %v2062
    %v3152 = vpop.f32.mrf.mxu0
    %v3153 = vadd.f32 %v592, %v3152
    %v3154 = vpop.f32.mrf.mxu0
    %v3155 = vpop.f32.mrf.mxu0
    %v3156 = vadd.f32 %v592, %v3155
    %v3157 = vpop.f32.mrf.mxu0
    %3158 = vmatprep.mubr.bf16.mxu0 0
    %3159 = vmatmul.mubr.bf16.gmra.mxu0 %v2065
    %v3160 = vpop.f32.mrf.mxu0
    %v3161 = vadd.f32 %v592, %v3160
    %v3162 = vpop.f32.mrf.mxu0
    %v3163 = vpop.f32.mrf.mxu0
    %v3164 = vadd.f32 %v592, %v3163
    %v3165 = vpop.f32.mrf.mxu0
    %3166 = vmatprep.mubr.bf16.mxu0 0
    %3167 = vmatmul.mubr.bf16.gmra.mxu0 %v2068
    %v3168 = vpop.f32.mrf.mxu0
    %v3169 = vadd.f32 %v592, %v3168
    %v3170 = vpop.f32.mrf.mxu0
    %v3171 = vpop.f32.mrf.mxu0
    %v3172 = vadd.f32 %v592, %v3171
    %v3173 = vpop.f32.mrf.mxu0
    %3174 = vmatprep.mubr.bf16.mxu0 0
    %3175 = vmatmul.mubr.bf16.gmra.mxu0 %v2071
    %v3176 = vpop.f32.mrf.mxu0
    %v3177 = vadd.f32 %v592, %v3176
    %v3178 = vpop.f32.mrf.mxu0
    %v3179 = vpop.f32.mrf.mxu0
    %v3180 = vadd.f32 %v592, %v3179
    %v3181 = vpop.f32.mrf.mxu0
    %3182 = vmatprep.mubr.bf16.mxu0 0
    %3183 = vmatmul.mubr.bf16.gmra.mxu0 %v2074
    %v3184 = vpop.f32.mrf.mxu0
    %v3185 = vadd.f32 %v592, %v3184
    %v3186 = vpop.f32.mrf.mxu0
    %v3187 = vpop.f32.mrf.mxu0
    %v3188 = vadd.f32 %v592, %v3187
    %v3189 = vpop.f32.mrf.mxu0
    %3190 = vmatprep.mubr.bf16.mxu0 0
    %3191 = vmatmul.mubr.bf16.gmra.mxu0 %v2077
    %v3192 = vpop.f32.mrf.mxu0
    %v3193 = vadd.f32 %v592, %v3192
    %v3194 = vpop.f32.mrf.mxu0
    %v3195 = vpop.f32.mrf.mxu0
    %v3196 = vadd.f32 %v592, %v3195
    %v3197 = vpop.f32.mrf.mxu0
    %3198 = vmatprep.mubr.bf16.mxu0 0
    %3199 = vmatmul.mubr.bf16.gmra.mxu0 %v2080
    %v3200 = vpop.f32.mrf.mxu0
    %v3201 = vadd.f32 %v592, %v3200
    %v3202 = vpop.f32.mrf.mxu0
    %v3203 = vpop.f32.mrf.mxu0
    %v3204 = vadd.f32 %v592, %v3203
    %v3205 = vpop.f32.mrf.mxu0
    %3206 = vmatprep.mubr.bf16.mxu0 0
    %3207 = vmatmul.mubr.bf16.gmra.mxu0 %v2083
    %v3208 = vpop.f32.mrf.mxu0
    %v3209 = vadd.f32 %v592, %v3208
    %v3210 = vpop.f32.mrf.mxu0
    %v3211 = vpop.f32.mrf.mxu0
    %v3212 = vadd.f32 %v592, %v3211
    %v3213 = vpop.f32.mrf.mxu0
    %3214 = vmatprep.mubr.bf16.mxu0 0
    %3215 = vmatmul.mubr.bf16.gmra.mxu0 %v2086
    %v3216 = vpop.f32.mrf.mxu0
    %v3217 = vadd.f32 %v592, %v3216
    %v3218 = vpop.f32.mrf.mxu0
    %v3219 = vpop.f32.mrf.mxu0
    %v3220 = vadd.f32 %v592, %v3219
    %v3221 = vpop.f32.mrf.mxu0
    %3222 = vmatprep.mubr.bf16.mxu0 0
    %3223 = vmatmul.mubr.bf16.gmra.mxu0 %v2089
    %v3224 = vpop.f32.mrf.mxu0
    %v3225 = vadd.f32 %v592, %v3224
    %v3226 = vpop.f32.mrf.mxu0
    %v3227 = vpop.f32.mrf.mxu0
    %v3228 = vadd.f32 %v592, %v3227
    %v3229 = vpop.f32.mrf.mxu0
    %3230 = vmatprep.mubr.bf16.mxu0 0
    %3231 = vmatmul.mubr.bf16.gmra.mxu0 %v2092
    %v3232 = vpop.f32.mrf.mxu0
    %v3233 = vadd.f32 %v592, %v3232
    %v3234 = vpop.f32.mrf.mxu0
    %v3235 = vpop.f32.mrf.mxu0
    %v3236 = vadd.f32 %v592, %v3235
    %v3237 = vpop.f32.mrf.mxu0
    %3238 = vmatprep.mubr.bf16.mxu0 0
    %3239 = vmatmul.mubr.bf16.gmra.mxu0 %v2095
    %v3240 = vpop.f32.mrf.mxu0
    %v3241 = vadd.f32 %v592, %v3240
    %v3242 = vpop.f32.mrf.mxu0
    %v3243 = vpop.f32.mrf.mxu0
    %v3244 = vadd.f32 %v592, %v3243
    %v3245 = vpop.f32.mrf.mxu0
    %3246 = vmatprep.mubr.bf16.mxu0 0
    %3247 = vmatmul.mubr.bf16.gmra.mxu0 %v2098
    %v3248 = vpop.f32.mrf.mxu0
    %v3249 = vadd.f32 %v592, %v3248
    %v3250 = vpop.f32.mrf.mxu0
    %v3251 = vpop.f32.mrf.mxu0
    %v3252 = vadd.f32 %v592, %v3251
    %v3253 = vpop.f32.mrf.mxu0
    %3254 = vmatprep.mubr.bf16.mxu0 0
    %3255 = vmatmul.mubr.bf16.gmra.mxu0 %v2101
    %v3256 = vpop.f32.mrf.mxu0
    %v3257 = vadd.f32 %v592, %v3256
    %v3258 = vpop.f32.mrf.mxu0
    %v3259 = vpop.f32.mrf.mxu0
    %v3260 = vadd.f32 %v592, %v3259
    %v3261 = vpop.f32.mrf.mxu0
    %3262 = vmatprep.mubr.bf16.mxu0 0
    %3263 = vmatmul.mubr.bf16.gmra.mxu0 %v2104
    %v3264 = vpop.f32.mrf.mxu0
    %v3265 = vadd.f32 %v592, %v3264
    %v3266 = vpop.f32.mrf.mxu0
    %v3267 = vpop.f32.mrf.mxu0
    %v3268 = vadd.f32 %v592, %v3267
    %v3269 = vpop.f32.mrf.mxu0
    %3270 = vmatprep.mubr.bf16.mxu0 0
    %3271 = vmatmul.mubr.bf16.gmra.mxu0 %v2107
    %v3272 = vpop.f32.mrf.mxu0
    %v3273 = vadd.f32 %v592, %v3272
    %v3274 = vpop.f32.mrf.mxu0
    %v3275 = vpop.f32.mrf.mxu0
    %v3276 = vadd.f32 %v592, %v3275
    %v3277 = vpop.f32.mrf.mxu0
    %3278 = vmatprep.mubr.bf16.mxu0 0
    %3279 = vmatmul.mubr.bf16.gmra.mxu0 %v2110
    %v3280 = vpop.f32.mrf.mxu0
    %v3281 = vadd.f32 %v592, %v3280
    %v3282 = vpop.f32.mrf.mxu0
    %v3283 = vpop.f32.mrf.mxu0
    %v3284 = vadd.f32 %v592, %v3283
    %v3285 = vpop.f32.mrf.mxu0
    %3286 = vmatprep.mubr.bf16.mxu0 0
    %3287 = vmatmul.mubr.bf16.gmra.mxu0 %v2113
    %v3288 = vpop.f32.mrf.mxu0
    %v3289 = vadd.f32 %v592, %v3288
    %v3290 = vpop.f32.mrf.mxu0
    %v3291 = vpop.f32.mrf.mxu0
    %v3292 = vadd.f32 %v592, %v3291
    %v3293 = vpop.f32.mrf.mxu0
    %3294 = vmatprep.mubr.bf16.mxu0 0
    %3295 = vmatmul.mubr.bf16.gmra.mxu0 %v2116
    %v3296 = vpop.f32.mrf.mxu0
    %v3297 = vadd.f32 %v592, %v3296
    %v3298 = vpop.f32.mrf.mxu0
    %v3299 = vpop.f32.mrf.mxu0
    %v3300 = vadd.f32 %v592, %v3299
    %v3301 = vpop.f32.mrf.mxu0
    %3302 = vmatprep.mubr.bf16.mxu0 0
    %3303 = vmatmul.mubr.bf16.gmra.mxu0 %v2119
    %v3304 = vpop.f32.mrf.mxu0
    %v3305 = vadd.f32 %v592, %v3304
    %v3306 = vpop.f32.mrf.mxu0
    %v3307 = vpop.f32.mrf.mxu0
    %v3308 = vadd.f32 %v592, %v3307
    %v3309 = vpop.f32.mrf.mxu0
    %3310 = vmatprep.mubr.bf16.mxu0 0
    %3311 = vmatmul.mubr.bf16.gmra.mxu0 %v2122
    %v3312 = vpop.f32.mrf.mxu0
    %v3313 = vadd.f32 %v592, %v3312
    %v3314 = vpop.f32.mrf.mxu0
    %v3315 = vpop.f32.mrf.mxu0
    %v3316 = vadd.f32 %v592, %v3315
    %v3317 = vpop.f32.mrf.mxu0
    %3318 = vmatprep.mubr.bf16.mxu0 0
    %3319 = vmatmul.mubr.bf16.gmra.mxu0 %v2125
    %v3320 = vpop.f32.mrf.mxu0
    %v3321 = vadd.f32 %v592, %v3320
    %v3322 = vpop.f32.mrf.mxu0
    %v3323 = vpop.f32.mrf.mxu0
    %v3324 = vadd.f32 %v592, %v3323
    %v3325 = vpop.f32.mrf.mxu0
    %3326 = vmatprep.mubr.bf16.mxu0 0
    %3327 = vmatmul.mubr.bf16.gmra.mxu0 %v2128
    %v3328 = vpop.f32.mrf.mxu0
    %v3329 = vadd.f32 %v592, %v3328
    %v3330 = vpop.f32.mrf.mxu0
    %v3331 = vpop.f32.mrf.mxu0
    %v3332 = vadd.f32 %v592, %v3331
    %v3333 = vpop.f32.mrf.mxu0
    %3334 = vmatprep.mubr.bf16.mxu0 0
    %3335 = vmatmul.mubr.bf16.gmra.mxu0 %v2131
    %v3336 = vpop.f32.mrf.mxu0
    %v3337 = vadd.f32 %v592, %v3336
    %v3338 = vpop.f32.mrf.mxu0
    %v3339 = vpop.f32.mrf.mxu0
    %v3340 = vadd.f32 %v592, %v3339
    %v3341 = vpop.f32.mrf.mxu0
    %3342 = vmatprep.mubr.bf16.mxu0 0
    %3343 = vmatmul.mubr.bf16.gmra.mxu0 %v2134
    %v3344 = vpop.f32.mrf.mxu0
    %v3345 = vadd.f32 %v592, %v3344
    %v3346 = vpop.f32.mrf.mxu0
    %v3347 = vpop.f32.mrf.mxu0
    %v3348 = vadd.f32 %v592, %v3347
    %v3349 = vpop.f32.mrf.mxu0
    %3350 = vmatprep.mubr.bf16.mxu0 0
    %3351 = vmatmul.mubr.bf16.gmra.mxu0 %v2137
    %v3352 = vpop.f32.mrf.mxu0
    %v3353 = vadd.f32 %v592, %v3352
    %v3354 = vpop.f32.mrf.mxu0
    %v3355 = vpop.f32.mrf.mxu0
    %v3356 = vadd.f32 %v592, %v3355
    %v3357 = vpop.f32.mrf.mxu0
    %3358 = vmatprep.mubr.bf16.mxu0 0
    %3359 = vmatmul.mubr.bf16.gmra.mxu0 %v2140
    %v3360 = vpop.f32.mrf.mxu0
    %v3361 = vadd.f32 %v592, %v3360
    %v3362 = vpop.f32.mrf.mxu0
    %v3363 = vpop.f32.mrf.mxu0
    %v3364 = vadd.f32 %v592, %v3363
    %v3365 = vpop.f32.mrf.mxu0
    %3366 = vmatprep.mubr.bf16.mxu0 0
    %3367 = vmatmul.mubr.bf16.gmra.mxu0 %v2143
    %v3368 = vpop.f32.mrf.mxu0
    %v3369 = vadd.f32 %v592, %v3368
    %v3370 = vpop.f32.mrf.mxu0
    %v3371 = vpop.f32.mrf.mxu0
    %v3372 = vadd.f32 %v592, %v3371
    %v3373 = vpop.f32.mrf.mxu0
    %3374 = vmatprep.mubr.bf16.mxu0 0
    %3375 = vmatmul.mubr.bf16.gmra.mxu0 %v2146
    %v3376 = vpop.f32.mrf.mxu0
    %v3377 = vadd.f32 %v592, %v3376
    %v3378 = vpop.f32.mrf.mxu0
    %v3379 = vpop.f32.mrf.mxu0
    %v3380 = vadd.f32 %v592, %v3379
    %v3381 = vpop.f32.mrf.mxu0
    %3382 = vmatprep.mubr.bf16.mxu0 0
    %3383 = vmatmul.mubr.bf16.gmra.mxu0 %v2149
    %v3384 = vpop.f32.mrf.mxu0
    %v3385 = vadd.f32 %v592, %v3384
    %v3386 = vpop.f32.mrf.mxu0
    %v3387 = vpop.f32.mrf.mxu0
    %v3388 = vadd.f32 %v592, %v3387
    %v3389 = vpop.f32.mrf.mxu0
    %3390 = vmatprep.mubr.bf16.mxu0 0
    %3391 = vmatmul.mubr.bf16.gmra.mxu0 %v2152
    %v3392 = vpop.f32.mrf.mxu0
    %v3393 = vadd.f32 %v592, %v3392
    %v3394 = vpop.f32.mrf.mxu0
    %v3395 = vpop.f32.mrf.mxu0
    %v3396 = vadd.f32 %v592, %v3395
    %v3397 = vpop.f32.mrf.mxu0
    %3398 = vmatprep.mubr.bf16.mxu0 0
    %3399 = vmatmul.mubr.bf16.gmra.mxu0 %v2155
    %v3400 = vpop.f32.mrf.mxu0
    %v3401 = vadd.f32 %v592, %v3400
    %v3402 = vpop.f32.mrf.mxu0
    %v3403 = vpop.f32.mrf.mxu0
    %v3404 = vadd.f32 %v592, %v3403
    %v3405 = vpop.f32.mrf.mxu0
    %3406 = vmatprep.mubr.bf16.mxu0 0
    %3407 = vmatmul.mubr.bf16.gmra.mxu0 %v2158
    %v3408 = vpop.f32.mrf.mxu0
    %v3409 = vadd.f32 %v592, %v3408
    %v3410 = vpop.f32.mrf.mxu0
    %v3411 = vpop.f32.mrf.mxu0
    %v3412 = vadd.f32 %v592, %v3411
    %v3413 = vpop.f32.mrf.mxu0
    %3414 = vmatprep.mubr.bf16.mxu0 0
    %3415 = vmatmul.mubr.bf16.gmra.mxu0 %v2161
    %v3416 = vpop.f32.mrf.mxu0
    %v3417 = vadd.f32 %v592, %v3416
    %v3418 = vpop.f32.mrf.mxu0
    %v3419 = vpop.f32.mrf.mxu0
    %v3420 = vadd.f32 %v592, %v3419
    %v3421 = vpop.f32.mrf.mxu0
    %3422 = vmatprep.mubr.bf16.mxu0 0
    %3423 = vmatmul.mubr.bf16.gmra.mxu0 %v2164
    %v3424 = vpop.f32.mrf.mxu0
    %v3425 = vadd.f32 %v592, %v3424
    %v3426 = vpop.f32.mrf.mxu0
    %v3427 = vpop.f32.mrf.mxu0
    %v3428 = vadd.f32 %v592, %v3427
    %v3429 = vpop.f32.mrf.mxu0
    %3430 = vmatprep.mubr.bf16.mxu0 0
    %3431 = vmatmul.mubr.bf16.gmra.mxu0 %v2167
    %v3432 = vpop.f32.mrf.mxu0
    %v3433 = vadd.f32 %v592, %v3432
    %v3434 = vpop.f32.mrf.mxu0
    %v3435 = vpop.f32.mrf.mxu0
    %v3436 = vadd.f32 %v592, %v3435
    %v3437 = vpop.f32.mrf.mxu0
    %3438 = vmatprep.mubr.bf16.mxu0 0
    %3439 = vmatmul.mubr.bf16.gmra.mxu0 %v2170
    %v3440 = vpop.f32.mrf.mxu0
    %v3441 = vadd.f32 %v592, %v3440
    %v3442 = vpop.f32.mrf.mxu0
    %v3443 = vpop.f32.mrf.mxu0
    %v3444 = vadd.f32 %v592, %v3443
    %v3445 = vpop.f32.mrf.mxu0
    %3446 = vmatprep.mubr.bf16.mxu0 0
    %3447 = vmatmul.mubr.bf16.gmra.mxu0 %v2173
    %v3448 = vpop.f32.mrf.mxu0
    %v3449 = vadd.f32 %v592, %v3448
    %v3450 = vpop.f32.mrf.mxu0
    %v3451 = vpop.f32.mrf.mxu0
    %v3452 = vadd.f32 %v592, %v3451
    %v3453 = vpop.f32.mrf.mxu0
    %3454 = vmatprep.mubr.bf16.mxu0 0
    %3455 = vmatmul.mubr.bf16.gmra.mxu0 %v2176
    %v3456 = vpop.f32.mrf.mxu0
    %v3457 = vadd.f32 %v592, %v3456
    %v3458 = vpop.f32.mrf.mxu0
    %v3459 = vpop.f32.mrf.mxu0
    %v3460 = vadd.f32 %v592, %v3459
    %v3461 = vpop.f32.mrf.mxu0
    %3462 = vmatprep.mubr.bf16.mxu0 0
    %3463 = vmatmul.mubr.bf16.gmra.mxu0 %v2179
    %v3464 = vpop.f32.mrf.mxu0
    %v3465 = vadd.f32 %v592, %v3464
    %v3466 = vpop.f32.mrf.mxu0
    %v3467 = vpop.f32.mrf.mxu0
    %v3468 = vadd.f32 %v592, %v3467
    %v3469 = vpop.f32.mrf.mxu0
    %3470 = vmatprep.mubr.bf16.mxu0 0
    %3471 = vmatmul.mubr.bf16.gmra.mxu0 %v2182
    %v3472 = vpop.f32.mrf.mxu0
    %v3473 = vadd.f32 %v592, %v3472
    %v3474 = vpop.f32.mrf.mxu0
    %v3475 = vpop.f32.mrf.mxu0
    %v3476 = vadd.f32 %v592, %v3475
    %v3477 = vpop.f32.mrf.mxu0
    %3478 = vmatprep.mubr.bf16.mxu0 0
    %3479 = vmatmul.mubr.bf16.gmra.mxu0 %v2185
    %v3480 = vpop.f32.mrf.mxu0
    %v3481 = vadd.f32 %v592, %v3480
    %v3482 = vpop.f32.mrf.mxu0
    %v3483 = vpop.f32.mrf.mxu0
    %v3484 = vadd.f32 %v592, %v3483
    %v3485 = vpop.f32.mrf.mxu0
    %3486 = vmatprep.mubr.bf16.mxu0 0
    %3487 = vmatmul.mubr.bf16.gmra.mxu0 %v2188
    %v3488 = vpop.f32.mrf.mxu0
    %v3489 = vadd.f32 %v592, %v3488
    %v3490 = vpop.f32.mrf.mxu0
    %v3491 = vpop.f32.mrf.mxu0
    %v3492 = vadd.f32 %v592, %v3491
    %v3493 = vpop.f32.mrf.mxu0
    %3494 = vmatprep.mubr.bf16.mxu0 0
    %3495 = vmatmul.mubr.bf16.gmra.mxu0 %v2191
    %v3496 = vpop.f32.mrf.mxu0
    %v3497 = vadd.f32 %v592, %v3496
    %v3498 = vpop.f32.mrf.mxu0
    %v3499 = vpop.f32.mrf.mxu0
    %v3500 = vadd.f32 %v592, %v3499
    %v3501 = vpop.f32.mrf.mxu0
    %3502 = vmatprep.mubr.bf16.mxu0 0
    %3503 = vmatmul.mubr.bf16.gmra.mxu0 %v2194
    %v3504 = vpop.f32.mrf.mxu0
    %v3505 = vadd.f32 %v592, %v3504
    %v3506 = vpop.f32.mrf.mxu0
    %v3507 = vpop.f32.mrf.mxu0
    %v3508 = vadd.f32 %v592, %v3507
    %v3509 = vpop.f32.mrf.mxu0
    %3510 = vmatprep.mubr.bf16.mxu0 0
    %3511 = vmatmul.mubr.bf16.gmra.mxu0 %v2197
    %v3512 = vpop.f32.mrf.mxu0
    %v3513 = vadd.f32 %v592, %v3512
    %v3514 = vpop.f32.mrf.mxu0
    %v3515 = vpop.f32.mrf.mxu0
    %v3516 = vadd.f32 %v592, %v3515
    %v3517 = vpop.f32.mrf.mxu0
    %3518 = vmatprep.mubr.bf16.mxu0 0
    %3519 = vmatmul.mubr.bf16.gmra.mxu0 %v2200
    %v3520 = vpop.f32.mrf.mxu0
    %v3521 = vadd.f32 %v592, %v3520
    %v3522 = vpop.f32.mrf.mxu0
    %v3523 = vpop.f32.mrf.mxu0
    %v3524 = vadd.f32 %v592, %v3523
    %v3525 = vpop.f32.mrf.mxu0
    %3526 = vmatprep.mubr.bf16.mxu0 0
    %3527 = vmatmul.mubr.bf16.gmra.mxu0 %v2203
    %v3528 = vpop.f32.mrf.mxu0
    %v3529 = vadd.f32 %v592, %v3528
    %v3530 = vpop.f32.mrf.mxu0
    %v3531 = vpop.f32.mrf.mxu0
    %v3532 = vadd.f32 %v592, %v3531
    %v3533 = vpop.f32.mrf.mxu0
    %3534 = vmatprep.mubr.bf16.mxu0 0
    %3535 = vmatmul.mubr.bf16.gmra.mxu0 %v2206
    %v3536 = vpop.f32.mrf.mxu0
    %v3537 = vadd.f32 %v592, %v3536
    %v3538 = vpop.f32.mrf.mxu0
    %v3539 = vpop.f32.mrf.mxu0
    %v3540 = vadd.f32 %v592, %v3539
    %v3541 = vpop.f32.mrf.mxu0
    %3542 = vmatprep.mubr.bf16.mxu0 0
    %3543 = vmatmul.mubr.bf16.gmra.mxu0 %v2209
    %v3544 = vpop.f32.mrf.mxu0
    %v3545 = vadd.f32 %v592, %v3544
    %v3546 = vpop.f32.mrf.mxu0
    %v3547 = vpop.f32.mrf.mxu0
    %v3548 = vadd.f32 %v592, %v3547
    %v3549 = vpop.f32.mrf.mxu0
    %3550 = vmatprep.mubr.bf16.mxu0 0
    %3551 = vmatmul.mubr.bf16.gmra.mxu0 %v2212
    %v3552 = vpop.f32.mrf.mxu0
    %v3553 = vadd.f32 %v592, %v3552
    %v3554 = vpop.f32.mrf.mxu0
    %v3555 = vpop.f32.mrf.mxu0
    %v3556 = vadd.f32 %v592, %v3555
    %v3557 = vpop.f32.mrf.mxu0
    %3558 = vmatprep.mubr.bf16.mxu0 0
    %3559 = vmatmul.mubr.bf16.gmra.mxu0 %v2215
    %v3560 = vpop.f32.mrf.mxu0
    %v3561 = vadd.f32 %v592, %v3560
    %v3562 = vpop.f32.mrf.mxu0
    %v3563 = vpop.f32.mrf.mxu0
    %v3564 = vadd.f32 %v592, %v3563
    %v3565 = vpop.f32.mrf.mxu0
    %3566 = vmatprep.mubr.bf16.mxu0 0
    %3567 = vmatmul.mubr.bf16.gmra.mxu0 %v2218
    %v3568 = vpop.f32.mrf.mxu0
    %v3569 = vadd.f32 %v592, %v3568
    %v3570 = vpop.f32.mrf.mxu0
    %v3571 = vpop.f32.mrf.mxu0
    %v3572 = vadd.f32 %v592, %v3571
    %v3573 = vpop.f32.mrf.mxu0
    %3574 = vmatprep.mubr.bf16.mxu0 0
    %3575 = vmatmul.mubr.bf16.gmra.mxu0 %v2221
    %v3576 = vpop.f32.mrf.mxu0
    %v3577 = vadd.f32 %v592, %v3576
    %v3578 = vpop.f32.mrf.mxu0
    %v3579 = vpop.f32.mrf.mxu0
    %v3580 = vadd.f32 %v592, %v3579
    %v3581 = vpop.f32.mrf.mxu0
    %3582 = vmatprep.mubr.bf16.mxu0 0
    %3583 = vmatmul.mubr.bf16.gmra.mxu0 %v2224
    %v3584 = vpop.f32.mrf.mxu0
    %v3585 = vadd.f32 %v592, %v3584
    %v3586 = vpop.f32.mrf.mxu0
    %v3587 = vpop.f32.mrf.mxu0
    %v3588 = vadd.f32 %v592, %v3587
    %v3589 = vpop.f32.mrf.mxu0
    %3590 = vmatprep.mubr.bf16.mxu0 0
    %3591 = vmatmul.mubr.bf16.gmra.mxu0 %v2227
    %v3592 = vpop.f32.mrf.mxu0
    %v3593 = vadd.f32 %v592, %v3592
    %v3594 = vpop.f32.mrf.mxu0
    %v3595 = vpop.f32.mrf.mxu0
    %v3596 = vadd.f32 %v592, %v3595
    %v3597 = vpop.f32.mrf.mxu0
    %3598 = vmatprep.mubr.bf16.mxu0 0
    %3599 = vmatmul.mubr.bf16.gmra.mxu0 %v2230
    %v3600 = vpop.f32.mrf.mxu0
    %v3601 = vadd.f32 %v592, %v3600
    %v3602 = vpop.f32.mrf.mxu0
    %v3603 = vpop.f32.mrf.mxu0
    %v3604 = vadd.f32 %v592, %v3603
    %v3605 = vpop.f32.mrf.mxu0
    %3606 = vmatprep.mubr.bf16.mxu0 0
    %3607 = vmatmul.mubr.bf16.gmra.mxu0 %v2233
    %v3608 = vpop.f32.mrf.mxu0
    %v3609 = vadd.f32 %v592, %v3608
    %v3610 = vpop.f32.mrf.mxu0
    %v3611 = vpop.f32.mrf.mxu0
    %v3612 = vadd.f32 %v592, %v3611
    %v3613 = vpop.f32.mrf.mxu0
    %3614 = vmatprep.mubr.bf16.mxu0 0
    %3615 = vmatmul.mubr.bf16.gmra.mxu0 %v2236
    %v3616 = vpop.f32.mrf.mxu0
    %v3617 = vadd.f32 %v592, %v3616
    %v3618 = vpop.f32.mrf.mxu0
    %v3619 = vpop.f32.mrf.mxu0
    %v3620 = vadd.f32 %v592, %v3619
    %v3621 = vpop.f32.mrf.mxu0
    %3622 = vmatprep.mubr.bf16.mxu0 0
    %3623 = vmatmul.mubr.bf16.gmra.mxu0 %v2239
    %v3624 = vpop.f32.mrf.mxu0
    %v3625 = vadd.f32 %v592, %v3624
    %v3626 = vpop.f32.mrf.mxu0
    %v3627 = vpop.f32.mrf.mxu0
    %v3628 = vadd.f32 %v592, %v3627
    %v3629 = vpop.f32.mrf.mxu0
    %3630 = vmatprep.mubr.bf16.mxu0 0
    %3631 = vmatmul.mubr.bf16.gmra.mxu0 %v2242
    %v3632 = vpop.f32.mrf.mxu0
    %v3633 = vadd.f32 %v592, %v3632
    %v3634 = vpop.f32.mrf.mxu0
    %v3635 = vpop.f32.mrf.mxu0
    %v3636 = vadd.f32 %v592, %v3635
    %v3637 = vpop.f32.mrf.mxu0
    %3638 = vmatprep.mubr.bf16.mxu0 0
    %3639 = vmatmul.mubr.bf16.gmra.mxu0 %v2245
    %v3640 = vpop.f32.mrf.mxu0
    %v3641 = vadd.f32 %v592, %v3640
    %v3642 = vpop.f32.mrf.mxu0
    %v3643 = vpop.f32.mrf.mxu0
    %v3644 = vadd.f32 %v592, %v3643
    %v3645 = vpop.f32.mrf.mxu0
    %3646 = vmatprep.mubr.bf16.mxu0 0
    %3647 = vmatmul.mubr.bf16.gmra.mxu0 %v2248
    %v3648 = vpop.f32.mrf.mxu0
    %v3649 = vadd.f32 %v592, %v3648
    %v3650 = vpop.f32.mrf.mxu0
    %v3651 = vpop.f32.mrf.mxu0
    %v3652 = vadd.f32 %v592, %v3651
    %v3653 = vpop.f32.mrf.mxu0
    %3654 = vmatprep.mubr.bf16.mxu0 0
    %3655 = vmatmul.mubr.bf16.gmra.mxu0 %v2251
    %v3656 = vpop.f32.mrf.mxu0
    %v3657 = vadd.f32 %v592, %v3656
    %v3658 = vpop.f32.mrf.mxu0
    %v3659 = vpop.f32.mrf.mxu0
    %v3660 = vadd.f32 %v592, %v3659
    %v3661 = vpop.f32.mrf.mxu0
    %3662 = vmatprep.mubr.bf16.mxu0 0
    %3663 = vmatmul.mubr.bf16.gmra.mxu0 %v2254
    %v3664 = vpop.f32.mrf.mxu0
    %v3665 = vadd.f32 %v592, %v3664
    %v3666 = vpop.f32.mrf.mxu0
    %v3667 = vpop.f32.mrf.mxu0
    %v3668 = vadd.f32 %v592, %v3667
    %v3669 = vpop.f32.mrf.mxu0
    %3670 = vmatprep.mubr.bf16.mxu0 0
    %3671 = vmatmul.mubr.bf16.gmra.mxu0 %v2257
    %v3672 = vpop.f32.mrf.mxu0
    %v3673 = vadd.f32 %v592, %v3672
    %v3674 = vpop.f32.mrf.mxu0
    %v3675 = vpop.f32.mrf.mxu0
    %v3676 = vadd.f32 %v592, %v3675
    %v3677 = vpop.f32.mrf.mxu0
    %3678 = vmatprep.mubr.bf16.mxu0 0
    %3679 = vmatmul.mubr.bf16.gmra.mxu0 %v2260
    %v3680 = vpop.f32.mrf.mxu0
    %v3681 = vadd.f32 %v592, %v3680
    %v3682 = vpop.f32.mrf.mxu0
    %v3683 = vpop.f32.mrf.mxu0
    %v3684 = vadd.f32 %v592, %v3683
    %v3685 = vpop.f32.mrf.mxu0
    %3686 = vmatprep.mubr.bf16.mxu0 0
    %3687 = vmatmul.mubr.bf16.gmra.mxu0 %v2263
    %v3688 = vpop.f32.mrf.mxu0
    %v3689 = vadd.f32 %v592, %v3688
    %v3690 = vpop.f32.mrf.mxu0
    %v3691 = vpop.f32.mrf.mxu0
    %v3692 = vadd.f32 %v592, %v3691
    %v3693 = vpop.f32.mrf.mxu0
    %3694 = vmatprep.mubr.bf16.mxu0 0
    %3695 = vmatmul.mubr.bf16.gmra.mxu0 %v2266
    %v3696 = vpop.f32.mrf.mxu0
    %v3697 = vadd.f32 %v592, %v3696
    %v3698 = vpop.f32.mrf.mxu0
    %v3699 = vpop.f32.mrf.mxu0
    %v3700 = vadd.f32 %v592, %v3699
    %v3701 = vpop.f32.mrf.mxu0
    %3702 = vmatprep.mubr.bf16.mxu0 0
    %3703 = vmatmul.mubr.bf16.gmra.mxu0 %v2269
    %v3704 = vpop.f32.mrf.mxu0
    %v3705 = vadd.f32 %v592, %v3704
    %v3706 = vpop.f32.mrf.mxu0
    %v3707 = vpop.f32.mrf.mxu0
    %v3708 = vadd.f32 %v592, %v3707
    %v3709 = vpop.f32.mrf.mxu0
    %3710 = vmatprep.mubr.bf16.mxu0 0
    %3711 = vmatmul.mubr.bf16.gmra.mxu0 %v2272
    %v3712 = vpop.f32.mrf.mxu0
    %v3713 = vadd.f32 %v592, %v3712
    %v3714 = vpop.f32.mrf.mxu0
    %v3715 = vpop.f32.mrf.mxu0
    %v3716 = vadd.f32 %v592, %v3715
    %v3717 = vpop.f32.mrf.mxu0
    %3718 = vmatprep.mubr.bf16.mxu0 0
    %3719 = vmatmul.mubr.bf16.gmra.mxu0 %v2275
    %v3720 = vpop.f32.mrf.mxu0
    %v3721 = vadd.f32 %v592, %v3720
    %v3722 = vpop.f32.mrf.mxu0
    %v3723 = vpop.f32.mrf.mxu0
    %v3724 = vadd.f32 %v592, %v3723
    %v3725 = vpop.f32.mrf.mxu0
    %3726 = vmatprep.mubr.bf16.mxu0 0
    %3727 = vmatmul.mubr.bf16.gmra.mxu0 %v2278
    %v3728 = vpop.f32.mrf.mxu0
    %v3729 = vadd.f32 %v592, %v3728
    %v3730 = vpop.f32.mrf.mxu0
    %v3731 = vpop.f32.mrf.mxu0
    %v3732 = vadd.f32 %v592, %v3731
    %v3733 = vpop.f32.mrf.mxu0
    %3734 = vmatprep.mubr.bf16.mxu0 0
    %3735 = vmatmul.mubr.bf16.gmra.mxu0 %v2281
    %v3736 = vpop.f32.mrf.mxu0
    %v3737 = vadd.f32 %v592, %v3736
    %v3738 = vpop.f32.mrf.mxu0
    %v3739 = vpop.f32.mrf.mxu0
    %v3740 = vadd.f32 %v592, %v3739
    %v3741 = vpop.f32.mrf.mxu0
    %3742 = vmatprep.mubr.bf16.mxu0 0
    %3743 = vmatmul.mubr.bf16.gmra.mxu0 %v2284
    %v3744 = vpop.f32.mrf.mxu0
    %v3745 = vadd.f32 %v592, %v3744
    %v3746 = vpop.f32.mrf.mxu0
    %v3747 = vpop.f32.mrf.mxu0
    %v3748 = vadd.f32 %v592, %v3747
    %v3749 = vpop.f32.mrf.mxu0
    %3750 = vmatprep.mubr.bf16.mxu0 0
    %3751 = vmatmul.mubr.bf16.gmra.mxu0 %v2287
    %v3752 = vpop.f32.mrf.mxu0
    %v3753 = vadd.f32 %v592, %v3752
    %v3754 = vpop.f32.mrf.mxu0
    %v3755 = vpop.f32.mrf.mxu0
    %v3756 = vadd.f32 %v592, %v3755
    %v3757 = vpop.f32.mrf.mxu0
    %3758 = vmatprep.mubr.bf16.mxu0 0
    %3759 = vmatmul.mubr.bf16.gmra.mxu0 %v2290
    %v3760 = vpop.f32.mrf.mxu0
    %v3761 = vadd.f32 %v592, %v3760
    %v3762 = vpop.f32.mrf.mxu0
    %v3763 = vpop.f32.mrf.mxu0
    %v3764 = vadd.f32 %v592, %v3763
    %v3765 = vpop.f32.mrf.mxu0
    %3766 = vmatprep.mubr.bf16.mxu0 0
    %3767 = vmatmul.mubr.bf16.gmra.mxu0 %v2293
    %v3768 = vpop.f32.mrf.mxu0
    %v3769 = vadd.f32 %v592, %v3768
    %v3770 = vpop.f32.mrf.mxu0
    %v3771 = vpop.f32.mrf.mxu0
    %v3772 = vadd.f32 %v592, %v3771
    %v3773 = vpop.f32.mrf.mxu0
    %3774 = vmatprep.mubr.bf16.mxu0 0
    %3775 = vmatmul.mubr.bf16.gmra.mxu0 %v2296
    %v3776 = vpop.f32.mrf.mxu0
    %v3777 = vadd.f32 %v592, %v3776
    %v3778 = vpop.f32.mrf.mxu0
    %v3779 = vpop.f32.mrf.mxu0
    %v3780 = vadd.f32 %v592, %v3779
    %v3781 = vpop.f32.mrf.mxu0
    %3782 = vmatprep.mubr.bf16.mxu0 0
    %3783 = vmatmul.mubr.bf16.gmra.mxu0 %v2299
    %v3784 = vpop.f32.mrf.mxu0
    %v3785 = vadd.f32 %v592, %v3784
    %v3786 = vpop.f32.mrf.mxu0
    %v3787 = vpop.f32.mrf.mxu0
    %v3788 = vadd.f32 %v592, %v3787
    %v3789 = vpop.f32.mrf.mxu0
    %3790 = vmatprep.mubr.bf16.mxu0 0
    %3791 = vmatmul.mubr.bf16.gmra.mxu0 %v2302
    %v3792 = vpop.f32.mrf.mxu0
    %v3793 = vadd.f32 %v592, %v3792
    %v3794 = vpop.f32.mrf.mxu0
    %v3795 = vpop.f32.mrf.mxu0
    %v3796 = vadd.f32 %v592, %v3795
    %v3797 = vpop.f32.mrf.mxu0
    %3798 = vmatprep.mubr.bf16.mxu0 0
    %3799 = vmatmul.mubr.bf16.gmra.mxu0 %v2305
    %v3800 = vpop.f32.mrf.mxu0
    %v3801 = vadd.f32 %v592, %v3800
    %v3802 = vpop.f32.mrf.mxu0
    %v3803 = vpop.f32.mrf.mxu0
    %v3804 = vadd.f32 %v592, %v3803
    %v3805 = vpop.f32.mrf.mxu0
    %3806 = vmatprep.mubr.bf16.mxu0 0
    %3807 = vmatmul.mubr.bf16.gmra.mxu0 %v2308
    %v3808 = vpop.f32.mrf.mxu0
    %v3809 = vadd.f32 %v592, %v3808
    %v3810 = vpop.f32.mrf.mxu0
    %v3811 = vpop.f32.mrf.mxu0
    %v3812 = vadd.f32 %v592, %v3811
    %v3813 = vpop.f32.mrf.mxu0
    %3814 = vmatprep.mubr.bf16.mxu0 0
    %3815 = vmatmul.mubr.bf16.gmra.mxu0 %v2311
    %v3816 = vpop.f32.mrf.mxu0
    %v3817 = vadd.f32 %v592, %v3816
    %v3818 = vpop.f32.mrf.mxu0
    %v3819 = vpop.f32.mrf.mxu0
    %v3820 = vadd.f32 %v592, %v3819
    %v3821 = vpop.f32.mrf.mxu0
    %3822 = vmatprep.mubr.bf16.mxu0 0
    %3823 = vmatmul.mubr.bf16.gmra.mxu0 %v2314
    %v3824 = vpop.f32.mrf.mxu0
    %v3825 = vadd.f32 %v592, %v3824
    %v3826 = vpop.f32.mrf.mxu0
    %v3827 = vpop.f32.mrf.mxu0
    %v3828 = vadd.f32 %v592, %v3827
    %v3829 = vpop.f32.mrf.mxu0
    %3830 = vmatprep.mubr.bf16.mxu0 0
    %3831 = vmatmul.mubr.bf16.gmra.mxu0 %v2317
    %v3832 = vpop.f32.mrf.mxu0
    %v3833 = vadd.f32 %v592, %v3832
    %v3834 = vpop.f32.mrf.mxu0
    %v3835 = vpop.f32.mrf.mxu0
    %v3836 = vadd.f32 %v592, %v3835
    %v3837 = vpop.f32.mrf.mxu0
    %3838 = vmatprep.mubr.bf16.mxu0 0
    %3839 = vmatmul.mubr.bf16.gmra.mxu0 %v2320
    %v3840 = vpop.f32.mrf.mxu0
    %v3841 = vadd.f32 %v592, %v3840
    %v3842 = vpop.f32.mrf.mxu0
    %v3843 = vpop.f32.mrf.mxu0
    %v3844 = vadd.f32 %v592, %v3843
    %v3845 = vpop.f32.mrf.mxu0
    %3846 = vmatprep.mubr.bf16.mxu0 0
    %3847 = vmatmul.mubr.bf16.gmra.mxu0 %v2323
    %v3848 = vpop.f32.mrf.mxu0
    %v3849 = vadd.f32 %v592, %v3848
    %v3850 = vpop.f32.mrf.mxu0
    %v3851 = vpop.f32.mrf.mxu0
    %v3852 = vadd.f32 %v592, %v3851
    %v3853 = vpop.f32.mrf.mxu0
    %3854 = vmatprep.mubr.bf16.mxu0 0
    %3855 = vmatmul.mubr.bf16.gmra.mxu0 %v2326
    %v3856 = vpop.f32.mrf.mxu0
    %v3857 = vadd.f32 %v592, %v3856
    %v3858 = vpop.f32.mrf.mxu0
    %v3859 = vpop.f32.mrf.mxu0
    %v3860 = vadd.f32 %v592, %v3859
    %v3861 = vpop.f32.mrf.mxu0
    %3862 = vmatprep.mubr.bf16.mxu0 0
    %3863 = vmatmul.mubr.bf16.gmra.mxu0 %v2329
    %v3864 = vpop.f32.mrf.mxu0
    %v3865 = vadd.f32 %v592, %v3864
    %v3866 = vpop.f32.mrf.mxu0
    %v3867 = vpop.f32.mrf.mxu0
    %v3868 = vadd.f32 %v592, %v3867
    %v3869 = vpop.f32.mrf.mxu0
    %3870 = vmatprep.mubr.bf16.mxu0 0
    %3871 = vmatmul.mubr.bf16.gmra.mxu0 %v2332
    %v3872 = vpop.f32.mrf.mxu0
    %v3873 = vadd.f32 %v592, %v3872
    %v3874 = vpop.f32.mrf.mxu0
    %v3875 = vpop.f32.mrf.mxu0
    %v3876 = vadd.f32 %v592, %v3875
    %v3877 = vpop.f32.mrf.mxu0
    %3878 = vmatprep.mubr.bf16.mxu0 0
    %3879 = vmatmul.mubr.bf16.gmra.mxu0 %v2335
    %v3880 = vpop.f32.mrf.mxu0
    %v3881 = vadd.f32 %v592, %v3880
    %v3882 = vpop.f32.mrf.mxu0
    %v3883 = vpop.f32.mrf.mxu0
    %v3884 = vadd.f32 %v592, %v3883
    %v3885 = vpop.f32.mrf.mxu0
    %3886 = vmatprep.mubr.bf16.mxu0 0
    %3887 = vmatmul.mubr.bf16.gmra.mxu0 %v2338
    %v3888 = vpop.f32.mrf.mxu0
    %v3889 = vadd.f32 %v592, %v3888
    %v3890 = vpop.f32.mrf.mxu0
    %v3891 = vpop.f32.mrf.mxu0
    %v3892 = vadd.f32 %v592, %v3891
    %v3893 = vpop.f32.mrf.mxu0
    %3894 = vmatprep.mubr.bf16.mxu0 0
    %3895 = vmatmul.mubr.bf16.gmra.mxu0 %v2341
    %v3896 = vpop.f32.mrf.mxu0
    %v3897 = vadd.f32 %v592, %v3896
    %v3898 = vpop.f32.mrf.mxu0
    %v3899 = vpop.f32.mrf.mxu0
    %v3900 = vadd.f32 %v592, %v3899
    %v3901 = vpop.f32.mrf.mxu0
    %3902 = vmatprep.mubr.bf16.mxu0 0
    %3903 = vmatmul.mubr.bf16.gmra.mxu0 %v2344
    %v3904 = vpop.f32.mrf.mxu0
    %v3905 = vadd.f32 %v592, %v3904
    %v3906 = vpop.f32.mrf.mxu0
    %v3907 = vpop.f32.mrf.mxu0
    %v3908 = vadd.f32 %v592, %v3907
    %v3909 = vpop.f32.mrf.mxu0
    %3910 = vmatprep.mubr.bf16.mxu0 0
    %3911 = vmatmul.mubr.bf16.gmra.mxu0 %v2347
    %v3912 = vpop.f32.mrf.mxu0
    %v3913 = vadd.f32 %v592, %v3912
    %v3914 = vpop.f32.mrf.mxu0
    %v3915 = vpop.f32.mrf.mxu0
    %v3916 = vadd.f32 %v592, %v3915
    %v3917 = vpop.f32.mrf.mxu0
    %3918 = vmatprep.mubr.bf16.mxu0 0
    %3919 = vmatmul.mubr.bf16.gmra.mxu0 %v2350
    %v3920 = vpop.f32.mrf.mxu0
    %v3921 = vadd.f32 %v592, %v3920
    %v3922 = vpop.f32.mrf.mxu0
    %v3923 = vpop.f32.mrf.mxu0
    %v3924 = vadd.f32 %v592, %v3923
    %v3925 = vpop.f32.mrf.mxu0
    %3926 = vmatprep.mubr.bf16.mxu0 0
    %3927 = vmatmul.mubr.bf16.gmra.mxu0 %v2353
    %v3928 = vpop.f32.mrf.mxu0
    %v3929 = vadd.f32 %v592, %v3928
    %v3930 = vpop.f32.mrf.mxu0
    %v3931 = vpop.f32.mrf.mxu0
    %v3932 = vadd.f32 %v592, %v3931
    %v3933 = vpop.f32.mrf.mxu0
    %3934 = vmatprep.mubr.bf16.mxu0 0
    %3935 = vmatmul.mubr.bf16.gmra.mxu0 %v2356
    %v3936 = vpop.f32.mrf.mxu0
    %v3937 = vadd.f32 %v592, %v3936
    %v3938 = vpop.f32.mrf.mxu0
    %v3939 = vpop.f32.mrf.mxu0
    %v3940 = vadd.f32 %v592, %v3939
    %v3941 = vpop.f32.mrf.mxu0
    %3942 = vmatprep.mubr.bf16.mxu0 0
    %3943 = vmatmul.mubr.bf16.gmra.mxu0 %v2359
    %v3944 = vpop.f32.mrf.mxu0
    %v3945 = vadd.f32 %v592, %v3944
    %v3946 = vpop.f32.mrf.mxu0
    %v3947 = vpop.f32.mrf.mxu0
    %v3948 = vadd.f32 %v592, %v3947
    %v3949 = vpop.f32.mrf.mxu0
    %3950 = vmatprep.mubr.bf16.mxu0 0
    %3951 = vmatmul.mubr.bf16.gmra.mxu0 %v2362
    %v3952 = vpop.f32.mrf.mxu0
    %v3953 = vadd.f32 %v592, %v3952
    %v3954 = vpop.f32.mrf.mxu0
    %v3955 = vpop.f32.mrf.mxu0
    %v3956 = vadd.f32 %v592, %v3955
    %v3957 = vpop.f32.mrf.mxu0
    %3958 = vmatprep.mubr.bf16.mxu0 0
    %3959 = vmatmul.mubr.bf16.gmra.mxu0 %v2365
    %v3960 = vpop.f32.mrf.mxu0
    %v3961 = vadd.f32 %v592, %v3960
    %v3962 = vpop.f32.mrf.mxu0
    %v3963 = vpop.f32.mrf.mxu0
    %v3964 = vadd.f32 %v592, %v3963
    %v3965 = vpop.f32.mrf.mxu0
    %3966 = vmatprep.mubr.bf16.mxu0 0
    %3967 = vmatmul.mubr.bf16.gmra.mxu0 %v2368
    %v3968 = vpop.f32.mrf.mxu0
    %v3969 = vadd.f32 %v592, %v3968
    %v3970 = vpop.f32.mrf.mxu0
    %v3971 = vpop.f32.mrf.mxu0
    %v3972 = vadd.f32 %v592, %v3971
    %v3973 = vpop.f32.mrf.mxu0
    %3974 = vmatprep.mubr.bf16.mxu0 0
    %3975 = vmatmul.mubr.bf16.gmra.mxu0 %v2371
    %v3976 = vpop.f32.mrf.mxu0
    %v3977 = vadd.f32 %v592, %v3976
    %v3978 = vpop.f32.mrf.mxu0
    %v3979 = vpop.f32.mrf.mxu0
    %v3980 = vadd.f32 %v592, %v3979
    %v3981 = vpop.f32.mrf.mxu0
    %3982 = vmatprep.mubr.bf16.mxu0 0
    %3983 = vmatmul.mubr.bf16.gmra.mxu0 %v2374
    %v3984 = vpop.f32.mrf.mxu0
    %v3985 = vadd.f32 %v592, %v3984
    %v3986 = vpop.f32.mrf.mxu0
    %v3987 = vpop.f32.mrf.mxu0
    %v3988 = vadd.f32 %v592, %v3987
    %v3989 = vpop.f32.mrf.mxu0
    %3990 = vmatprep.mubr.bf16.mxu0 0
    %3991 = vmatmul.mubr.bf16.gmra.mxu0 %v2377
    %v3992 = vpop.f32.mrf.mxu0
    %v3993 = vadd.f32 %v592, %v3992
    %v3994 = vpop.f32.mrf.mxu0
    %v3995 = vpop.f32.mrf.mxu0
    %v3996 = vadd.f32 %v592, %v3995
    %v3997 = vpop.f32.mrf.mxu0
    %3998 = vmatprep.mubr.bf16.mxu0 0
    %3999 = vmatmul.mubr.bf16.gmra.mxu0 %v2380
    %v4000 = vpop.f32.mrf.mxu0
    %v4001 = vadd.f32 %v592, %v4000
    %v4002 = vpop.f32.mrf.mxu0
    %v4003 = vpop.f32.mrf.mxu0
    %v4004 = vadd.f32 %v592, %v4003
    %v4005 = vpop.f32.mrf.mxu0
    %4006 = vmatprep.mubr.bf16.mxu0 0
    %4007 = vmatmul.mubr.bf16.gmra.mxu0 %v2383
    %v4008 = vpop.f32.mrf.mxu0
    %v4009 = vadd.f32 %v592, %v4008
    %v4010 = vpop.f32.mrf.mxu0
    %v4011 = vpop.f32.mrf.mxu0
    %v4012 = vadd.f32 %v592, %v4011
    %v4013 = vpop.f32.mrf.mxu0
    %4014 = vmatprep.mubr.bf16.mxu0 0
    %4015 = vmatmul.mubr.bf16.gmra.mxu0 %v2386
    %v4016 = vpop.f32.mrf.mxu0
    %v4017 = vadd.f32 %v592, %v4016
    %v4018 = vpop.f32.mrf.mxu0
    %v4019 = vpop.f32.mrf.mxu0
    %v4020 = vadd.f32 %v592, %v4019
    %v4021 = vpop.f32.mrf.mxu0
    %4022 = vmatprep.mubr.bf16.mxu0 0
    %4023 = vmatmul.mubr.bf16.gmra.mxu0 %v2389
    %v4024 = vpop.f32.mrf.mxu0
    %v4025 = vadd.f32 %v592, %v4024
    %v4026 = vpop.f32.mrf.mxu0
    %v4027 = vpop.f32.mrf.mxu0
    %v4028 = vadd.f32 %v592, %v4027
    %v4029 = vpop.f32.mrf.mxu0
    %4030 = vmatprep.mubr.bf16.mxu0 0
    %4031 = vmatmul.mubr.bf16.gmra.mxu0 %v2392
    %v4032 = vpop.f32.mrf.mxu0
    %v4033 = vadd.f32 %v592, %v4032
    %v4034 = vpop.f32.mrf.mxu0
    %v4035 = vpop.f32.mrf.mxu0
    %v4036 = vadd.f32 %v592, %v4035
    %v4037 = vpop.f32.mrf.mxu0
    %4038 = vmatprep.mubr.bf16.mxu0 0
    %4039 = vmatmul.mubr.bf16.gmra.mxu0 %v2395
    %v4040 = vpop.f32.mrf.mxu0
    %v4041 = vadd.f32 %v592, %v4040
    %v4042 = vpop.f32.mrf.mxu0
    %v4043 = vpop.f32.mrf.mxu0
    %v4044 = vadd.f32 %v592, %v4043
    %v4045 = vpop.f32.mrf.mxu0
    %4046 = vmatprep.mubr.bf16.mxu0 0
    %4047 = vmatmul.mubr.bf16.gmra.mxu0 %v2398
    %v4048 = vpop.f32.mrf.mxu0
    %v4049 = vadd.f32 %v592, %v4048
    %v4050 = vpop.f32.mrf.mxu0
    %v4051 = vpop.f32.mrf.mxu0
    %v4052 = vadd.f32 %v592, %v4051
    %v4053 = vpop.f32.mrf.mxu0
    %4054 = vmatprep.mubr.bf16.mxu0 0
    %4055 = vmatmul.mubr.bf16.gmra.mxu0 %v2401
    %v4056 = vpop.f32.mrf.mxu0
    %v4057 = vadd.f32 %v592, %v4056
    %v4058 = vpop.f32.mrf.mxu0
    %v4059 = vpop.f32.mrf.mxu0
    %v4060 = vadd.f32 %v592, %v4059
    %v4061 = vpop.f32.mrf.mxu0
    %4062 = vmatprep.mubr.bf16.mxu0 0
    %4063 = vmatmul.mubr.bf16.gmra.mxu0 %v2404
    %v4064 = vpop.f32.mrf.mxu0
    %v4065 = vadd.f32 %v592, %v4064
    %v4066 = vpop.f32.mrf.mxu0
    %v4067 = vpop.f32.mrf.mxu0
    %v4068 = vadd.f32 %v592, %v4067
    %v4069 = vpop.f32.mrf.mxu0
    %4070 = vmatprep.mubr.bf16.mxu0 0
    %4071 = vmatmul.mubr.bf16.gmra.mxu0 %v2407
    %v4072 = vpop.f32.mrf.mxu0
    %v4073 = vadd.f32 %v592, %v4072
    %v4074 = vpop.f32.mrf.mxu0
    %v4075 = vpop.f32.mrf.mxu0
    %v4076 = vadd.f32 %v592, %v4075
    %v4077 = vpop.f32.mrf.mxu0
    %4078 = vmatprep.mubr.bf16.mxu0 0
    %4079 = vmatmul.mubr.bf16.gmra.mxu0 %v2410
    %v4080 = vpop.f32.mrf.mxu0
    %v4081 = vadd.f32 %v592, %v4080
    %v4082 = vpop.f32.mrf.mxu0
    %v4083 = vpop.f32.mrf.mxu0
    %v4084 = vadd.f32 %v592, %v4083
    %v4085 = vpop.f32.mrf.mxu0
    %4086 = vmatprep.mubr.bf16.mxu0 0
    %4087 = vmatmul.mubr.bf16.gmra.mxu0 %v2413
    %v4088 = vpop.f32.mrf.mxu0
    %v4089 = vadd.f32 %v592, %v4088
    %v4090 = vpop.f32.mrf.mxu0
    %v4091 = vpop.f32.mrf.mxu0
    %v4092 = vadd.f32 %v592, %v4091
    %v4093 = vpop.f32.mrf.mxu0
    %4094 = vmatprep.mubr.bf16.mxu0 0
    %4095 = vmatmul.mubr.bf16.gmra.mxu0 %v2416
    %v4096 = vpop.f32.mrf.mxu0
    %v4097 = vadd.f32 %v592, %v4096
    %v4098 = vpop.f32.mrf.mxu0
    %v4099 = vpop.f32.mrf.mxu0
    %v4100 = vadd.f32 %v592, %v4099
    %v4101 = vpop.f32.mrf.mxu0
    %4102 = vmatprep.mubr.bf16.mxu0 0
    %4103 = vmatmul.mubr.bf16.gmra.mxu0 %v2419
    %v4104 = vpop.f32.mrf.mxu0
    %v4105 = vadd.f32 %v592, %v4104
    %v4106 = vpop.f32.mrf.mxu0
    %v4107 = vpop.f32.mrf.mxu0
    %v4108 = vadd.f32 %v592, %v4107
    %v4109 = vpop.f32.mrf.mxu0
    %4110 = vmatprep.mubr.bf16.mxu0 0
    %4111 = vmatmul.mubr.bf16.gmra.mxu0 %v2422
    %v4112 = vpop.f32.mrf.mxu0
    %v4113 = vadd.f32 %v592, %v4112
    %v4114 = vpop.f32.mrf.mxu0
    %v4115 = vpop.f32.mrf.mxu0
    %v4116 = vadd.f32 %v592, %v4115
    %v4117 = vpop.f32.mrf.mxu0
    %4118 = vmatprep.mubr.bf16.mxu0 0
    %4119 = vmatmul.mubr.bf16.gmra.mxu0 %v2425
    %v4120 = vpop.f32.mrf.mxu0
    %v4121 = vadd.f32 %v592, %v4120
    %v4122 = vpop.f32.mrf.mxu0
    %v4123 = vpop.f32.mrf.mxu0
    %v4124 = vadd.f32 %v592, %v4123
    %v4125 = vpop.f32.mrf.mxu0
    %4126 = vmatprep.mubr.bf16.mxu0 0
    %4127 = vmatmul.mubr.bf16.gmra.mxu0 %v2428
    %v4128 = vpop.f32.mrf.mxu0
    %v4129 = vadd.f32 %v592, %v4128
    %v4130 = vpop.f32.mrf.mxu0
    %v4131 = vpop.f32.mrf.mxu0
    %v4132 = vadd.f32 %v592, %v4131
    %v4133 = vpop.f32.mrf.mxu0
    %4134 = vmatprep.mubr.bf16.mxu0 0
    %4135 = vmatmul.mubr.bf16.gmra.mxu0 %v2431
    %v4136 = vpop.f32.mrf.mxu0
    %v4137 = vadd.f32 %v592, %v4136
    %v4138 = vpop.f32.mrf.mxu0
    %v4139 = vpop.f32.mrf.mxu0
    %v4140 = vadd.f32 %v592, %v4139
    %v4141 = vpop.f32.mrf.mxu0
    %4142 = vmatprep.mubr.bf16.mxu0 0
    %4143 = vmatmul.mubr.bf16.gmra.mxu0 %v2434
    %v4144 = vpop.f32.mrf.mxu0
    %v4145 = vadd.f32 %v592, %v4144
    %v4146 = vpop.f32.mrf.mxu0
    %v4147 = vpop.f32.mrf.mxu0
    %v4148 = vadd.f32 %v592, %v4147
    %v4149 = vpop.f32.mrf.mxu0
    %4150 = vmatprep.mubr.bf16.mxu0 0
    %4151 = vmatmul.mubr.bf16.gmra.mxu0 %v2437
    %v4152 = vpop.f32.mrf.mxu0
    %v4153 = vadd.f32 %v592, %v4152
    %v4154 = vpop.f32.mrf.mxu0
    %v4155 = vpop.f32.mrf.mxu0
    %v4156 = vadd.f32 %v592, %v4155
    %v4157 = vpop.f32.mrf.mxu0
    %4158 = vmatprep.mubr.bf16.mxu0 0
    %4159 = vmatmul.mubr.bf16.gmra.mxu0 %v2440
    %v4160 = vpop.f32.mrf.mxu0
    %v4161 = vadd.f32 %v592, %v4160
    %v4162 = vpop.f32.mrf.mxu0
    %v4163 = vpop.f32.mrf.mxu0
    %v4164 = vadd.f32 %v592, %v4163
    %v4165 = vpop.f32.mrf.mxu0
    %4166 = vmatprep.mubr.bf16.mxu0 0
    %4167 = vmatmul.mubr.bf16.gmra.mxu0 %v2443
    %v4168 = vpop.f32.mrf.mxu0
    %v4169 = vadd.f32 %v592, %v4168
    %v4170 = vpop.f32.mrf.mxu0
    %v4171 = vpop.f32.mrf.mxu0
    %v4172 = vadd.f32 %v592, %v4171
    %v4173 = vpop.f32.mrf.mxu0
    %4174 = vmatprep.mubr.bf16.mxu0 0
    %4175 = vmatmul.mubr.bf16.gmra.mxu0 %v2446
    %v4176 = vpop.f32.mrf.mxu0
    %v4177 = vadd.f32 %v592, %v4176
    %v4178 = vpop.f32.mrf.mxu0
    %v4179 = vpop.f32.mrf.mxu0
    %v4180 = vadd.f32 %v592, %v4179
    %v4181 = vpop.f32.mrf.mxu0
    %4182 = vmatprep.mubr.bf16.mxu0 0
    %4183 = vmatmul.mubr.bf16.gmra.mxu0 %v2449
    %v4184 = vpop.f32.mrf.mxu0
    %v4185 = vadd.f32 %v592, %v4184
    %v4186 = vpop.f32.mrf.mxu0
    %v4187 = vpop.f32.mrf.mxu0
    %v4188 = vadd.f32 %v592, %v4187
    %v4189 = vpop.f32.mrf.mxu0
    %4190 = vmatprep.mubr.bf16.mxu0 0
    %4191 = vmatmul.mubr.bf16.gmra.mxu0 %v2452
    %v4192 = vpop.f32.mrf.mxu0
    %v4193 = vadd.f32 %v592, %v4192
    %v4194 = vpop.f32.mrf.mxu0
    %v4195 = vpop.f32.mrf.mxu0
    %v4196 = vadd.f32 %v592, %v4195
    %v4197 = vpop.f32.mrf.mxu0
    %4198 = vmatprep.mubr.bf16.mxu0 0
    %4199 = vmatmul.mubr.bf16.gmra.mxu0 %v2455
    %v4200 = vpop.f32.mrf.mxu0
    %v4201 = vadd.f32 %v592, %v4200
    %v4202 = vpop.f32.mrf.mxu0
    %v4203 = vpop.f32.mrf.mxu0
    %v4204 = vadd.f32 %v592, %v4203
    %v4205 = vpop.f32.mrf.mxu0
    %4206 = vmatprep.mubr.bf16.mxu0 0
    %4207 = vmatmul.mubr.bf16.gmra.mxu0 %v2458
    %v4208 = vpop.f32.mrf.mxu0
    %v4209 = vadd.f32 %v592, %v4208
    %v4210 = vpop.f32.mrf.mxu0
    %v4211 = vpop.f32.mrf.mxu0
    %v4212 = vadd.f32 %v592, %v4211
    %v4213 = vpop.f32.mrf.mxu0
    %4214 = vmatprep.mubr.bf16.mxu0 0
    %4215 = vmatmul.mubr.bf16.gmra.mxu0 %v2461
    %v4216 = vpop.f32.mrf.mxu0
    %v4217 = vadd.f32 %v592, %v4216
    %v4218 = vpop.f32.mrf.mxu0
    %v4219 = vpop.f32.mrf.mxu0
    %v4220 = vadd.f32 %v592, %v4219
    %v4221 = vpop.f32.mrf.mxu0
    %4222 = vmatprep.mubr.bf16.mxu0 0
    %4223 = vmatmul.mubr.bf16.gmra.mxu0 %v2464
    %v4224 = vpop.f32.mrf.mxu0
    %v4225 = vadd.f32 %v592, %v4224
    %v4226 = vpop.f32.mrf.mxu0
    %v4227 = vpop.f32.mrf.mxu0
    %v4228 = vadd.f32 %v592, %v4227
    %v4229 = vpop.f32.mrf.mxu0
    %4230 = vmatprep.mubr.bf16.mxu0 0
    %4231 = vmatmul.mubr.bf16.gmra.mxu0 %v2467
    %v4232 = vpop.f32.mrf.mxu0
    %v4233 = vadd.f32 %v592, %v4232
    %v4234 = vpop.f32.mrf.mxu0
    %v4235 = vpop.f32.mrf.mxu0
    %v4236 = vadd.f32 %v592, %v4235
    %v4237 = vpop.f32.mrf.mxu0
    %4238 = vmatprep.mubr.bf16.mxu0 0
    %4239 = vmatmul.mubr.bf16.gmra.mxu0 %v2470
    %v4240 = vpop.f32.mrf.mxu0
    %v4241 = vadd.f32 %v592, %v4240
    %v4242 = vpop.f32.mrf.mxu0
    %v4243 = vpop.f32.mrf.mxu0
    %v4244 = vadd.f32 %v592, %v4243
    %v4245 = vpop.f32.mrf.mxu0
    %4246 = vmatprep.mubr.bf16.mxu0 0
    %4247 = vmatmul.mubr.bf16.gmra.mxu0 %v2473
    %v4248 = vpop.f32.mrf.mxu0
    %v4249 = vadd.f32 %v592, %v4248
    %v4250 = vpop.f32.mrf.mxu0
    %v4251 = vpop.f32.mrf.mxu0
    %v4252 = vadd.f32 %v592, %v4251
    %v4253 = vpop.f32.mrf.mxu0
    %4254 = vmatprep.mubr.bf16.mxu0 0
    %4255 = vmatmul.mubr.bf16.gmra.mxu0 %v2476
    %v4256 = vpop.f32.mrf.mxu0
    %v4257 = vadd.f32 %v592, %v4256
    %v4258 = vpop.f32.mrf.mxu0
    %v4259 = vpop.f32.mrf.mxu0
    %v4260 = vadd.f32 %v592, %v4259
    %v4261 = vpop.f32.mrf.mxu0
    %4262 = vmatprep.mubr.bf16.mxu0 0
    %4263 = vmatmul.mubr.bf16.gmra.mxu0 %v2479
    %v4264 = vpop.f32.mrf.mxu0
    %v4265 = vadd.f32 %v592, %v4264
    %v4266 = vpop.f32.mrf.mxu0
    %v4267 = vpop.f32.mrf.mxu0
    %v4268 = vadd.f32 %v592, %v4267
    %v4269 = vpop.f32.mrf.mxu0
    %4270 = vmatprep.mubr.bf16.mxu0 0
    %4271 = vmatmul.mubr.bf16.gmra.mxu0 %v2482
    %v4272 = vpop.f32.mrf.mxu0
    %v4273 = vadd.f32 %v592, %v4272
    %v4274 = vpop.f32.mrf.mxu0
    %v4275 = vpop.f32.mrf.mxu0
    %v4276 = vadd.f32 %v592, %v4275
    %v4277 = vpop.f32.mrf.mxu0
    %4278 = vmatprep.mubr.bf16.mxu0 0
    %4279 = vmatmul.mubr.bf16.gmra.mxu0 %v2485
    %v4280 = vpop.f32.mrf.mxu0
    %v4281 = vadd.f32 %v592, %v4280
    %v4282 = vpop.f32.mrf.mxu0
    %v4283 = vpop.f32.mrf.mxu0
    %v4284 = vadd.f32 %v592, %v4283
    %v4285 = vpop.f32.mrf.mxu0
    %4286 = vmatprep.mubr.bf16.mxu0 0
    %4287 = vmatmul.mubr.bf16.gmra.mxu0 %v2488
    %v4288 = vpop.f32.mrf.mxu0
    %v4289 = vadd.f32 %v592, %v4288
    %v4290 = vpop.f32.mrf.mxu0
    %v4291 = vpop.f32.mrf.mxu0
    %v4292 = vadd.f32 %v592, %v4291
    %v4293 = vpop.f32.mrf.mxu0
    %4294 = vmatprep.mubr.bf16.mxu0 0
    %4295 = vmatmul.mubr.bf16.gmra.mxu0 %v2491
    %v4296 = vpop.f32.mrf.mxu0
    %v4297 = vadd.f32 %v592, %v4296
    %v4298 = vpop.f32.mrf.mxu0
    %v4299 = vpop.f32.mrf.mxu0
    %v4300 = vadd.f32 %v592, %v4299
    %v4301 = vpop.f32.mrf.mxu0
    %4302 = vmatprep.mubr.bf16.mxu0 0
    %4303 = vmatmul.mubr.bf16.gmra.mxu0 %v2494
    %v4304 = vpop.f32.mrf.mxu0
    %v4305 = vadd.f32 %v592, %v4304
    %v4306 = vpop.f32.mrf.mxu0
    %v4307 = vpop.f32.mrf.mxu0
    %v4308 = vadd.f32 %v592, %v4307
    %v4309 = vpop.f32.mrf.mxu0
    %4310 = vmatprep.mubr.bf16.mxu0 0
    %4311 = vmatmul.mubr.bf16.gmra.mxu0 %v2497
    %v4312 = vpop.f32.mrf.mxu0
    %v4313 = vadd.f32 %v592, %v4312
    %v4314 = vpop.f32.mrf.mxu0
    %v4315 = vpop.f32.mrf.mxu0
    %v4316 = vadd.f32 %v592, %v4315
    %v4317 = vpop.f32.mrf.mxu0
    %4318 = vmatprep.mubr.bf16.mxu0 0
    %4319 = vmatmul.mubr.bf16.gmra.mxu0 %v2500
    %v4320 = vpop.f32.mrf.mxu0
    %v4321 = vadd.f32 %v592, %v4320
    %v4322 = vpop.f32.mrf.mxu0
    %v4323 = vpop.f32.mrf.mxu0
    %v4324 = vadd.f32 %v592, %v4323
    %v4325 = vpop.f32.mrf.mxu0
    %4326 = vmatprep.mubr.bf16.mxu0 0
    %4327 = vmatmul.mubr.bf16.gmra.mxu0 %v2503
    %v4328 = vpop.f32.mrf.mxu0
    %v4329 = vadd.f32 %v592, %v4328
    %v4330 = vpop.f32.mrf.mxu0
    %v4331 = vpop.f32.mrf.mxu0
    %v4332 = vadd.f32 %v592, %v4331
    %v4333 = vpop.f32.mrf.mxu0
    %4334 = vmatprep.mubr.bf16.mxu0 0
    %4335 = vmatmul.mubr.bf16.gmra.mxu0 %v2506
    %v4336 = vpop.f32.mrf.mxu0
    %v4337 = vadd.f32 %v592, %v4336
    %v4338 = vpop.f32.mrf.mxu0
    %v4339 = vpop.f32.mrf.mxu0
    %v4340 = vadd.f32 %v592, %v4339
    %v4341 = vpop.f32.mrf.mxu0
    %4342 = vmatprep.mubr.bf16.mxu0 0
    %4343 = vmatmul.mubr.bf16.gmra.mxu0 %v2509
    %v4344 = vpop.f32.mrf.mxu0
    %v4345 = vadd.f32 %v592, %v4344
    %v4346 = vpop.f32.mrf.mxu0
    %v4347 = vpop.f32.mrf.mxu0
    %v4348 = vadd.f32 %v592, %v4347
    %v4349 = vpop.f32.mrf.mxu0
    %4350 = vmatprep.mubr.bf16.mxu0 0
    %4351 = vmatmul.mubr.bf16.gmra.mxu0 %v2512
    %v4352 = vpop.f32.mrf.mxu0
    %v4353 = vadd.f32 %v592, %v4352
    %v4354 = vpop.f32.mrf.mxu0
    %v4355 = vpop.f32.mrf.mxu0
    %v4356 = vadd.f32 %v592, %v4355
    %v4357 = vpop.f32.mrf.mxu0
    %4358 = vmatprep.mubr.bf16.mxu0 0
    %4359 = vmatmul.mubr.bf16.gmra.mxu0 %v2515
    %v4360 = vpop.f32.mrf.mxu0
    %v4361 = vadd.f32 %v592, %v4360
    %v4362 = vpop.f32.mrf.mxu0
    %v4363 = vpop.f32.mrf.mxu0
    %v4364 = vadd.f32 %v592, %v4363
    %v4365 = vpop.f32.mrf.mxu0
    %4366 = vmatprep.mubr.bf16.mxu0 0
    %4367 = vmatmul.mubr.bf16.gmra.mxu0 %v2518
    %v4368 = vpop.f32.mrf.mxu0
    %v4369 = vadd.f32 %v592, %v4368
    %v4370 = vpop.f32.mrf.mxu0
    %v4371 = vpop.f32.mrf.mxu0
    %v4372 = vadd.f32 %v592, %v4371
    %v4373 = vpop.f32.mrf.mxu0
    %4374 = vmatprep.mubr.bf16.mxu0 0
    %4375 = vmatmul.mubr.bf16.gmra.mxu0 %v2521
    %v4376 = vpop.f32.mrf.mxu0
    %v4377 = vadd.f32 %v592, %v4376
    %v4378 = vpop.f32.mrf.mxu0
    %v4379 = vpop.f32.mrf.mxu0
    %v4380 = vadd.f32 %v592, %v4379
    %v4381 = vpop.f32.mrf.mxu0
    %4382 = vmatprep.mubr.bf16.mxu0 0
    %4383 = vmatmul.mubr.bf16.gmra.mxu0 %v2524
    %v4384 = vpop.f32.mrf.mxu0
    %v4385 = vadd.f32 %v592, %v4384
    %v4386 = vpop.f32.mrf.mxu0
    %v4387 = vpop.f32.mrf.mxu0
    %v4388 = vadd.f32 %v592, %v4387
    %v4389 = vpop.f32.mrf.mxu0
    %4390 = vmatprep.mubr.bf16.mxu0 0
    %4391 = vmatmul.mubr.bf16.gmra.mxu0 %v2527
    %v4392 = vpop.f32.mrf.mxu0
    %v4393 = vadd.f32 %v592, %v4392
    %v4394 = vpop.f32.mrf.mxu0
    %v4395 = vpop.f32.mrf.mxu0
    %v4396 = vadd.f32 %v592, %v4395
    %v4397 = vpop.f32.mrf.mxu0
    %4398 = vmatprep.mubr.bf16.mxu0 0
    %4399 = vmatmul.mubr.bf16.gmra.mxu0 %v2530
    %v4400 = vpop.f32.mrf.mxu0
    %v4401 = vadd.f32 %v592, %v4400
    %v4402 = vpop.f32.mrf.mxu0
    %v4403 = vpop.f32.mrf.mxu0
    %v4404 = vadd.f32 %v592, %v4403
    %v4405 = vpop.f32.mrf.mxu0
    %4406 = vmatprep.mubr.bf16.mxu0 0
    %4407 = vmatmul.mubr.bf16.gmra.mxu0 %v2533
    %v4408 = vpop.f32.mrf.mxu0
    %v4409 = vadd.f32 %v592, %v4408
    %v4410 = vpop.f32.mrf.mxu0
    %v4411 = vpop.f32.mrf.mxu0
    %v4412 = vadd.f32 %v592, %v4411
    %v4413 = vpop.f32.mrf.mxu0
    %4414 = vmatprep.mubr.bf16.mxu0 0
    %4415 = vmatmul.mubr.bf16.gmra.mxu0 %v2536
    %v4416 = vpop.f32.mrf.mxu0
    %v4417 = vadd.f32 %v592, %v4416
    %v4418 = vpop.f32.mrf.mxu0
    %v4419 = vpop.f32.mrf.mxu0
    %v4420 = vadd.f32 %v592, %v4419
    %v4421 = vpop.f32.mrf.mxu0
    %4422 = vmatprep.mubr.bf16.mxu0 0
    %4423 = vmatmul.mubr.bf16.gmra.mxu0 %v2539
    %v4424 = vpop.f32.mrf.mxu0
    %v4425 = vadd.f32 %v592, %v4424
    %v4426 = vpop.f32.mrf.mxu0
    %v4427 = vpop.f32.mrf.mxu0
    %v4428 = vadd.f32 %v592, %v4427
    %v4429 = vpop.f32.mrf.mxu0
    %4430 = vmatprep.mubr.bf16.mxu0 0
    %4431 = vmatmul.mubr.bf16.gmra.mxu0 %v2542
    %v4432 = vpop.f32.mrf.mxu0
    %v4433 = vadd.f32 %v592, %v4432
    %v4434 = vpop.f32.mrf.mxu0
    %v4435 = vpop.f32.mrf.mxu0
    %v4436 = vadd.f32 %v592, %v4435
    %v4437 = vpop.f32.mrf.mxu0
    %4438 = vmatprep.mubr.bf16.mxu0 0
    %4439 = vmatmul.mubr.bf16.gmra.mxu0 %v2545
    %v4440 = vpop.f32.mrf.mxu0
    %v4441 = vadd.f32 %v592, %v4440
    %v4442 = vpop.f32.mrf.mxu0
    %v4443 = vpop.f32.mrf.mxu0
    %v4444 = vadd.f32 %v592, %v4443
    %v4445 = vpop.f32.mrf.mxu0
    %4446 = vmatprep.mubr.bf16.mxu0 0
    %4447 = vmatmul.mubr.bf16.gmra.mxu0 %v2548
    %v4448 = vpop.f32.mrf.mxu0
    %v4449 = vadd.f32 %v592, %v4448
    %v4450 = vpop.f32.mrf.mxu0
    %v4451 = vpop.f32.mrf.mxu0
    %v4452 = vadd.f32 %v592, %v4451
    %v4453 = vpop.f32.mrf.mxu0
    %4454 = vmatprep.mubr.bf16.mxu0 0
    %4455 = vmatmul.mubr.bf16.gmra.mxu0 %v2551
    %v4456 = vpop.f32.mrf.mxu0
    %v4457 = vadd.f32 %v592, %v4456
    %v4458 = vpop.f32.mrf.mxu0
    %v4459 = vpop.f32.mrf.mxu0
    %v4460 = vadd.f32 %v592, %v4459
    %v4461 = vpop.f32.mrf.mxu0
    %4462 = vmatprep.mubr.bf16.mxu0 0
    %4463 = vmatmul.mubr.bf16.gmra.mxu0 %v2554
    %v4464 = vpop.f32.mrf.mxu0
    %v4465 = vadd.f32 %v592, %v4464
    %v4466 = vpop.f32.mrf.mxu0
    %v4467 = vpop.f32.mrf.mxu0
    %v4468 = vadd.f32 %v592, %v4467
    %v4469 = vpop.f32.mrf.mxu0
    %4470 = vmatprep.mubr.bf16.mxu0 0
    %4471 = vmatmul.mubr.bf16.gmra.mxu0 %v2557
    %v4472 = vpop.f32.mrf.mxu0
    %v4473 = vadd.f32 %v592, %v4472
    %v4474 = vpop.f32.mrf.mxu0
    %v4475 = vpop.f32.mrf.mxu0
    %v4476 = vadd.f32 %v592, %v4475
    %v4477 = vpop.f32.mrf.mxu0
    %4478 = vmatprep.mubr.bf16.mxu0 0
    %4479 = vmatmul.mubr.bf16.gmra.mxu0 %v2560
    %v4480 = vpop.f32.mrf.mxu0
    %v4481 = vadd.f32 %v592, %v4480
    %v4482 = vpop.f32.mrf.mxu0
    %v4483 = vpop.f32.mrf.mxu0
    %v4484 = vadd.f32 %v592, %v4483
    %v4485 = vpop.f32.mrf.mxu0
    %4486 = vmatprep.mubr.bf16.mxu0 0
    %4487 = vmatmul.mubr.bf16.gmra.mxu0 %v2563
    %v4488 = vpop.f32.mrf.mxu0
    %v4489 = vadd.f32 %v592, %v4488
    %v4490 = vpop.f32.mrf.mxu0
    %v4491 = vpop.f32.mrf.mxu0
    %v4492 = vadd.f32 %v592, %v4491
    %v4493 = vpop.f32.mrf.mxu0
    %4494 = vmatprep.mubr.bf16.mxu0 0
    %4495 = vmatmul.mubr.bf16.gmra.mxu0 %v2566
    %v4496 = vpop.f32.mrf.mxu0
    %v4497 = vadd.f32 %v592, %v4496
    %v4498 = vpop.f32.mrf.mxu0
    %v4499 = vpop.f32.mrf.mxu0
    %v4500 = vadd.f32 %v592, %v4499
    %v4501 = vpop.f32.mrf.mxu0
    %4502 = vmatprep.mubr.bf16.mxu0 0
    %4503 = vmatmul.mubr.bf16.gmra.mxu0 %v2569
    %v4504 = vpop.f32.mrf.mxu0
    %v4505 = vadd.f32 %v592, %v4504
    %v4506 = vpop.f32.mrf.mxu0
    %v4507 = vpop.f32.mrf.mxu0
    %v4508 = vadd.f32 %v592, %v4507
    %v4509 = vpop.f32.mrf.mxu0
    %4510 = vmatprep.mubr.bf16.mxu0 0
    %4511 = vmatmul.mubr.bf16.gmra.mxu0 %v2572
    %v4512 = vpop.f32.mrf.mxu0
    %v4513 = vadd.f32 %v592, %v4512
    %v4514 = vpop.f32.mrf.mxu0
    %v4515 = vpop.f32.mrf.mxu0
    %v4516 = vadd.f32 %v592, %v4515
    %v4517 = vpop.f32.mrf.mxu0
    %4518 = vmatprep.mubr.bf16.mxu0 0
    %4519 = vmatmul.mubr.bf16.gmra.mxu0 %v2575
    %v4520 = vpop.f32.mrf.mxu0
    %v4521 = vadd.f32 %v592, %v4520
    %v4522 = vpop.f32.mrf.mxu0
    %v4523 = vpop.f32.mrf.mxu0
    %v4524 = vadd.f32 %v592, %v4523
    %v4525 = vpop.f32.mrf.mxu0
    %4526 = vmatprep.mubr.bf16.mxu0 0
    %4527 = vmatmul.mubr.bf16.gmra.mxu0 %v2578
    %v4528 = vpop.f32.mrf.mxu0
    %v4529 = vadd.f32 %v592, %v4528
    %v4530 = vpop.f32.mrf.mxu0
    %v4531 = vpop.f32.mrf.mxu0
    %v4532 = vadd.f32 %v592, %v4531
    %v4533 = vpop.f32.mrf.mxu0
    %4534 = vmatprep.mubr.bf16.mxu0 0
    %4535 = vmatmul.mubr.bf16.gmra.mxu0 %v2581
    %v4536 = vpop.f32.mrf.mxu0
    %v4537 = vadd.f32 %v592, %v4536
    %v4538 = vpop.f32.mrf.mxu0
    %v4539 = vpop.f32.mrf.mxu0
    %v4540 = vadd.f32 %v592, %v4539
    %v4541 = vpop.f32.mrf.mxu0
    %4542 = vmatprep.mubr.bf16.mxu0 0
    %4543 = vmatmul.mubr.bf16.gmra.mxu0 %v2584
    %v4544 = vpop.f32.mrf.mxu0
    %v4545 = vadd.f32 %v592, %v4544
    %v4546 = vpop.f32.mrf.mxu0
    %v4547 = vpop.f32.mrf.mxu0
    %v4548 = vadd.f32 %v592, %v4547
    %v4549 = vpop.f32.mrf.mxu0
    %4550 = vmatprep.mubr.bf16.mxu0 0
    %4551 = vmatmul.mubr.bf16.gmra.mxu0 %v2587
    %v4552 = vpop.f32.mrf.mxu0
    %v4553 = vadd.f32 %v592, %v4552
    %v4554 = vpop.f32.mrf.mxu0
    %v4555 = vpop.f32.mrf.mxu0
    %v4556 = vadd.f32 %v592, %v4555
    %v4557 = vpop.f32.mrf.mxu0
    %4558 = vmatprep.mubr.bf16.mxu0 0
    %4559 = vmatmul.mubr.bf16.gmra.mxu0 %v2590
    %v4560 = vpop.f32.mrf.mxu0
    %v4561 = vadd.f32 %v592, %v4560
    %v4562 = vpop.f32.mrf.mxu0
    %v4563 = vpop.f32.mrf.mxu0
    %v4564 = vadd.f32 %v592, %v4563
    %v4565 = vpop.f32.mrf.mxu0
    %4566 = vmatprep.mubr.bf16.mxu0 0
    %4567 = vmatmul.mubr.bf16.gmra.mxu0 %v2593
    %v4568 = vpop.f32.mrf.mxu0
    %v4569 = vadd.f32 %v592, %v4568
    %v4570 = vpop.f32.mrf.mxu0
    %v4571 = vpop.f32.mrf.mxu0
    %v4572 = vadd.f32 %v592, %v4571
    %v4573 = vpop.f32.mrf.mxu0
    %4574 = vmatprep.mubr.bf16.mxu0 0
    %4575 = vmatmul.mubr.bf16.gmra.mxu0 %v2596
    %v4576 = vpop.f32.mrf.mxu0
    %v4577 = vadd.f32 %v592, %v4576
    %v4578 = vpop.f32.mrf.mxu0
    %v4579 = vpop.f32.mrf.mxu0
    %v4580 = vadd.f32 %v592, %v4579
    %v4581 = vpop.f32.mrf.mxu0
    %4582 = vmatprep.mubr.bf16.mxu0 0
    %4583 = vmatmul.mubr.bf16.gmra.mxu0 %v2599
    %v4584 = vpop.f32.mrf.mxu0
    %v4585 = vadd.f32 %v592, %v4584
    %v4586 = vpop.f32.mrf.mxu0
    %v4587 = vpop.f32.mrf.mxu0
    %v4588 = vadd.f32 %v592, %v4587
    %v4589 = vpop.f32.mrf.mxu0
    %4590 = vmatprep.mubr.bf16.mxu0 0
    %4591 = vmatmul.mubr.bf16.gmra.mxu0 %v2602
    %v4592 = vpop.f32.mrf.mxu0
    %v4593 = vadd.f32 %v592, %v4592
    %v4594 = vpop.f32.mrf.mxu0
    %v4595 = vpop.f32.mrf.mxu0
    %v4596 = vadd.f32 %v592, %v4595
    %v4597 = vpop.f32.mrf.mxu0
    %4598 = vmatprep.mubr.bf16.mxu0 0
    %4599 = vmatmul.mubr.bf16.gmra.mxu0 %v2605
    %v4600 = vpop.f32.mrf.mxu0
    %v4601 = vadd.f32 %v592, %v4600
    %v4602 = vpop.f32.mrf.mxu0
    %v4603 = vpop.f32.mrf.mxu0
    %v4604 = vadd.f32 %v592, %v4603
    %v4605 = vpop.f32.mrf.mxu0
    %4606 = vmatprep.mubr.bf16.mxu0 0
    %4607 = vmatmul.mubr.bf16.gmra.mxu0 %v2608
    %v4608 = vpop.f32.mrf.mxu0
    %v4609 = vadd.f32 %v592, %v4608
    %v4610 = vpop.f32.mrf.mxu0
    %v4611 = vpop.f32.mrf.mxu0
    %v4612 = vadd.f32 %v592, %v4611
    %v4613 = vpop.f32.mrf.mxu0
    %4614 = vmatprep.mubr.bf16.mxu0 0
    %4615 = vmatmul.mubr.bf16.gmra.mxu0 %v2611
    %v4616 = vpop.f32.mrf.mxu0
    %v4617 = vadd.f32 %v592, %v4616
    %v4618 = vpop.f32.mrf.mxu0
    %v4619 = vpop.f32.mrf.mxu0
    %v4620 = vadd.f32 %v592, %v4619
    %v4621 = vpop.f32.mrf.mxu0
    %4622 = vmatprep.mubr.bf16.mxu0 0
    %4623 = vmatmul.mubr.bf16.gmra.mxu0 %v2614
    %v4624 = vpop.f32.mrf.mxu0
    %v4625 = vadd.f32 %v592, %v4624
    %v4626 = vpop.f32.mrf.mxu0
    %v4627 = vpop.f32.mrf.mxu0
    %v4628 = vadd.f32 %v592, %v4627
    %v4629 = vpop.f32.mrf.mxu0
    %4630 = vmatprep.mubr.bf16.mxu0 0
    %4631 = vmatmul.mubr.bf16.gmra.mxu0 %v2617
    %v4632 = vpop.f32.mrf.mxu0
    %v4633 = vadd.f32 %v592, %v4632
    %v4634 = vpop.f32.mrf.mxu0
    %v4635 = vpop.f32.mrf.mxu0
    %v4636 = vadd.f32 %v592, %v4635
    %v4637 = vpop.f32.mrf.mxu0
    %4638 = vmatprep.mubr.bf16.mxu0 0
    %4639 = vmatmul.mubr.bf16.gmra.mxu0 %v2620
    %v4640 = vpop.f32.mrf.mxu0
    %v4641 = vadd.f32 %v592, %v4640
    %v4642 = vpop.f32.mrf.mxu0
    %v4643 = vpop.f32.mrf.mxu0
    %v4644 = vadd.f32 %v592, %v4643
    %v4645 = vpop.f32.mrf.mxu0
    %4646 = vmatprep.mubr.bf16.mxu0 0
    %4647 = vmatmul.mubr.bf16.gmra.mxu0 %v2623
    %v4648 = vpop.f32.mrf.mxu0
    %v4649 = vadd.f32 %v592, %v4648
    %v4650 = vpop.f32.mrf.mxu0
    %v4651 = vpop.f32.mrf.mxu0
    %v4652 = vadd.f32 %v592, %v4651
    %v4653 = vpop.f32.mrf.mxu0
    %4654 = vmatprep.mubr.bf16.mxu0 0
    %4655 = vmatmul.mubr.bf16.gmra.mxu0 %v2626
    %v4656 = vpop.f32.mrf.mxu0
    %v4657 = vadd.f32 %v592, %v4656
    %v4658 = vpop.f32.mrf.mxu0
    %v4659 = vpop.f32.mrf.mxu0
    %v4660 = vadd.f32 %v592, %v4659
    %v4661 = vpop.f32.mrf.mxu0
    %4662 = vmatprep.mubr.bf16.mxu0 0
    %4663 = vmatmul.mubr.bf16.gmra.mxu0 %v2629
    %v4664 = vpop.f32.mrf.mxu0
    %v4665 = vadd.f32 %v592, %v4664
    %v4666 = vpop.f32.mrf.mxu0
    %v4667 = vpop.f32.mrf.mxu0
    %v4668 = vadd.f32 %v592, %v4667
    %v4669 = vpop.f32.mrf.mxu0
    %4670 = vmatprep.mubr.bf16.mxu0 0
    %4671 = vmatmul.mubr.bf16.gmra.mxu0 %v2632
    %v4672 = vpop.f32.mrf.mxu0
    %v4673 = vadd.f32 %v592, %v4672
    %v4674 = vpop.f32.mrf.mxu0
    %v4675 = vpop.f32.mrf.mxu0
    %v4676 = vadd.f32 %v592, %v4675
    %v4677 = vpop.f32.mrf.mxu0
    %4678 = vmatprep.mubr.bf16.mxu0 0
    %4679 = vmatmul.mubr.bf16.gmra.mxu0 %v2635
    %v4680 = vpop.f32.mrf.mxu0
    %v4681 = vadd.f32 %v592, %v4680
    %v4682 = vpop.f32.mrf.mxu0
    %v4683 = vpop.f32.mrf.mxu0
    %v4684 = vadd.f32 %v592, %v4683
    %v4685 = vpop.f32.mrf.mxu0
    %4686 = vmatprep.mubr.bf16.mxu0 0
    %4687 = vmatmul.mubr.bf16.gmra.mxu0 %v2638
    %v4688 = vpop.f32.mrf.mxu0
    %v4689 = vadd.f32 %v592, %v4688
    %v4690 = vpop.f32.mrf.mxu0
    %v4691 = vpop.f32.mrf.mxu0
    %v4692 = vadd.f32 %v592, %v4691
    %v4693 = vpop.f32.mrf.mxu0
    %4694 = vmatprep.mubr.bf16.mxu0 0
    %4695 = vmatmul.mubr.bf16.gmra.mxu0 %v2641
    %v4696 = vpop.f32.mrf.mxu0
    %v4697 = vadd.f32 %v592, %v4696
    %v4698 = vpop.f32.mrf.mxu0
    %v4699 = vpop.f32.mrf.mxu0
    %v4700 = vadd.f32 %v592, %v4699
    %v4701 = vpop.f32.mrf.mxu0
    %4702 = vmatprep.mubr.bf16.mxu0 0
    %4703 = vmatmul.mubr.bf16.gmra.mxu0 %v2644
    %v4704 = vpop.f32.mrf.mxu0
    %v4705 = vadd.f32 %v592, %v4704
    %v4706 = vpop.f32.mrf.mxu0
    %v4707 = vpop.f32.mrf.mxu0
    %v4708 = vadd.f32 %v592, %v4707
    %v4709 = vpop.f32.mrf.mxu0
    %4710 = vmatprep.mubr.bf16.mxu0 0
    %4711 = vmatmul.mubr.bf16.gmra.mxu0 %v2647
    %v4712 = vpop.f32.mrf.mxu0
    %v4713 = vadd.f32 %v592, %v4712
    %v4714 = vpop.f32.mrf.mxu0
    %v4715 = vpop.f32.mrf.mxu0
    %v4716 = vadd.f32 %v592, %v4715
    %v4717 = vpop.f32.mrf.mxu0
    %4718 = vmatprep.mubr.bf16.mxu0 0
    %4719 = vmatmul.mubr.bf16.gmra.mxu0 %v2650
    %v4720 = vpop.f32.mrf.mxu0
    %v4721 = vadd.f32 %v592, %v4720
    %v4722 = vpop.f32.mrf.mxu0
    %v4723 = vpop.f32.mrf.mxu0
    %v4724 = vadd.f32 %v592, %v4723
    %v4725 = vpop.f32.mrf.mxu0
    %4726 = vmatprep.mubr.bf16.mxu0 0
    %4727 = vmatmul.mubr.bf16.gmra.mxu0 %v2653
    %v4728 = vpop.f32.mrf.mxu0
    %v4729 = vadd.f32 %v592, %v4728
    %v4730 = vpop.f32.mrf.mxu0
    %v4731 = vpop.f32.mrf.mxu0
    %v4732 = vadd.f32 %v592, %v4731
    %v4733 = vpop.f32.mrf.mxu0
    %4734 = vmatprep.mubr.bf16.mxu0 0
    %4735 = vmatmul.mubr.bf16.gmra.mxu0 %v2656
    %v4736 = vpop.f32.mrf.mxu0
    %v4737 = vadd.f32 %v592, %v4736
    %v4738 = vpop.f32.mrf.mxu0
    %v4739 = vpop.f32.mrf.mxu0
    %v4740 = vadd.f32 %v592, %v4739
    %v4741 = vpop.f32.mrf.mxu0
    %4742 = vdwg.mxu0
    %v4743 = vmax.f32 %v2697, 0.0
    %v4744 = vmax.f32 %v2700, 0.0
    %v4745 = vmax.f32 %v2705, 0.0
    %v4746 = vmax.f32 %v2708, 0.0
    %v4747 = vmax.f32 %v2713, 0.0
    %v4748 = vmax.f32 %v2716, 0.0
    %v4749 = vmax.f32 %v2721, 0.0
    %v4750 = vmax.f32 %v2724, 0.0
    %v4751 = vmax.f32 %v2729, 0.0
    %v4752 = vmax.f32 %v2732, 0.0
    %v4753 = vmax.f32 %v2737, 0.0
    %v4754 = vmax.f32 %v2740, 0.0
    %v4755 = vmax.f32 %v2745, 0.0
    %v4756 = vmax.f32 %v2748, 0.0
    %v4757 = vmax.f32 %v2753, 0.0
    %v4758 = vmax.f32 %v2756, 0.0
    %v4759 = vmax.f32 %v2761, 0.0
    %v4760 = vmax.f32 %v2764, 0.0
    %v4761 = vmax.f32 %v2769, 0.0
    %v4762 = vmax.f32 %v2772, 0.0
    %v4763 = vmax.f32 %v2777, 0.0
    %v4764 = vmax.f32 %v2780, 0.0
    %v4765 = vmax.f32 %v2785, 0.0
    %v4766 = vmax.f32 %v2788, 0.0
    %v4767 = vmax.f32 %v2793, 0.0
    %v4768 = vmax.f32 %v2796, 0.0
    %v4769 = vmax.f32 %v2801, 0.0
    %v4770 = vmax.f32 %v2804, 0.0
    %v4771 = vmax.f32 %v2809, 0.0
    %v4772 = vmax.f32 %v2812, 0.0
    %v4773 = vmax.f32 %v2817, 0.0
    %v4774 = vmax.f32 %v2820, 0.0
    %v4775 = vmax.f32 %v2825, 0.0
    %v4776 = vmax.f32 %v2828, 0.0
    %v4777 = vmax.f32 %v2833, 0.0
    %v4778 = vmax.f32 %v2836, 0.0
    %v4779 = vmax.f32 %v2841, 0.0
    %v4780 = vmax.f32 %v2844, 0.0
    %v4781 = vmax.f32 %v2849, 0.0
    %v4782 = vmax.f32 %v2852, 0.0
    %v4783 = vmax.f32 %v2857, 0.0
    %v4784 = vmax.f32 %v2860, 0.0
    %v4785 = vmax.f32 %v2865, 0.0
    %v4786 = vmax.f32 %v2868, 0.0
    %v4787 = vmax.f32 %v2873, 0.0
    %v4788 = vmax.f32 %v2876, 0.0
    %v4789 = vmax.f32 %v2881, 0.0
    %v4790 = vmax.f32 %v2884, 0.0
    %v4791 = vmax.f32 %v2889, 0.0
    %v4792 = vmax.f32 %v2892, 0.0
    %v4793 = vmax.f32 %v2897, 0.0
    %v4794 = vmax.f32 %v2900, 0.0
    %v4795 = vmax.f32 %v2905, 0.0
    %v4796 = vmax.f32 %v2908, 0.0
    %v4797 = vmax.f32 %v2913, 0.0
    %v4798 = vmax.f32 %v2916, 0.0
    %v4799 = vmax.f32 %v2921, 0.0
    %v4800 = vmax.f32 %v2924, 0.0
    %v4801 = vmax.f32 %v2929, 0.0
    %v4802 = vmax.f32 %v2932, 0.0
    %v4803 = vmax.f32 %v2937, 0.0
    %v4804 = vmax.f32 %v2940, 0.0
    %v4805 = vmax.f32 %v2945, 0.0
    %v4806 = vmax.f32 %v2948, 0.0
    %v4807 = vmax.f32 %v2953, 0.0
    %v4808 = vmax.f32 %v2956, 0.0
    %v4809 = vmax.f32 %v2961, 0.0
    %v4810 = vmax.f32 %v2964, 0.0
    %v4811 = vmax.f32 %v2969, 0.0
    %v4812 = vmax.f32 %v2972, 0.0
    %v4813 = vmax.f32 %v2977, 0.0
    %v4814 = vmax.f32 %v2980, 0.0
    %v4815 = vmax.f32 %v2985, 0.0
    %v4816 = vmax.f32 %v2988, 0.0
    %v4817 = vmax.f32 %v2993, 0.0
    %v4818 = vmax.f32 %v2996, 0.0
    %v4819 = vmax.f32 %v3001, 0.0
    %v4820 = vmax.f32 %v3004, 0.0
    %v4821 = vmax.f32 %v3009, 0.0
    %v4822 = vmax.f32 %v3012, 0.0
    %v4823 = vmax.f32 %v3017, 0.0
    %v4824 = vmax.f32 %v3020, 0.0
    %v4825 = vmax.f32 %v3025, 0.0
    %v4826 = vmax.f32 %v3028, 0.0
    %v4827 = vmax.f32 %v3033, 0.0
    %v4828 = vmax.f32 %v3036, 0.0
    %v4829 = vmax.f32 %v3041, 0.0
    %v4830 = vmax.f32 %v3044, 0.0
    %v4831 = vmax.f32 %v3049, 0.0
    %v4832 = vmax.f32 %v3052, 0.0
    %v4833 = vmax.f32 %v3057, 0.0
    %v4834 = vmax.f32 %v3060, 0.0
    %v4835 = vmax.f32 %v3065, 0.0
    %v4836 = vmax.f32 %v3068, 0.0
    %v4837 = vmax.f32 %v3073, 0.0
    %v4838 = vmax.f32 %v3076, 0.0
    %v4839 = vmax.f32 %v3081, 0.0
    %v4840 = vmax.f32 %v3084, 0.0
    %v4841 = vmax.f32 %v3089, 0.0
    %v4842 = vmax.f32 %v3092, 0.0
    %v4843 = vmax.f32 %v3097, 0.0
    %v4844 = vmax.f32 %v3100, 0.0
    %v4845 = vmax.f32 %v3105, 0.0
    %v4846 = vmax.f32 %v3108, 0.0
    %v4847 = vmax.f32 %v3113, 0.0
    %v4848 = vmax.f32 %v3116, 0.0
    %v4849 = vmax.f32 %v3121, 0.0
    %v4850 = vmax.f32 %v3124, 0.0
    %v4851 = vmax.f32 %v3129, 0.0
    %v4852 = vmax.f32 %v3132, 0.0
    %v4853 = vmax.f32 %v3137, 0.0
    %v4854 = vmax.f32 %v3140, 0.0
    %v4855 = vmax.f32 %v3145, 0.0
    %v4856 = vmax.f32 %v3148, 0.0
    %v4857 = vmax.f32 %v3153, 0.0
    %v4858 = vmax.f32 %v3156, 0.0
    %v4859 = vmax.f32 %v3161, 0.0
    %v4860 = vmax.f32 %v3164, 0.0
    %v4861 = vmax.f32 %v3169, 0.0
    %v4862 = vmax.f32 %v3172, 0.0
    %v4863 = vmax.f32 %v3177, 0.0
    %v4864 = vmax.f32 %v3180, 0.0
    %v4865 = vmax.f32 %v3185, 0.0
    %v4866 = vmax.f32 %v3188, 0.0
    %v4867 = vmax.f32 %v3193, 0.0
    %v4868 = vmax.f32 %v3196, 0.0
    %v4869 = vmax.f32 %v3201, 0.0
    %v4870 = vmax.f32 %v3204, 0.0
    %v4871 = vmax.f32 %v3209, 0.0
    %v4872 = vmax.f32 %v3212, 0.0
    %v4873 = vmax.f32 %v3217, 0.0
    %v4874 = vmax.f32 %v3220, 0.0
    %v4875 = vmax.f32 %v3225, 0.0
    %v4876 = vmax.f32 %v3228, 0.0
    %v4877 = vmax.f32 %v3233, 0.0
    %v4878 = vmax.f32 %v3236, 0.0
    %v4879 = vmax.f32 %v3241, 0.0
    %v4880 = vmax.f32 %v3244, 0.0
    %v4881 = vmax.f32 %v3249, 0.0
    %v4882 = vmax.f32 %v3252, 0.0
    %v4883 = vmax.f32 %v3257, 0.0
    %v4884 = vmax.f32 %v3260, 0.0
    %v4885 = vmax.f32 %v3265, 0.0
    %v4886 = vmax.f32 %v3268, 0.0
    %v4887 = vmax.f32 %v3273, 0.0
    %v4888 = vmax.f32 %v3276, 0.0
    %v4889 = vmax.f32 %v3281, 0.0
    %v4890 = vmax.f32 %v3284, 0.0
    %v4891 = vmax.f32 %v3289, 0.0
    %v4892 = vmax.f32 %v3292, 0.0
    %v4893 = vmax.f32 %v3297, 0.0
    %v4894 = vmax.f32 %v3300, 0.0
    %v4895 = vmax.f32 %v3305, 0.0
    %v4896 = vmax.f32 %v3308, 0.0
    %v4897 = vmax.f32 %v3313, 0.0
    %v4898 = vmax.f32 %v3316, 0.0
    %v4899 = vmax.f32 %v3321, 0.0
    %v4900 = vmax.f32 %v3324, 0.0
    %v4901 = vmax.f32 %v3329, 0.0
    %v4902 = vmax.f32 %v3332, 0.0
    %v4903 = vmax.f32 %v3337, 0.0
    %v4904 = vmax.f32 %v3340, 0.0
    %v4905 = vmax.f32 %v3345, 0.0
    %v4906 = vmax.f32 %v3348, 0.0
    %v4907 = vmax.f32 %v3353, 0.0
    %v4908 = vmax.f32 %v3356, 0.0
    %v4909 = vmax.f32 %v3361, 0.0
    %v4910 = vmax.f32 %v3364, 0.0
    %v4911 = vmax.f32 %v3369, 0.0
    %v4912 = vmax.f32 %v3372, 0.0
    %v4913 = vmax.f32 %v3377, 0.0
    %v4914 = vmax.f32 %v3380, 0.0
    %v4915 = vmax.f32 %v3385, 0.0
    %v4916 = vmax.f32 %v3388, 0.0
    %v4917 = vmax.f32 %v3393, 0.0
    %v4918 = vmax.f32 %v3396, 0.0
    %v4919 = vmax.f32 %v3401, 0.0
    %v4920 = vmax.f32 %v3404, 0.0
    %v4921 = vmax.f32 %v3409, 0.0
    %v4922 = vmax.f32 %v3412, 0.0
    %v4923 = vmax.f32 %v3417, 0.0
    %v4924 = vmax.f32 %v3420, 0.0
    %v4925 = vmax.f32 %v3425, 0.0
    %v4926 = vmax.f32 %v3428, 0.0
    %v4927 = vmax.f32 %v3433, 0.0
    %v4928 = vmax.f32 %v3436, 0.0
    %v4929 = vmax.f32 %v3441, 0.0
    %v4930 = vmax.f32 %v3444, 0.0
    %v4931 = vmax.f32 %v3449, 0.0
    %v4932 = vmax.f32 %v3452, 0.0
    %v4933 = vmax.f32 %v3457, 0.0
    %v4934 = vmax.f32 %v3460, 0.0
    %v4935 = vmax.f32 %v3465, 0.0
    %v4936 = vmax.f32 %v3468, 0.0
    %v4937 = vmax.f32 %v3473, 0.0
    %v4938 = vmax.f32 %v3476, 0.0
    %v4939 = vmax.f32 %v3481, 0.0
    %v4940 = vmax.f32 %v3484, 0.0
    %v4941 = vmax.f32 %v3489, 0.0
    %v4942 = vmax.f32 %v3492, 0.0
    %v4943 = vmax.f32 %v3497, 0.0
    %v4944 = vmax.f32 %v3500, 0.0
    %v4945 = vmax.f32 %v3505, 0.0
    %v4946 = vmax.f32 %v3508, 0.0
    %v4947 = vmax.f32 %v3513, 0.0
    %v4948 = vmax.f32 %v3516, 0.0
    %v4949 = vmax.f32 %v3521, 0.0
    %v4950 = vmax.f32 %v3524, 0.0
    %v4951 = vmax.f32 %v3529, 0.0
    %v4952 = vmax.f32 %v3532, 0.0
    %v4953 = vmax.f32 %v3537, 0.0
    %v4954 = vmax.f32 %v3540, 0.0
    %v4955 = vmax.f32 %v3545, 0.0
    %v4956 = vmax.f32 %v3548, 0.0
    %v4957 = vmax.f32 %v3553, 0.0
    %v4958 = vmax.f32 %v3556, 0.0
    %v4959 = vmax.f32 %v3561, 0.0
    %v4960 = vmax.f32 %v3564, 0.0
    %v4961 = vmax.f32 %v3569, 0.0
    %v4962 = vmax.f32 %v3572, 0.0
    %v4963 = vmax.f32 %v3577, 0.0
    %v4964 = vmax.f32 %v3580, 0.0
    %v4965 = vmax.f32 %v3585, 0.0
    %v4966 = vmax.f32 %v3588, 0.0
    %v4967 = vmax.f32 %v3593, 0.0
    %v4968 = vmax.f32 %v3596, 0.0
    %v4969 = vmax.f32 %v3601, 0.0
    %v4970 = vmax.f32 %v3604, 0.0
    %v4971 = vmax.f32 %v3609, 0.0
    %v4972 = vmax.f32 %v3612, 0.0
    %v4973 = vmax.f32 %v3617, 0.0
    %v4974 = vmax.f32 %v3620, 0.0
    %v4975 = vmax.f32 %v3625, 0.0
    %v4976 = vmax.f32 %v3628, 0.0
    %v4977 = vmax.f32 %v3633, 0.0
    %v4978 = vmax.f32 %v3636, 0.0
    %v4979 = vmax.f32 %v3641, 0.0
    %v4980 = vmax.f32 %v3644, 0.0
    %v4981 = vmax.f32 %v3649, 0.0
    %v4982 = vmax.f32 %v3652, 0.0
    %v4983 = vmax.f32 %v3657, 0.0
    %v4984 = vmax.f32 %v3660, 0.0
    %v4985 = vmax.f32 %v3665, 0.0
    %v4986 = vmax.f32 %v3668, 0.0
    %v4987 = vmax.f32 %v3673, 0.0
    %v4988 = vmax.f32 %v3676, 0.0
    %v4989 = vmax.f32 %v3681, 0.0
    %v4990 = vmax.f32 %v3684, 0.0
    %v4991 = vmax.f32 %v3689, 0.0
    %v4992 = vmax.f32 %v3692, 0.0
    %v4993 = vmax.f32 %v3697, 0.0
    %v4994 = vmax.f32 %v3700, 0.0
    %v4995 = vmax.f32 %v3705, 0.0
    %v4996 = vmax.f32 %v3708, 0.0
    %v4997 = vmax.f32 %v3713, 0.0
    %v4998 = vmax.f32 %v3716, 0.0
    %v4999 = vmax.f32 %v3721, 0.0
    %v5000 = vmax.f32 %v3724, 0.0
    %v5001 = vmax.f32 %v3729, 0.0
    %v5002 = vmax.f32 %v3732, 0.0
    %v5003 = vmax.f32 %v3737, 0.0
    %v5004 = vmax.f32 %v3740, 0.0
    %v5005 = vmax.f32 %v3745, 0.0
    %v5006 = vmax.f32 %v3748, 0.0
    %v5007 = vmax.f32 %v3753, 0.0
    %v5008 = vmax.f32 %v3756, 0.0
    %v5009 = vmax.f32 %v3761, 0.0
    %v5010 = vmax.f32 %v3764, 0.0
    %v5011 = vmax.f32 %v3769, 0.0
    %v5012 = vmax.f32 %v3772, 0.0
    %v5013 = vmax.f32 %v3777, 0.0
    %v5014 = vmax.f32 %v3780, 0.0
    %v5015 = vmax.f32 %v3785, 0.0
    %v5016 = vmax.f32 %v3788, 0.0
    %v5017 = vmax.f32 %v3793, 0.0
    %v5018 = vmax.f32 %v3796, 0.0
    %v5019 = vmax.f32 %v3801, 0.0
    %v5020 = vmax.f32 %v3804, 0.0
    %v5021 = vmax.f32 %v3809, 0.0
    %v5022 = vmax.f32 %v3812, 0.0
    %v5023 = vmax.f32 %v3817, 0.0
    %v5024 = vmax.f32 %v3820, 0.0
    %v5025 = vmax.f32 %v3825, 0.0
    %v5026 = vmax.f32 %v3828, 0.0
    %v5027 = vmax.f32 %v3833, 0.0
    %v5028 = vmax.f32 %v3836, 0.0
    %v5029 = vmax.f32 %v3841, 0.0
    %v5030 = vmax.f32 %v3844, 0.0
    %v5031 = vmax.f32 %v3849, 0.0
    %v5032 = vmax.f32 %v3852, 0.0
    %v5033 = vmax.f32 %v3857, 0.0
    %v5034 = vmax.f32 %v3860, 0.0
    %v5035 = vmax.f32 %v3865, 0.0
    %v5036 = vmax.f32 %v3868, 0.0
    %v5037 = vmax.f32 %v3873, 0.0
    %v5038 = vmax.f32 %v3876, 0.0
    %v5039 = vmax.f32 %v3881, 0.0
    %v5040 = vmax.f32 %v3884, 0.0
    %v5041 = vmax.f32 %v3889, 0.0
    %v5042 = vmax.f32 %v3892, 0.0
    %v5043 = vmax.f32 %v3897, 0.0
    %v5044 = vmax.f32 %v3900, 0.0
    %v5045 = vmax.f32 %v3905, 0.0
    %v5046 = vmax.f32 %v3908, 0.0
    %v5047 = vmax.f32 %v3913, 0.0
    %v5048 = vmax.f32 %v3916, 0.0
    %v5049 = vmax.f32 %v3921, 0.0
    %v5050 = vmax.f32 %v3924, 0.0
    %v5051 = vmax.f32 %v3929, 0.0
    %v5052 = vmax.f32 %v3932, 0.0
    %v5053 = vmax.f32 %v3937, 0.0
    %v5054 = vmax.f32 %v3940, 0.0
    %v5055 = vmax.f32 %v3945, 0.0
    %v5056 = vmax.f32 %v3948, 0.0
    %v5057 = vmax.f32 %v3953, 0.0
    %v5058 = vmax.f32 %v3956, 0.0
    %v5059 = vmax.f32 %v3961, 0.0
    %v5060 = vmax.f32 %v3964, 0.0
    %v5061 = vmax.f32 %v3969, 0.0
    %v5062 = vmax.f32 %v3972, 0.0
    %v5063 = vmax.f32 %v3977, 0.0
    %v5064 = vmax.f32 %v3980, 0.0
    %v5065 = vmax.f32 %v3985, 0.0
    %v5066 = vmax.f32 %v3988, 0.0
    %v5067 = vmax.f32 %v3993, 0.0
    %v5068 = vmax.f32 %v3996, 0.0
    %v5069 = vmax.f32 %v4001, 0.0
    %v5070 = vmax.f32 %v4004, 0.0
    %v5071 = vmax.f32 %v4009, 0.0
    %v5072 = vmax.f32 %v4012, 0.0
    %v5073 = vmax.f32 %v4017, 0.0
    %v5074 = vmax.f32 %v4020, 0.0
    %v5075 = vmax.f32 %v4025, 0.0
    %v5076 = vmax.f32 %v4028, 0.0
    %v5077 = vmax.f32 %v4033, 0.0
    %v5078 = vmax.f32 %v4036, 0.0
    %v5079 = vmax.f32 %v4041, 0.0
    %v5080 = vmax.f32 %v4044, 0.0
    %v5081 = vmax.f32 %v4049, 0.0
    %v5082 = vmax.f32 %v4052, 0.0
    %v5083 = vmax.f32 %v4057, 0.0
    %v5084 = vmax.f32 %v4060, 0.0
    %v5085 = vmax.f32 %v4065, 0.0
    %v5086 = vmax.f32 %v4068, 0.0
    %v5087 = vmax.f32 %v4073, 0.0
    %v5088 = vmax.f32 %v4076, 0.0
    %v5089 = vmax.f32 %v4081, 0.0
    %v5090 = vmax.f32 %v4084, 0.0
    %v5091 = vmax.f32 %v4089, 0.0
    %v5092 = vmax.f32 %v4092, 0.0
    %v5093 = vmax.f32 %v4097, 0.0
    %v5094 = vmax.f32 %v4100, 0.0
    %v5095 = vmax.f32 %v4105, 0.0
    %v5096 = vmax.f32 %v4108, 0.0
    %v5097 = vmax.f32 %v4113, 0.0
    %v5098 = vmax.f32 %v4116, 0.0
    %v5099 = vmax.f32 %v4121, 0.0
    %v5100 = vmax.f32 %v4124, 0.0
    %v5101 = vmax.f32 %v4129, 0.0
    %v5102 = vmax.f32 %v4132, 0.0
    %v5103 = vmax.f32 %v4137, 0.0
    %v5104 = vmax.f32 %v4140, 0.0
    %v5105 = vmax.f32 %v4145, 0.0
    %v5106 = vmax.f32 %v4148, 0.0
    %v5107 = vmax.f32 %v4153, 0.0
    %v5108 = vmax.f32 %v4156, 0.0
    %v5109 = vmax.f32 %v4161, 0.0
    %v5110 = vmax.f32 %v4164, 0.0
    %v5111 = vmax.f32 %v4169, 0.0
    %v5112 = vmax.f32 %v4172, 0.0
    %v5113 = vmax.f32 %v4177, 0.0
    %v5114 = vmax.f32 %v4180, 0.0
    %v5115 = vmax.f32 %v4185, 0.0
    %v5116 = vmax.f32 %v4188, 0.0
    %v5117 = vmax.f32 %v4193, 0.0
    %v5118 = vmax.f32 %v4196, 0.0
    %v5119 = vmax.f32 %v4201, 0.0
    %v5120 = vmax.f32 %v4204, 0.0
    %v5121 = vmax.f32 %v4209, 0.0
    %v5122 = vmax.f32 %v4212, 0.0
    %v5123 = vmax.f32 %v4217, 0.0
    %v5124 = vmax.f32 %v4220, 0.0
    %v5125 = vmax.f32 %v4225, 0.0
    %v5126 = vmax.f32 %v4228, 0.0
    %v5127 = vmax.f32 %v4233, 0.0
    %v5128 = vmax.f32 %v4236, 0.0
    %v5129 = vmax.f32 %v4241, 0.0
    %v5130 = vmax.f32 %v4244, 0.0
    %v5131 = vmax.f32 %v4249, 0.0
    %v5132 = vmax.f32 %v4252, 0.0
    %v5133 = vmax.f32 %v4257, 0.0
    %v5134 = vmax.f32 %v4260, 0.0
    %v5135 = vmax.f32 %v4265, 0.0
    %v5136 = vmax.f32 %v4268, 0.0
    %v5137 = vmax.f32 %v4273, 0.0
    %v5138 = vmax.f32 %v4276, 0.0
    %v5139 = vmax.f32 %v4281, 0.0
    %v5140 = vmax.f32 %v4284, 0.0
    %v5141 = vmax.f32 %v4289, 0.0
    %v5142 = vmax.f32 %v4292, 0.0
    %v5143 = vmax.f32 %v4297, 0.0
    %v5144 = vmax.f32 %v4300, 0.0
    %v5145 = vmax.f32 %v4305, 0.0
    %v5146 = vmax.f32 %v4308, 0.0
    %v5147 = vmax.f32 %v4313, 0.0
    %v5148 = vmax.f32 %v4316, 0.0
    %v5149 = vmax.f32 %v4321, 0.0
    %v5150 = vmax.f32 %v4324, 0.0
    %v5151 = vmax.f32 %v4329, 0.0
    %v5152 = vmax.f32 %v4332, 0.0
    %v5153 = vmax.f32 %v4337, 0.0
    %v5154 = vmax.f32 %v4340, 0.0
    %v5155 = vmax.f32 %v4345, 0.0
    %v5156 = vmax.f32 %v4348, 0.0
    %v5157 = vmax.f32 %v4353, 0.0
    %v5158 = vmax.f32 %v4356, 0.0
    %v5159 = vmax.f32 %v4361, 0.0
    %v5160 = vmax.f32 %v4364, 0.0
    %v5161 = vmax.f32 %v4369, 0.0
    %v5162 = vmax.f32 %v4372, 0.0
    %v5163 = vmax.f32 %v4377, 0.0
    %v5164 = vmax.f32 %v4380, 0.0
    %v5165 = vmax.f32 %v4385, 0.0
    %v5166 = vmax.f32 %v4388, 0.0
    %v5167 = vmax.f32 %v4393, 0.0
    %v5168 = vmax.f32 %v4396, 0.0
    %v5169 = vmax.f32 %v4401, 0.0
    %v5170 = vmax.f32 %v4404, 0.0
    %v5171 = vmax.f32 %v4409, 0.0
    %v5172 = vmax.f32 %v4412, 0.0
    %v5173 = vmax.f32 %v4417, 0.0
    %v5174 = vmax.f32 %v4420, 0.0
    %v5175 = vmax.f32 %v4425, 0.0
    %v5176 = vmax.f32 %v4428, 0.0
    %v5177 = vmax.f32 %v4433, 0.0
    %v5178 = vmax.f32 %v4436, 0.0
    %v5179 = vmax.f32 %v4441, 0.0
    %v5180 = vmax.f32 %v4444, 0.0
    %v5181 = vmax.f32 %v4449, 0.0
    %v5182 = vmax.f32 %v4452, 0.0
    %v5183 = vmax.f32 %v4457, 0.0
    %v5184 = vmax.f32 %v4460, 0.0
    %v5185 = vmax.f32 %v4465, 0.0
    %v5186 = vmax.f32 %v4468, 0.0
    %v5187 = vmax.f32 %v4473, 0.0
    %v5188 = vmax.f32 %v4476, 0.0
    %v5189 = vmax.f32 %v4481, 0.0
    %v5190 = vmax.f32 %v4484, 0.0
    %v5191 = vmax.f32 %v4489, 0.0
    %v5192 = vmax.f32 %v4492, 0.0
    %v5193 = vmax.f32 %v4497, 0.0
    %v5194 = vmax.f32 %v4500, 0.0
    %v5195 = vmax.f32 %v4505, 0.0
    %v5196 = vmax.f32 %v4508, 0.0
    %v5197 = vmax.f32 %v4513, 0.0
    %v5198 = vmax.f32 %v4516, 0.0
    %v5199 = vmax.f32 %v4521, 0.0
    %v5200 = vmax.f32 %v4524, 0.0
    %v5201 = vmax.f32 %v4529, 0.0
    %v5202 = vmax.f32 %v4532, 0.0
    %v5203 = vmax.f32 %v4537, 0.0
    %v5204 = vmax.f32 %v4540, 0.0
    %v5205 = vmax.f32 %v4545, 0.0
    %v5206 = vmax.f32 %v4548, 0.0
    %v5207 = vmax.f32 %v4553, 0.0
    %v5208 = vmax.f32 %v4556, 0.0
    %v5209 = vmax.f32 %v4561, 0.0
    %v5210 = vmax.f32 %v4564, 0.0
    %v5211 = vmax.f32 %v4569, 0.0
    %v5212 = vmax.f32 %v4572, 0.0
    %v5213 = vmax.f32 %v4577, 0.0
    %v5214 = vmax.f32 %v4580, 0.0
    %v5215 = vmax.f32 %v4585, 0.0
    %v5216 = vmax.f32 %v4588, 0.0
    %v5217 = vmax.f32 %v4593, 0.0
    %v5218 = vmax.f32 %v4596, 0.0
    %v5219 = vmax.f32 %v4601, 0.0
    %v5220 = vmax.f32 %v4604, 0.0
    %v5221 = vmax.f32 %v4609, 0.0
    %v5222 = vmax.f32 %v4612, 0.0
    %v5223 = vmax.f32 %v4617, 0.0
    %v5224 = vmax.f32 %v4620, 0.0
    %v5225 = vmax.f32 %v4625, 0.0
    %v5226 = vmax.f32 %v4628, 0.0
    %v5227 = vmax.f32 %v4633, 0.0
    %v5228 = vmax.f32 %v4636, 0.0
    %v5229 = vmax.f32 %v4641, 0.0
    %v5230 = vmax.f32 %v4644, 0.0
    %v5231 = vmax.f32 %v4649, 0.0
    %v5232 = vmax.f32 %v4652, 0.0
    %v5233 = vmax.f32 %v4657, 0.0
    %v5234 = vmax.f32 %v4660, 0.0
    %v5235 = vmax.f32 %v4665, 0.0
    %v5236 = vmax.f32 %v4668, 0.0
    %v5237 = vmax.f32 %v4673, 0.0
    %v5238 = vmax.f32 %v4676, 0.0
    %v5239 = vmax.f32 %v4681, 0.0
    %v5240 = vmax.f32 %v4684, 0.0
    %v5241 = vmax.f32 %v4689, 0.0
    %v5242 = vmax.f32 %v4692, 0.0
    %v5243 = vmax.f32 %v4697, 0.0
    %v5244 = vmax.f32 %v4700, 0.0
    %v5245 = vmax.f32 %v4705, 0.0
    %v5246 = vmax.f32 %v4708, 0.0
    %v5247 = vmax.f32 %v4713, 0.0
    %v5248 = vmax.f32 %v4716, 0.0
    %v5249 = vmax.f32 %v4721, 0.0
    %v5250 = vmax.f32 %v4724, 0.0
    %v5251 = vmax.f32 %v4729, 0.0
    %v5252 = vmax.f32 %v4732, 0.0
    %v5253 = vmax.f32 %v4737, 0.0
    %v5254 = vmax.f32 %v4740, 0.0
    %v5255 = vadd.f32 %v4743, %v4744
    %v5256 = vadd.f32 %v5255, %v4745
    %v5257 = vadd.f32 %v5256, %v4746
    %v5258 = vadd.f32 %v5257, %v4747
    %v5259 = vadd.f32 %v5258, %v4748
    %v5260 = vadd.f32 %v5259, %v4749
    %v5261 = vadd.f32 %v5260, %v4750
    %v5262 = vadd.f32 %v5261, %v4751
    %v5263 = vadd.f32 %v5262, %v4752
    %v5264 = vadd.f32 %v5263, %v4753
    %v5265 = vadd.f32 %v5264, %v4754
    %v5266 = vadd.f32 %v5265, %v4755
    %v5267 = vadd.f32 %v5266, %v4756
    %v5268 = vadd.f32 %v5267, %v4757
    %v5269 = vadd.f32 %v5268, %v4758
    %v5270 = vadd.f32 %v5269, %v4759
    %v5271 = vadd.f32 %v5270, %v4760
    %v5272 = vadd.f32 %v5271, %v4761
    %v5273 = vadd.f32 %v5272, %v4762
    %v5274 = vadd.f32 %v5273, %v4763
    %v5275 = vadd.f32 %v5274, %v4764
    %v5276 = vadd.f32 %v5275, %v4765
    %v5277 = vadd.f32 %v5276, %v4766
    %v5278 = vadd.f32 %v5277, %v4767
    %v5279 = vadd.f32 %v5278, %v4768
    %v5280 = vadd.f32 %v5279, %v4769
    %v5281 = vadd.f32 %v5280, %v4770
    %v5282 = vadd.f32 %v5281, %v4771
    %v5283 = vadd.f32 %v5282, %v4772
    %v5284 = vadd.f32 %v5283, %v4773
    %v5285 = vadd.f32 %v5284, %v4774
    %v5286 = vrot.slane %v5285, 4
    %v5287 = vadd.f32 %v5285, %v5286
    %v5288 = vrot.slane %v5287, 2
    %v5289 = vadd.f32 %v5287, %v5288
    %v5290 = vrot.slane %v5289, 1
    %v5291 = vadd.f32 %v5289, %v5290
    %v5292 = vadd.f32 %v4775, %v4776
    %v5293 = vadd.f32 %v5292, %v4777
    %v5294 = vadd.f32 %v5293, %v4778
    %v5295 = vadd.f32 %v5294, %v4779
    %v5296 = vadd.f32 %v5295, %v4780
    %v5297 = vadd.f32 %v5296, %v4781
    %v5298 = vadd.f32 %v5297, %v4782
    %v5299 = vadd.f32 %v5298, %v4783
    %v5300 = vadd.f32 %v5299, %v4784
    %v5301 = vadd.f32 %v5300, %v4785
    %v5302 = vadd.f32 %v5301, %v4786
    %v5303 = vadd.f32 %v5302, %v4787
    %v5304 = vadd.f32 %v5303, %v4788
    %v5305 = vadd.f32 %v5304, %v4789
    %v5306 = vadd.f32 %v5305, %v4790
    %v5307 = vadd.f32 %v5306, %v4791
    %v5308 = vadd.f32 %v5307, %v4792
    %v5309 = vadd.f32 %v5308, %v4793
    %v5310 = vadd.f32 %v5309, %v4794
    %v5311 = vadd.f32 %v5310, %v4795
    %v5312 = vadd.f32 %v5311, %v4796
    %v5313 = vadd.f32 %v5312, %v4797
    %v5314 = vadd.f32 %v5313, %v4798
    %v5315 = vadd.f32 %v5314, %v4799
    %v5316 = vadd.f32 %v5315, %v4800
    %v5317 = vadd.f32 %v5316, %v4801
    %v5318 = vadd.f32 %v5317, %v4802
    %v5319 = vadd.f32 %v5318, %v4803
    %v5320 = vadd.f32 %v5319, %v4804
    %v5321 = vadd.f32 %v5320, %v4805
    %v5322 = vadd.f32 %v5321, %v4806
    %v5323 = vrot.slane %v5322, 4
    %v5324 = vadd.f32 %v5322, %v5323
    %v5325 = vrot.slane %v5324, 2
    %v5326 = vadd.f32 %v5324, %v5325
    %v5327 = vrot.slane %v5326, 1
    %v5328 = vadd.f32 %v5326, %v5327
    %v5329 = vadd.f32 %v4807, %v4808
    %v5330 = vadd.f32 %v5329, %v4809
    %v5331 = vadd.f32 %v5330, %v4810
    %v5332 = vadd.f32 %v5331, %v4811
    %v5333 = vadd.f32 %v5332, %v4812
    %v5334 = vadd.f32 %v5333, %v4813
    %v5335 = vadd.f32 %v5334, %v4814
    %v5336 = vadd.f32 %v5335, %v4815
    %v5337 = vadd.f32 %v5336, %v4816
    %v5338 = vadd.f32 %v5337, %v4817
    %v5339 = vadd.f32 %v5338, %v4818
    %v5340 = vadd.f32 %v5339, %v4819
    %v5341 = vadd.f32 %v5340, %v4820
    %v5342 = vadd.f32 %v5341, %v4821
    %v5343 = vadd.f32 %v5342, %v4822
    %v5344 = vadd.f32 %v5343, %v4823
    %v5345 = vadd.f32 %v5344, %v4824
    %v5346 = vadd.f32 %v5345, %v4825
    %v5347 = vadd.f32 %v5346, %v4826
    %v5348 = vadd.f32 %v5347, %v4827
    %v5349 = vadd.f32 %v5348, %v4828
    %v5350 = vadd.f32 %v5349, %v4829
    %v5351 = vadd.f32 %v5350, %v4830
    %v5352 = vadd.f32 %v5351, %v4831
    %v5353 = vadd.f32 %v5352, %v4832
    %v5354 = vadd.f32 %v5353, %v4833
    %v5355 = vadd.f32 %v5354, %v4834
    %v5356 = vadd.f32 %v5355, %v4835
    %v5357 = vadd.f32 %v5356, %v4836
    %v5358 = vadd.f32 %v5357, %v4837
    %v5359 = vadd.f32 %v5358, %v4838
    %v5360 = vrot.slane %v5359, 4
    %v5361 = vadd.f32 %v5359, %v5360
    %v5362 = vrot.slane %v5361, 2
    %v5363 = vadd.f32 %v5361, %v5362
    %v5364 = vrot.slane %v5363, 1
    %v5365 = vadd.f32 %v5363, %v5364
    %v5366 = vadd.f32 %v4839, %v4840
    %v5367 = vadd.f32 %v5366, %v4841
    %v5368 = vadd.f32 %v5367, %v4842
    %v5369 = vadd.f32 %v5368, %v4843
    %v5370 = vadd.f32 %v5369, %v4844
    %v5371 = vadd.f32 %v5370, %v4845
    %v5372 = vadd.f32 %v5371, %v4846
    %v5373 = vadd.f32 %v5372, %v4847
    %v5374 = vadd.f32 %v5373, %v4848
    %v5375 = vadd.f32 %v5374, %v4849
    %v5376 = vadd.f32 %v5375, %v4850
    %v5377 = vadd.f32 %v5376, %v4851
    %v5378 = vadd.f32 %v5377, %v4852
    %v5379 = vadd.f32 %v5378, %v4853
    %v5380 = vadd.f32 %v5379, %v4854
    %v5381 = vadd.f32 %v5380, %v4855
    %v5382 = vadd.f32 %v5381, %v4856
    %v5383 = vadd.f32 %v5382, %v4857
    %v5384 = vadd.f32 %v5383, %v4858
    %v5385 = vadd.f32 %v5384, %v4859
    %v5386 = vadd.f32 %v5385, %v4860
    %v5387 = vadd.f32 %v5386, %v4861
    %v5388 = vadd.f32 %v5387, %v4862
    %v5389 = vadd.f32 %v5388, %v4863
    %v5390 = vadd.f32 %v5389, %v4864
    %v5391 = vadd.f32 %v5390, %v4865
    %v5392 = vadd.f32 %v5391, %v4866
    %v5393 = vadd.f32 %v5392, %v4867
    %v5394 = vadd.f32 %v5393, %v4868
    %v5395 = vadd.f32 %v5394, %v4869
    %v5396 = vadd.f32 %v5395, %v4870
    %v5397 = vrot.slane %v5396, 4
    %v5398 = vadd.f32 %v5396, %v5397
    %v5399 = vrot.slane %v5398, 2
    %v5400 = vadd.f32 %v5398, %v5399
    %v5401 = vrot.slane %v5400, 1
    %v5402 = vadd.f32 %v5400, %v5401
    %v5403 = vadd.f32 %v4871, %v4872
    %v5404 = vadd.f32 %v5403, %v4873
    %v5405 = vadd.f32 %v5404, %v4874
    %v5406 = vadd.f32 %v5405, %v4875
    %v5407 = vadd.f32 %v5406, %v4876
    %v5408 = vadd.f32 %v5407, %v4877
    %v5409 = vadd.f32 %v5408, %v4878
    %v5410 = vadd.f32 %v5409, %v4879
    %v5411 = vadd.f32 %v5410, %v4880
    %v5412 = vadd.f32 %v5411, %v4881
    %v5413 = vadd.f32 %v5412, %v4882
    %v5414 = vadd.f32 %v5413, %v4883
    %v5415 = vadd.f32 %v5414, %v4884
    %v5416 = vadd.f32 %v5415, %v4885
    %v5417 = vadd.f32 %v5416, %v4886
    %v5418 = vadd.f32 %v5417, %v4887
    %v5419 = vadd.f32 %v5418, %v4888
    %v5420 = vadd.f32 %v5419, %v4889
    %v5421 = vadd.f32 %v5420, %v4890
    %v5422 = vadd.f32 %v5421, %v4891
    %v5423 = vadd.f32 %v5422, %v4892
    %v5424 = vadd.f32 %v5423, %v4893
    %v5425 = vadd.f32 %v5424, %v4894
    %v5426 = vadd.f32 %v5425, %v4895
    %v5427 = vadd.f32 %v5426, %v4896
    %v5428 = vadd.f32 %v5427, %v4897
    %v5429 = vadd.f32 %v5428, %v4898
    %v5430 = vadd.f32 %v5429, %v4899
    %v5431 = vadd.f32 %v5430, %v4900
    %v5432 = vadd.f32 %v5431, %v4901
    %v5433 = vadd.f32 %v5432, %v4902
    %v5434 = vrot.slane %v5433, 4
    %v5435 = vadd.f32 %v5433, %v5434
    %v5436 = vrot.slane %v5435, 2
    %v5437 = vadd.f32 %v5435, %v5436
    %v5438 = vrot.slane %v5437, 1
    %v5439 = vadd.f32 %v5437, %v5438
    %v5440 = vadd.f32 %v4903, %v4904
    %v5441 = vadd.f32 %v5440, %v4905
    %v5442 = vadd.f32 %v5441, %v4906
    %v5443 = vadd.f32 %v5442, %v4907
    %v5444 = vadd.f32 %v5443, %v4908
    %v5445 = vadd.f32 %v5444, %v4909
    %v5446 = vadd.f32 %v5445, %v4910
    %v5447 = vadd.f32 %v5446, %v4911
    %v5448 = vadd.f32 %v5447, %v4912
    %v5449 = vadd.f32 %v5448, %v4913
    %v5450 = vadd.f32 %v5449, %v4914
    %v5451 = vadd.f32 %v5450, %v4915
    %v5452 = vadd.f32 %v5451, %v4916
    %v5453 = vadd.f32 %v5452, %v4917
    %v5454 = vadd.f32 %v5453, %v4918
    %v5455 = vadd.f32 %v5454, %v4919
    %v5456 = vadd.f32 %v5455, %v4920
    %v5457 = vadd.f32 %v5456, %v4921
    %v5458 = vadd.f32 %v5457, %v4922
    %v5459 = vadd.f32 %v5458, %v4923
    %v5460 = vadd.f32 %v5459, %v4924
    %v5461 = vadd.f32 %v5460, %v4925
    %v5462 = vadd.f32 %v5461, %v4926
    %v5463 = vadd.f32 %v5462, %v4927
    %v5464 = vadd.f32 %v5463, %v4928
    %v5465 = vadd.f32 %v5464, %v4929
    %v5466 = vadd.f32 %v5465, %v4930
    %v5467 = vadd.f32 %v5466, %v4931
    %v5468 = vadd.f32 %v5467, %v4932
    %v5469 = vadd.f32 %v5468, %v4933
    %v5470 = vadd.f32 %v5469, %v4934
    %v5471 = vrot.slane %v5470, 4
    %v5472 = vadd.f32 %v5470, %v5471
    %v5473 = vrot.slane %v5472, 2
    %v5474 = vadd.f32 %v5472, %v5473
    %v5475 = vrot.slane %v5474, 1
    %v5476 = vadd.f32 %v5474, %v5475
    %v5477 = vadd.f32 %v4935, %v4936
    %v5478 = vadd.f32 %v5477, %v4937
    %v5479 = vadd.f32 %v5478, %v4938
    %v5480 = vadd.f32 %v5479, %v4939
    %v5481 = vadd.f32 %v5480, %v4940
    %v5482 = vadd.f32 %v5481, %v4941
    %v5483 = vadd.f32 %v5482, %v4942
    %v5484 = vadd.f32 %v5483, %v4943
    %v5485 = vadd.f32 %v5484, %v4944
    %v5486 = vadd.f32 %v5485, %v4945
    %v5487 = vadd.f32 %v5486, %v4946
    %v5488 = vadd.f32 %v5487, %v4947
    %v5489 = vadd.f32 %v5488, %v4948
    %v5490 = vadd.f32 %v5489, %v4949
    %v5491 = vadd.f32 %v5490, %v4950
    %v5492 = vadd.f32 %v5491, %v4951
    %v5493 = vadd.f32 %v5492, %v4952
    %v5494 = vadd.f32 %v5493, %v4953
    %v5495 = vadd.f32 %v5494, %v4954
    %v5496 = vadd.f32 %v5495, %v4955
    %v5497 = vadd.f32 %v5496, %v4956
    %v5498 = vadd.f32 %v5497, %v4957
    %v5499 = vadd.f32 %v5498, %v4958
    %v5500 = vadd.f32 %v5499, %v4959
    %v5501 = vadd.f32 %v5500, %v4960
    %v5502 = vadd.f32 %v5501, %v4961
    %v5503 = vadd.f32 %v5502, %v4962
    %v5504 = vadd.f32 %v5503, %v4963
    %v5505 = vadd.f32 %v5504, %v4964
    %v5506 = vadd.f32 %v5505, %v4965
    %v5507 = vadd.f32 %v5506, %v4966
    %v5508 = vrot.slane %v5507, 4
    %v5509 = vadd.f32 %v5507, %v5508
    %v5510 = vrot.slane %v5509, 2
    %v5511 = vadd.f32 %v5509, %v5510
    %v5512 = vrot.slane %v5511, 1
    %v5513 = vadd.f32 %v5511, %v5512
    %v5514 = vadd.f32 %v4967, %v4968
    %v5515 = vadd.f32 %v5514, %v4969
    %v5516 = vadd.f32 %v5515, %v4970
    %v5517 = vadd.f32 %v5516, %v4971
    %v5518 = vadd.f32 %v5517, %v4972
    %v5519 = vadd.f32 %v5518, %v4973
    %v5520 = vadd.f32 %v5519, %v4974
    %v5521 = vadd.f32 %v5520, %v4975
    %v5522 = vadd.f32 %v5521, %v4976
    %v5523 = vadd.f32 %v5522, %v4977
    %v5524 = vadd.f32 %v5523, %v4978
    %v5525 = vadd.f32 %v5524, %v4979
    %v5526 = vadd.f32 %v5525, %v4980
    %v5527 = vadd.f32 %v5526, %v4981
    %v5528 = vadd.f32 %v5527, %v4982
    %v5529 = vadd.f32 %v5528, %v4983
    %v5530 = vadd.f32 %v5529, %v4984
    %v5531 = vadd.f32 %v5530, %v4985
    %v5532 = vadd.f32 %v5531, %v4986
    %v5533 = vadd.f32 %v5532, %v4987
    %v5534 = vadd.f32 %v5533, %v4988
    %v5535 = vadd.f32 %v5534, %v4989
    %v5536 = vadd.f32 %v5535, %v4990
    %v5537 = vadd.f32 %v5536, %v4991
    %v5538 = vadd.f32 %v5537, %v4992
    %v5539 = vadd.f32 %v5538, %v4993
    %v5540 = vadd.f32 %v5539, %v4994
    %v5541 = vadd.f32 %v5540, %v4995
    %v5542 = vadd.f32 %v5541, %v4996
    %v5543 = vadd.f32 %v5542, %v4997
    %v5544 = vadd.f32 %v5543, %v4998
    %v5545 = vrot.slane %v5544, 4
    %v5546 = vadd.f32 %v5544, %v5545
    %v5547 = vrot.slane %v5546, 2
    %v5548 = vadd.f32 %v5546, %v5547
    %v5549 = vrot.slane %v5548, 1
    %v5550 = vadd.f32 %v5548, %v5549
    %v5551 = vadd.f32 %v4999, %v5000
    %v5552 = vadd.f32 %v5551, %v5001
    %v5553 = vadd.f32 %v5552, %v5002
    %v5554 = vadd.f32 %v5553, %v5003
    %v5555 = vadd.f32 %v5554, %v5004
    %v5556 = vadd.f32 %v5555, %v5005
    %v5557 = vadd.f32 %v5556, %v5006
    %v5558 = vadd.f32 %v5557, %v5007
    %v5559 = vadd.f32 %v5558, %v5008
    %v5560 = vadd.f32 %v5559, %v5009
    %v5561 = vadd.f32 %v5560, %v5010
    %v5562 = vadd.f32 %v5561, %v5011
    %v5563 = vadd.f32 %v5562, %v5012
    %v5564 = vadd.f32 %v5563, %v5013
    %v5565 = vadd.f32 %v5564, %v5014
    %v5566 = vadd.f32 %v5565, %v5015
    %v5567 = vadd.f32 %v5566, %v5016
    %v5568 = vadd.f32 %v5567, %v5017
    %v5569 = vadd.f32 %v5568, %v5018
    %v5570 = vadd.f32 %v5569, %v5019
    %v5571 = vadd.f32 %v5570, %v5020
    %v5572 = vadd.f32 %v5571, %v5021
    %v5573 = vadd.f32 %v5572, %v5022
    %v5574 = vadd.f32 %v5573, %v5023
    %v5575 = vadd.f32 %v5574, %v5024
    %v5576 = vadd.f32 %v5575, %v5025
    %v5577 = vadd.f32 %v5576, %v5026
    %v5578 = vadd.f32 %v5577, %v5027
    %v5579 = vadd.f32 %v5578, %v5028
    %v5580 = vadd.f32 %v5579, %v5029
    %v5581 = vadd.f32 %v5580, %v5030
    %v5582 = vrot.slane %v5581, 4
    %v5583 = vadd.f32 %v5581, %v5582
    %v5584 = vrot.slane %v5583, 2
    %v5585 = vadd.f32 %v5583, %v5584
    %v5586 = vrot.slane %v5585, 1
    %v5587 = vadd.f32 %v5585, %v5586
    %v5588 = vadd.f32 %v5031, %v5032
    %v5589 = vadd.f32 %v5588, %v5033
    %v5590 = vadd.f32 %v5589, %v5034
    %v5591 = vadd.f32 %v5590, %v5035
    %v5592 = vadd.f32 %v5591, %v5036
    %v5593 = vadd.f32 %v5592, %v5037
    %v5594 = vadd.f32 %v5593, %v5038
    %v5595 = vadd.f32 %v5594, %v5039
    %v5596 = vadd.f32 %v5595, %v5040
    %v5597 = vadd.f32 %v5596, %v5041
    %v5598 = vadd.f32 %v5597, %v5042
    %v5599 = vadd.f32 %v5598, %v5043
    %v5600 = vadd.f32 %v5599, %v5044
    %v5601 = vadd.f32 %v5600, %v5045
    %v5602 = vadd.f32 %v5601, %v5046
    %v5603 = vadd.f32 %v5602, %v5047
    %v5604 = vadd.f32 %v5603, %v5048
    %v5605 = vadd.f32 %v5604, %v5049
    %v5606 = vadd.f32 %v5605, %v5050
    %v5607 = vadd.f32 %v5606, %v5051
    %v5608 = vadd.f32 %v5607, %v5052
    %v5609 = vadd.f32 %v5608, %v5053
    %v5610 = vadd.f32 %v5609, %v5054
    %v5611 = vadd.f32 %v5610, %v5055
    %v5612 = vadd.f32 %v5611, %v5056
    %v5613 = vadd.f32 %v5612, %v5057
    %v5614 = vadd.f32 %v5613, %v5058
    %v5615 = vadd.f32 %v5614, %v5059
    %v5616 = vadd.f32 %v5615, %v5060
    %v5617 = vadd.f32 %v5616, %v5061
    %v5618 = vadd.f32 %v5617, %v5062
    %v5619 = vrot.slane %v5618, 4
    %v5620 = vadd.f32 %v5618, %v5619
    %v5621 = vrot.slane %v5620, 2
    %v5622 = vadd.f32 %v5620, %v5621
    %v5623 = vrot.slane %v5622, 1
    %v5624 = vadd.f32 %v5622, %v5623
    %v5625 = vadd.f32 %v5063, %v5064
    %v5626 = vadd.f32 %v5625, %v5065
    %v5627 = vadd.f32 %v5626, %v5066
    %v5628 = vadd.f32 %v5627, %v5067
    %v5629 = vadd.f32 %v5628, %v5068
    %v5630 = vadd.f32 %v5629, %v5069
    %v5631 = vadd.f32 %v5630, %v5070
    %v5632 = vadd.f32 %v5631, %v5071
    %v5633 = vadd.f32 %v5632, %v5072
    %v5634 = vadd.f32 %v5633, %v5073
    %v5635 = vadd.f32 %v5634, %v5074
    %v5636 = vadd.f32 %v5635, %v5075
    %v5637 = vadd.f32 %v5636, %v5076
    %v5638 = vadd.f32 %v5637, %v5077
    %v5639 = vadd.f32 %v5638, %v5078
    %v5640 = vadd.f32 %v5639, %v5079
    %v5641 = vadd.f32 %v5640, %v5080
    %v5642 = vadd.f32 %v5641, %v5081
    %v5643 = vadd.f32 %v5642, %v5082
    %v5644 = vadd.f32 %v5643, %v5083
    %v5645 = vadd.f32 %v5644, %v5084
    %v5646 = vadd.f32 %v5645, %v5085
    %v5647 = vadd.f32 %v5646, %v5086
    %v5648 = vadd.f32 %v5647, %v5087
    %v5649 = vadd.f32 %v5648, %v5088
    %v5650 = vadd.f32 %v5649, %v5089
    %v5651 = vadd.f32 %v5650, %v5090
    %v5652 = vadd.f32 %v5651, %v5091
    %v5653 = vadd.f32 %v5652, %v5092
    %v5654 = vadd.f32 %v5653, %v5093
    %v5655 = vadd.f32 %v5654, %v5094
    %v5656 = vrot.slane %v5655, 4
    %v5657 = vadd.f32 %v5655, %v5656
    %v5658 = vrot.slane %v5657, 2
    %v5659 = vadd.f32 %v5657, %v5658
    %v5660 = vrot.slane %v5659, 1
    %v5661 = vadd.f32 %v5659, %v5660
    %v5662 = vadd.f32 %v5095, %v5096
    %v5663 = vadd.f32 %v5662, %v5097
    %v5664 = vadd.f32 %v5663, %v5098
    %v5665 = vadd.f32 %v5664, %v5099
    %v5666 = vadd.f32 %v5665, %v5100
    %v5667 = vadd.f32 %v5666, %v5101
    %v5668 = vadd.f32 %v5667, %v5102
    %v5669 = vadd.f32 %v5668, %v5103
    %v5670 = vadd.f32 %v5669, %v5104
    %v5671 = vadd.f32 %v5670, %v5105
    %v5672 = vadd.f32 %v5671, %v5106
    %v5673 = vadd.f32 %v5672, %v5107
    %v5674 = vadd.f32 %v5673, %v5108
    %v5675 = vadd.f32 %v5674, %v5109
    %v5676 = vadd.f32 %v5675, %v5110
    %v5677 = vadd.f32 %v5676, %v5111
    %v5678 = vadd.f32 %v5677, %v5112
    %v5679 = vadd.f32 %v5678, %v5113
    %v5680 = vadd.f32 %v5679, %v5114
    %v5681 = vadd.f32 %v5680, %v5115
    %v5682 = vadd.f32 %v5681, %v5116
    %v5683 = vadd.f32 %v5682, %v5117
    %v5684 = vadd.f32 %v5683, %v5118
    %v5685 = vadd.f32 %v5684, %v5119
    %v5686 = vadd.f32 %v5685, %v5120
    %v5687 = vadd.f32 %v5686, %v5121
    %v5688 = vadd.f32 %v5687, %v5122
    %v5689 = vadd.f32 %v5688, %v5123
    %v5690 = vadd.f32 %v5689, %v5124
    %v5691 = vadd.f32 %v5690, %v5125
    %v5692 = vadd.f32 %v5691, %v5126
    %v5693 = vrot.slane %v5692, 4
    %v5694 = vadd.f32 %v5692, %v5693
    %v5695 = vrot.slane %v5694, 2
    %v5696 = vadd.f32 %v5694, %v5695
    %v5697 = vrot.slane %v5696, 1
    %v5698 = vadd.f32 %v5696, %v5697
    %v5699 = vadd.f32 %v5127, %v5128
    %v5700 = vadd.f32 %v5699, %v5129
    %v5701 = vadd.f32 %v5700, %v5130
    %v5702 = vadd.f32 %v5701, %v5131
    %v5703 = vadd.f32 %v5702, %v5132
    %v5704 = vadd.f32 %v5703, %v5133
    %v5705 = vadd.f32 %v5704, %v5134
    %v5706 = vadd.f32 %v5705, %v5135
    %v5707 = vadd.f32 %v5706, %v5136
    %v5708 = vadd.f32 %v5707, %v5137
    %v5709 = vadd.f32 %v5708, %v5138
    %v5710 = vadd.f32 %v5709, %v5139
    %v5711 = vadd.f32 %v5710, %v5140
    %v5712 = vadd.f32 %v5711, %v5141
    %v5713 = vadd.f32 %v5712, %v5142
    %v5714 = vadd.f32 %v5713, %v5143
    %v5715 = vadd.f32 %v5714, %v5144
    %v5716 = vadd.f32 %v5715, %v5145
    %v5717 = vadd.f32 %v5716, %v5146
    %v5718 = vadd.f32 %v5717, %v5147
    %v5719 = vadd.f32 %v5718, %v5148
    %v5720 = vadd.f32 %v5719, %v5149
    %v5721 = vadd.f32 %v5720, %v5150
    %v5722 = vadd.f32 %v5721, %v5151
    %v5723 = vadd.f32 %v5722, %v5152
    %v5724 = vadd.f32 %v5723, %v5153
    %v5725 = vadd.f32 %v5724, %v5154
    %v5726 = vadd.f32 %v5725, %v5155
    %v5727 = vadd.f32 %v5726, %v5156
    %v5728 = vadd.f32 %v5727, %v5157
    %v5729 = vadd.f32 %v5728, %v5158
    %v5730 = vrot.slane %v5729, 4
    %v5731 = vadd.f32 %v5729, %v5730
    %v5732 = vrot.slane %v5731, 2
    %v5733 = vadd.f32 %v5731, %v5732
    %v5734 = vrot.slane %v5733, 1
    %v5735 = vadd.f32 %v5733, %v5734
    %v5736 = vadd.f32 %v5159, %v5160
    %v5737 = vadd.f32 %v5736, %v5161
    %v5738 = vadd.f32 %v5737, %v5162
    %v5739 = vadd.f32 %v5738, %v5163
    %v5740 = vadd.f32 %v5739, %v5164
    %v5741 = vadd.f32 %v5740, %v5165
    %v5742 = vadd.f32 %v5741, %v5166
    %v5743 = vadd.f32 %v5742, %v5167
    %v5744 = vadd.f32 %v5743, %v5168
    %v5745 = vadd.f32 %v5744, %v5169
    %v5746 = vadd.f32 %v5745, %v5170
    %v5747 = vadd.f32 %v5746, %v5171
    %v5748 = vadd.f32 %v5747, %v5172
    %v5749 = vadd.f32 %v5748, %v5173
    %v5750 = vadd.f32 %v5749, %v5174
    %v5751 = vadd.f32 %v5750, %v5175
    %v5752 = vadd.f32 %v5751, %v5176
    %v5753 = vadd.f32 %v5752, %v5177
    %v5754 = vadd.f32 %v5753, %v5178
    %v5755 = vadd.f32 %v5754, %v5179
    %v5756 = vadd.f32 %v5755, %v5180
    %v5757 = vadd.f32 %v5756, %v5181
    %v5758 = vadd.f32 %v5757, %v5182
    %v5759 = vadd.f32 %v5758, %v5183
    %v5760 = vadd.f32 %v5759, %v5184
    %v5761 = vadd.f32 %v5760, %v5185
    %v5762 = vadd.f32 %v5761, %v5186
    %v5763 = vadd.f32 %v5762, %v5187
    %v5764 = vadd.f32 %v5763, %v5188
    %v5765 = vadd.f32 %v5764, %v5189
    %v5766 = vadd.f32 %v5765, %v5190
    %v5767 = vrot.slane %v5766, 4
    %v5768 = vadd.f32 %v5766, %v5767
    %v5769 = vrot.slane %v5768, 2
    %v5770 = vadd.f32 %v5768, %v5769
    %v5771 = vrot.slane %v5770, 1
    %v5772 = vadd.f32 %v5770, %v5771
    %v5773 = vadd.f32 %v5191, %v5192
    %v5774 = vadd.f32 %v5773, %v5193
    %v5775 = vadd.f32 %v5774, %v5194
    %v5776 = vadd.f32 %v5775, %v5195
    %v5777 = vadd.f32 %v5776, %v5196
    %v5778 = vadd.f32 %v5777, %v5197
    %v5779 = vadd.f32 %v5778, %v5198
    %v5780 = vadd.f32 %v5779, %v5199
    %v5781 = vadd.f32 %v5780, %v5200
    %v5782 = vadd.f32 %v5781, %v5201
    %v5783 = vadd.f32 %v5782, %v5202
    %v5784 = vadd.f32 %v5783, %v5203
    %v5785 = vadd.f32 %v5784, %v5204
    %v5786 = vadd.f32 %v5785, %v5205
    %v5787 = vadd.f32 %v5786, %v5206
    %v5788 = vadd.f32 %v5787, %v5207
    %v5789 = vadd.f32 %v5788, %v5208
    %v5790 = vadd.f32 %v5789, %v5209
    %v5791 = vadd.f32 %v5790, %v5210
    %v5792 = vadd.f32 %v5791, %v5211
    %v5793 = vadd.f32 %v5792, %v5212
    %v5794 = vadd.f32 %v5793, %v5213
    %v5795 = vadd.f32 %v5794, %v5214
    %v5796 = vadd.f32 %v5795, %v5215
    %v5797 = vadd.f32 %v5796, %v5216
    %v5798 = vadd.f32 %v5797, %v5217
    %v5799 = vadd.f32 %v5798, %v5218
    %v5800 = vadd.f32 %v5799, %v5219
    %v5801 = vadd.f32 %v5800, %v5220
    %v5802 = vadd.f32 %v5801, %v5221
    %v5803 = vadd.f32 %v5802, %v5222
    %v5804 = vrot.slane %v5803, 4
    %v5805 = vadd.f32 %v5803, %v5804
    %v5806 = vrot.slane %v5805, 2
    %v5807 = vadd.f32 %v5805, %v5806
    %v5808 = vrot.slane %v5807, 1
    %v5809 = vadd.f32 %v5807, %v5808
    %v5810 = vadd.f32 %v5223, %v5224
    %v5811 = vadd.f32 %v5810, %v5225
    %v5812 = vadd.f32 %v5811, %v5226
    %v5813 = vadd.f32 %v5812, %v5227
    %v5814 = vadd.f32 %v5813, %v5228
    %v5815 = vadd.f32 %v5814, %v5229
    %v5816 = vadd.f32 %v5815, %v5230
    %v5817 = vadd.f32 %v5816, %v5231
    %v5818 = vadd.f32 %v5817, %v5232
    %v5819 = vadd.f32 %v5818, %v5233
    %v5820 = vadd.f32 %v5819, %v5234
    %v5821 = vadd.f32 %v5820, %v5235
    %v5822 = vadd.f32 %v5821, %v5236
    %v5823 = vadd.f32 %v5822, %v5237
    %v5824 = vadd.f32 %v5823, %v5238
    %v5825 = vadd.f32 %v5824, %v5239
    %v5826 = vadd.f32 %v5825, %v5240
    %v5827 = vadd.f32 %v5826, %v5241
    %v5828 = vadd.f32 %v5827, %v5242
    %v5829 = vadd.f32 %v5828, %v5243
    %v5830 = vadd.f32 %v5829, %v5244
    %v5831 = vadd.f32 %v5830, %v5245
    %v5832 = vadd.f32 %v5831, %v5246
    %v5833 = vadd.f32 %v5832, %v5247
    %v5834 = vadd.f32 %v5833, %v5248
    %v5835 = vadd.f32 %v5834, %v5249
    %v5836 = vadd.f32 %v5835, %v5250
    %v5837 = vadd.f32 %v5836, %v5251
    %v5838 = vadd.f32 %v5837, %v5252
    %v5839 = vadd.f32 %v5838, %v5253
    %v5840 = vadd.f32 %v5839, %v5254
    %v5841 = vrot.slane %v5840, 4
    %v5842 = vadd.f32 %v5840, %v5841
    %v5843 = vrot.slane %v5842, 2
    %v5844 = vadd.f32 %v5842, %v5843
    %v5845 = vrot.slane %v5844, 1
    %v5846 = vadd.f32 %v5844, %v5845
    %v5847 = vmul.f32 %v5291, 0.00390625
    %v5848 = vmul.f32 %v5328, 0.00390625
    %v5849 = vmul.f32 %v5365, 0.00390625
    %v5850 = vmul.f32 %v5402, 0.00390625
    %v5851 = vmul.f32 %v5439, 0.00390625
    %v5852 = vmul.f32 %v5476, 0.00390625
    %v5853 = vmul.f32 %v5513, 0.00390625
    %v5854 = vmul.f32 %v5550, 0.00390625
    %v5855 = vmul.f32 %v5587, 0.00390625
    %v5856 = vmul.f32 %v5624, 0.00390625
    %v5857 = vmul.f32 %v5661, 0.00390625
    %v5858 = vmul.f32 %v5698, 0.00390625
    %v5859 = vmul.f32 %v5735, 0.00390625
    %v5860 = vmul.f32 %v5772, 0.00390625
    %v5861 = vmul.f32 %v5809, 0.00390625
    %v5862 = vmul.f32 %v5846, 0.00390625
    %v5863 = vpack.c.bf16 %v5847, %v5847
    %v5864 = vpack.c.bf16 %v5848, %v5848
    %v5865 = vpack.c.bf16 %v5849, %v5849
    %v5866 = vpack.c.bf16 %v5850, %v5850
    %v5867 = vpack.c.bf16 %v5851, %v5851
    %v5868 = vpack.c.bf16 %v5852, %v5852
    %v5869 = vpack.c.bf16 %v5853, %v5853
    %v5870 = vpack.c.bf16 %v5854, %v5854
    %v5871 = vpack.c.bf16 %v5855, %v5855
    %v5872 = vpack.c.bf16 %v5856, %v5856
    %v5873 = vpack.c.bf16 %v5857, %v5857
    %v5874 = vpack.c.bf16 %v5858, %v5858
    %v5875 = vpack.c.bf16 %v5859, %v5859
    %v5876 = vpack.c.bf16 %v5860, %v5860
    %v5877 = vpack.c.bf16 %v5861, %v5861
    %v5878 = vpack.c.bf16 %v5862, %v5862
    %v5880 = vlaneseq
    %v5881 = vshrl.u32 %v5880, 7
    %v5882 = vsub.s32 0, %v5881
    %v5883 = vrot.slane %v570, %v5882
    %v5884 = vlaneseq
    %v5885 = vshrl.u32 %v5884, 7
    %v5886 = vsub.s32 1, %v5885
    %v5887 = vrot.slane %v570, %v5886
    %v5906 = vunpack.c.l.b16 %v5863
    %v5907 = vunpack.c.l.b16 %v5864
    %v5908 = vunpack.c.l.b16 %v5865
    %v5909 = vunpack.c.l.b16 %v5866
    %v5910 = vunpack.c.l.b16 %v5867
    %v5911 = vunpack.c.l.b16 %v5868
    %v5912 = vunpack.c.l.b16 %v5869
    %v5913 = vunpack.c.l.b16 %v5870
    %v5914 = vunpack.c.l.b16 %v5871
    %v5915 = vunpack.c.l.b16 %v5872
    %v5916 = vunpack.c.l.b16 %v5873
    %v5917 = vunpack.c.l.b16 %v5874
    %v5918 = vunpack.c.l.b16 %v5875
    %v5919 = vunpack.c.l.b16 %v5876
    %v5920 = vunpack.c.l.b16 %v5877
    %v5921 = vunpack.c.l.b16 %v5878
    %vm5922 = vcmask 1041409
    %v5923 = vsel %vm5922, %v5907, %v5906
    %vm5924 = vcmask 1042434
    %v5925 = vsel %vm5924, %v5908, %v5923
    %vm5926 = vcmask 1043459
    %v5927 = vsel %vm5926, %v5909, %v5925
    %vm5928 = vcmask 1044484
    %v5929 = vsel %vm5928, %v5910, %v5927
    %vm5930 = vcmask 1045509
    %v5931 = vsel %vm5930, %v5911, %v5929
    %vm5932 = vcmask 1046534
    %v5933 = vsel %vm5932, %v5912, %v5931
    %vm5934 = vcmask 1047559
    %v5935 = vsel %vm5934, %v5913, %v5933
    %v5936 = vsel %vm5922, %v5915, %v5914
    %v5937 = vsel %vm5924, %v5916, %v5936
    %v5938 = vsel %vm5926, %v5917, %v5937
    %v5939 = vsel %vm5928, %v5918, %v5938
    %v5940 = vsel %vm5930, %v5919, %v5939
    %v5941 = vsel %vm5932, %v5920, %v5940
    %v5942 = vsel %vm5934, %v5921, %v5941
    %v5943 = vpack.c.b16 %v5942, %v5935
    %v5961 = vunpack.c.l.b16 %v554
    %v5962 = vunpack.c.h.b16 %v554
    %v5963 = vunpack.c.l.b16 %v555
    %v5964 = vunpack.c.h.b16 %v555
    %v5965 = vunpack.c.l.b16 %v556
    %v5966 = vunpack.c.h.b16 %v556
    %v5967 = vunpack.c.l.b16 %v557
    %v5968 = vunpack.c.h.b16 %v557
    %v5969 = vunpack.c.l.b16 %v558
    %v5970 = vunpack.c.h.b16 %v558
    %v5971 = vunpack.c.l.b16 %v559
    %v5972 = vunpack.c.h.b16 %v559
    %v5973 = vunpack.c.l.b16 %v560
    %v5974 = vunpack.c.h.b16 %v560
    %v5975 = vunpack.c.l.b16 %v561
    %v5976 = vunpack.c.h.b16 %v561
    %v5977 = vunpack.c.l.b16 %v562
    %v5978 = vunpack.c.h.b16 %v562
    %v5979 = vunpack.c.l.b16 %v563
    %v5980 = vunpack.c.h.b16 %v563
    %v5981 = vunpack.c.l.b16 %v564
    %v5982 = vunpack.c.h.b16 %v564
    %v5983 = vunpack.c.l.b16 %v565
    %v5984 = vunpack.c.h.b16 %v565
    %v5985 = vunpack.c.l.b16 %v566
    %v5986 = vunpack.c.h.b16 %v566
    %v5987 = vunpack.c.l.b16 %v567
    %v5988 = vunpack.c.h.b16 %v567
    %v5989 = vunpack.c.l.b16 %v568
    %v5990 = vunpack.c.h.b16 %v568
    %v5991 = vunpack.c.l.b16 %v569
    %v5992 = vunpack.c.h.b16 %v569
    %v5993 = vpack.c.b16 %v5963, %v5961
    %v5994 = vpack.c.b16 %v5964, %v5962
    %v5995 = vpack.c.b16 %v5967, %v5965
    %v5996 = vpack.c.b16 %v5968, %v5966
    %v5997 = vpack.c.b16 %v5971, %v5969
    %v5998 = vpack.c.b16 %v5972, %v5970
    %v5999 = vpack.c.b16 %v5975, %v5973
    %v6000 = vpack.c.b16 %v5976, %v5974
    %v6001 = vpack.c.b16 %v5979, %v5977
    %v6002 = vpack.c.b16 %v5980, %v5978
    %v6003 = vpack.c.b16 %v5983, %v5981
    %v6004 = vpack.c.b16 %v5984, %v5982
    %v6005 = vpack.c.b16 %v5987, %v5985
    %v6006 = vpack.c.b16 %v5988, %v5986
    %v6007 = vpack.c.b16 %v5991, %v5989
    %v6008 = vpack.c.b16 %v5992, %v5990
    %6025 = vmatprep.subr.bf16.mxu0 %v6008
    %6026 = vmatpush1.bf16.msra.mxu0 %v6007
    %6027 = vmatprep.subr.bf16.mxu0 %v6006
    %6028 = vmatpush1.bf16.msra.mxu0 %v6005
    %6029 = vmatprep.subr.bf16.mxu0 %v6004
    %6030 = vmatpush1.bf16.msra.mxu0 %v6003
    %6031 = vmatprep.subr.bf16.mxu0 %v6002
    %6032 = vmatpush1.bf16.msra.mxu0 %v6001
    %6033 = vmatprep.subr.bf16.mxu0 %v6000
    %6034 = vmatpush1.bf16.msra.mxu0 %v5999
    %6035 = vmatprep.subr.bf16.mxu0 %v5998
    %6036 = vmatpush1.bf16.msra.mxu0 %v5997
    %6037 = vmatprep.subr.bf16.mxu0 %v5996
    %6038 = vmatpush1.bf16.msra.mxu0 %v5995
    %6039 = vmatprep.subr.bf16.mxu0 %v5994
    %6040 = vmatpush1.bf16.msra.mxu0 %v5993
    %6041 = vmatprep.subr.bf16.mxu0 0
    %6042 = vmatpush2.bf16.msra.mxu0 0
    %6043 = vmatprep.subr.bf16.mxu0 0
    %6044 = vmatpush2.bf16.msra.mxu0 0
    %6045 = vmatprep.subr.bf16.mxu0 0
    %6046 = vmatpush2.bf16.msra.mxu0 0
    %6047 = vmatprep.subr.bf16.mxu0 0
    %6048 = vmatpush2.bf16.msra.mxu0 0
    %6049 = vmatprep.subr.bf16.mxu0 0
    %6050 = vmatpush2.bf16.msra.mxu0 0
    %6051 = vmatprep.subr.bf16.mxu0 0
    %6052 = vmatpush2.bf16.msra.mxu0 0
    %6053 = vmatprep.subr.bf16.mxu0 0
    %6054 = vmatpush2.bf16.msra.mxu0 0
    %6055 = vmatprep.subr.bf16.mxu0 0
    %6056 = vmatpush2.bf16.msra.mxu0 0
    %6057 = vmatprep.mubr.bf16.mxu0 0
    %6058 = vmatmul.mubr.bf16.gmra.mxu0 %v5943
    %v6059 = vpop.f32.mrf.mxu0
    %v6060 = vadd.f32 %v5883, %v6059
    %v6061 = vpop.f32.mrf.mxu0
    %v6062 = vadd.f32 %v5887, %v6061
    %v6063 = vpop.f32.mrf.mxu0
    %v6064 = vadd.f32 %v5883, %v6063
    %v6065 = vpop.f32.mrf.mxu0
    %v6066 = vadd.f32 %v5887, %v6065
    %6067 = vdwg.mxu0
    %v6068 = vmax.f32 %v6062, 0.0
    %v6069 = vmax.f32 %v6066, 0.0
    %v6070 = vpack.c.bf16 %v6069, %v6068
    %v6072 = vlaneseq
    %v6073 = vshrl.u32 %v6072, 7
    %v6074 = vsub.s32 0, %v6073
    %v6075 = vrot.slane %v587, %v6074
    %v6093 = vunpack.c.l.b16 %v571
    %v6094 = vunpack.c.l.b16 %v572
    %v6095 = vunpack.c.l.b16 %v573
    %v6096 = vunpack.c.l.b16 %v574
    %v6097 = vunpack.c.l.b16 %v575
    %v6098 = vunpack.c.l.b16 %v576
    %v6099 = vunpack.c.l.b16 %v577
    %v6100 = vunpack.c.l.b16 %v578
    %v6101 = vunpack.c.l.b16 %v579
    %v6102 = vunpack.c.l.b16 %v580
    %v6103 = vunpack.c.l.b16 %v581
    %v6104 = vunpack.c.l.b16 %v582
    %v6105 = vunpack.c.l.b16 %v583
    %v6106 = vunpack.c.l.b16 %v584
    %v6107 = vunpack.c.l.b16 %v585
    %v6108 = vunpack.c.l.b16 %v586
    %v6109 = vpack.c.b16 %v6094, %v6093
    %v6110 = vpack.c.b16 %v6096, %v6095
    %v6111 = vpack.c.b16 %v6098, %v6097
    %v6112 = vpack.c.b16 %v6100, %v6099
    %v6113 = vpack.c.b16 %v6102, %v6101
    %v6114 = vpack.c.b16 %v6104, %v6103
    %v6115 = vpack.c.b16 %v6106, %v6105
    %v6116 = vpack.c.b16 %v6108, %v6107
    %6125 = vmatprep.subr.bf16.mxu0 0
    %6126 = vmatpush1.bf16.msra.mxu0 %v6116
    %6127 = vmatprep.subr.bf16.mxu0 0
    %6128 = vmatpush1.bf16.msra.mxu0 %v6115
    %6129 = vmatprep.subr.bf16.mxu0 0
    %6130 = vmatpush1.bf16.msra.mxu0 %v6114
    %6131 = vmatprep.subr.bf16.mxu0 0
    %6132 = vmatpush1.bf16.msra.mxu0 %v6113
    %6133 = vmatprep.subr.bf16.mxu0 0
    %6134 = vmatpush1.bf16.msra.mxu0 %v6112
    %6135 = vmatprep.subr.bf16.mxu0 0
    %6136 = vmatpush1.bf16.msra.mxu0 %v6111
    %6137 = vmatprep.subr.bf16.mxu0 0
    %6138 = vmatpush1.bf16.msra.mxu0 %v6110
    %6139 = vmatprep.subr.bf16.mxu0 0
    %6140 = vmatpush1.bf16.msra.mxu0 %v6109
    %6141 = vmatprep.subr.bf16.mxu0 0
    %6142 = vmatpush2.bf16.msra.mxu0 0
    %6143 = vmatprep.subr.bf16.mxu0 0
    %6144 = vmatpush2.bf16.msra.mxu0 0
    %6145 = vmatprep.subr.bf16.mxu0 0
    %6146 = vmatpush2.bf16.msra.mxu0 0
    %6147 = vmatprep.subr.bf16.mxu0 0
    %6148 = vmatpush2.bf16.msra.mxu0 0
    %6149 = vmatprep.subr.bf16.mxu0 0
    %6150 = vmatpush2.bf16.msra.mxu0 0
    %6151 = vmatprep.subr.bf16.mxu0 0
    %6152 = vmatpush2.bf16.msra.mxu0 0
    %6153 = vmatprep.subr.bf16.mxu0 0
    %6154 = vmatpush2.bf16.msra.mxu0 0
    %6155 = vmatprep.subr.bf16.mxu0 0
    %6156 = vmatpush2.bf16.msra.mxu0 0
    %6157 = vmatprep.mubr.bf16.mxu0 0
    %6158 = vmatmul.mubr.bf16.gmra.mxu0 %v6070
    %v6159 = vpop.f32.mrf.mxu0
    %v6160 = vadd.f32 %v6075, %v6159
    %v6161 = vpop.f32.mrf.mxu0
    %v6162 = vpop.f32.mrf.mxu0
    %v6163 = vadd.f32 %v6075, %v6162
    %v6164 = vpop.f32.mrf.mxu0
    %6165 = vdwg.mxu0
    %6166 = vst [vmem:[%s9] sm:$0xff] %v6060
    %6167 = vst [vmem:[%s9 + $0x8] sm:$0xff] %v6064
    %v6168 = vld [vmem:[%s7] sm:$0x1]
    %v6169 = vld [vmem:[%s8] sm:$0xff]
    %v6170 = vld [vmem:[%s8 + $0x8] sm:$0xff]
    %v6171 = vmul.f32 %v6160, %v6160
    %v6172 = vmul.f32 %v6163, %v6163
    %6173 = vadd.xlane.f32.xlu0 %v6171
    %v6174 = vpop.xlane.xlu0 %6173
    %6175 = vadd.xlane.f32.xlu0 %v6172
    %v6176 = vpop.xlane.xlu0 %6175
    %v6177 = vadd.f32 %v6174, 1e-24
    %v6178 = vadd.f32 %v6176, 1e-24
    %v6179 = vrsqrt.pop %v6177
    %v6180 = vrsqrt.pop %v6178
    %v6181 = vmul.f32 %v6179, 3.7796447
    %v6182 = vmul.f32 %v6180, 3.7796447
    %v6183 = vmul.f32 %v6160, %v6181
    %v6184 = vmul.f32 %v6163, %v6182
    %6185 = vmatprep.subr.mxu0 0.0
    %6186 = vmatpush1.xpose.msra.mxu0 0.0
    %6187 = vmatprep.subr.mxu0 0.0
    %6188 = vmatpush1.xpose.msra.mxu0 0.0
    %6189 = vmatprep.subr.mxu0 0.0
    %6190 = vmatpush1.xpose.msra.mxu0 0.0
    %6191 = vmatprep.subr.mxu0 0.0
    %6192 = vmatpush1.xpose.msra.mxu0 0.0
    %6193 = vmatprep.subr.mxu0 0.0
    %6194 = vmatpush1.xpose.msra.mxu0 0.0
    %6195 = vmatprep.subr.mxu0 0.0
    %6196 = vmatpush1.xpose.msra.mxu0 0.0
    %6197 = vmatprep.subr.mxu0 0.0
    %6198 = vmatpush1.xpose.msra.mxu0 0.0
    %6199 = vmatprep.subr.mxu0 0.0
    %6200 = vmatpush1.xpose.msra.mxu0 0.0
    %6201 = vmatprep.subr.mxu0 0.0
    %6202 = vmatpush1.xpose.msra.mxu0 0.0
    %6203 = vmatprep.subr.mxu0 0.0
    %6204 = vmatpush1.xpose.msra.mxu0 0.0
    %6205 = vmatprep.subr.mxu0 0.0
    %6206 = vmatpush1.xpose.msra.mxu0 0.0
    %6207 = vmatprep.subr.mxu0 0.0
    %6208 = vmatpush1.xpose.msra.mxu0 0.0
    %6209 = vmatprep.subr.mxu0 0.0
    %6210 = vmatpush1.xpose.msra.mxu0 0.0
    %6211 = vmatprep.subr.mxu0 0.0
    %6212 = vmatpush1.xpose.msra.mxu0 0.0
    %6213 = vmatprep.subr.mxu0 0.0
    %6214 = vmatpush1.xpose.msra.mxu0 %v6184
    %6215 = vmatprep.subr.mxu0 0.0
    %6216 = vmatpush1.xpose.msra.mxu0 %v6183
    %6217 = vmatprep.subr.mxu0 0.0
    %6218 = vmatpush2.xpose.msra.mxu0 0.0
    %6219 = vmatprep.subr.mxu0 0.0
    %6220 = vmatpush2.xpose.msra.mxu0 0.0
    %6221 = vmatprep.subr.mxu0 0.0
    %6222 = vmatpush2.xpose.msra.mxu0 0.0
    %6223 = vmatprep.subr.mxu0 0.0
    %6224 = vmatpush2.xpose.msra.mxu0 0.0
    %6225 = vmatprep.subr.mxu0 0.0
    %6226 = vmatpush2.xpose.msra.mxu0 0.0
    %6227 = vmatprep.subr.mxu0 0.0
    %6228 = vmatpush2.xpose.msra.mxu0 0.0
    %6229 = vmatprep.subr.mxu0 0.0
    %6230 = vmatpush2.xpose.msra.mxu0 0.0
    %6231 = vmatprep.subr.mxu0 0.0
    %6232 = vmatpush2.xpose.msra.mxu0 0.0
    %6233 = vmatprep.subr.mxu0 0.0
    %6234 = vmatpush2.xpose.msra.mxu0 0.0
    %6235 = vmatprep.subr.mxu0 0.0
    %6236 = vmatpush2.xpose.msra.mxu0 0.0
    %6237 = vmatprep.subr.mxu0 0.0
    %6238 = vmatpush2.xpose.msra.mxu0 0.0
    %6239 = vmatprep.subr.mxu0 0.0
    %6240 = vmatpush2.xpose.msra.mxu0 0.0
    %6241 = vmatprep.subr.mxu0 0.0
    %6242 = vmatpush2.xpose.msra.mxu0 0.0
    %6243 = vmatprep.subr.mxu0 0.0
    %6244 = vmatpush2.xpose.msra.mxu0 0.0
    %6245 = vmatprep.subr.mxu0 0.0
    %6246 = vmatpush2.xpose.msra.mxu0 0.0
    %6247 = vmatprep.subr.mxu0 0.0
    %6248 = vmatpush2.xpose.msra.mxu0 0.0
    %6249 = vmatprep.mubr.f32.mxu0 0.0
    %6250 = vmatmul.mubr.f32.gmra.mxu0 %v6183
    %v6251 = vpop.f32.mrf.mxu0
    %v6252 = vadd.f32 0.0, %v6251
    %v6253 = vpop.f32.mrf.mxu0
    %6254 = vmatprep.mubr.f32.mxu0 0.0
    %6255 = vmatmul.mubr.f32.gmra.mxu0 %v6184
    %v6256 = vpop.f32.mrf.mxu0
    %v6257 = vadd.f32 0.0, %v6256
    %v6258 = vpop.f32.mrf.mxu0
    %6259 = vdwg.mxu0
    %vm6260 = vcmask 130048
    %v6261 = vsel %vm6260, %v6252, -inf
    %6262 = vmax.xlane.f32.xlu0 %v6261
    %v6263 = vpop.xlane.xlu0 %6262
    %v6264 = vsel %vm6260, %v6257, -inf
    %6265 = vmax.xlane.f32.xlu0 %v6264
    %v6266 = vpop.xlane.xlu0 %6265
    %v6267 = vsub.f32 %v6252, %v6263
    %v6268 = vsub.f32 %v6257, %v6266
    %v6269 = vlaneseq
    %v6270 = vshrl.u32 %v6269, 7
    %v6271 = vadd.s32 %v6270, 8
    %v6272 = vlaneseq
    %v6273 = vand.u32 %v6272, 127
    %vm6274 = vcmp.eq.s32.totalorder %v6270, %v6273
    %vm6275 = vcmp.eq.s32.totalorder %v6271, %v6273
    %v6276 = vsel %vm6274, 0.0, 1.0
    %v6277 = vsel %vm6275, 0.0, 1.0
    %6278 = vset.pattern.permute.xlu0 0
    %6279 = vperm.xlu0 %6278, %v6169
    %v6280 = vpop.permute.xlu0 %6279
    %6281 = vset.pattern.permute.xlu0 0
    %6282 = vperm.xlu0 %6281, %v6170
    %v6283 = vpop.permute.xlu0 %6282
    %v6284 = vlaneseq
    %v6285 = vshrl.u32 %v6284, 7
    %v6286 = vsub.s32 0, %v6285
    %v6287 = vrot.slane %v6168, %v6286
    %vm6288 = vcmp.eq.s32.totalorder %v6280, %v6287
    %vm6289 = vcmp.eq.s32.totalorder %v6283, %v6287
    %v6290 = vsel %vm6288, 1.0, 0.0
    %v6291 = vsel %vm6289, 1.0, 0.0
    %v6292 = vmul.f32 %v6290, %v6276
    %v6293 = vmul.f32 %v6291, %v6277
    %v6294 = vmul.f32 %v6267, 1.442695
    %v6295 = vpow.pop %v6294
    %v6296 = vmul.f32 %v6268, 1.442695
    %v6297 = vpow.pop %v6296
    %v6298 = vmul.f32 %v6295, %v6276
    %v6299 = vmul.f32 %v6297, %v6277
    %v6300 = vsel %vm6260, %v6298, 0.0
    %6301 = vadd.xlane.f32.xlu0 %v6300
    %v6302 = vpop.xlane.xlu0 %6301
    %v6303 = vsel %vm6260, %v6299, 0.0
    %6304 = vadd.xlane.f32.xlu0 %v6303
    %v6305 = vpop.xlane.xlu0 %6304
    %v6306 = vlog2.pop %v6302
    %v6307 = vmul.f32 %v6306, 0.6931472
    %v6308 = vlog2.pop %v6305
    %v6309 = vmul.f32 %v6308, 0.6931472
    %v6310 = vsub.f32 %v6267, %v6307
    %v6311 = vsub.f32 %v6268, %v6309
    %v6312 = vsel %vm6260, %v6292, 0.0
    %6313 = vadd.xlane.f32.xlu0 %v6312
    %v6314 = vpop.xlane.xlu0 %6313
    %v6315 = vsel %vm6260, %v6293, 0.0
    %6316 = vadd.xlane.f32.xlu0 %v6315
    %v6317 = vpop.xlane.xlu0 %6316
    %v6318 = vmax.f32 %v6314, 1.0
    %v6319 = vmax.f32 %v6317, 1.0
    %v6320 = vmul.f32 %v6292, %v6310
    %v6321 = vmul.f32 %v6293, %v6311
    %v6322 = vsel %vm6260, %v6320, 0.0
    %6323 = vadd.xlane.f32.xlu0 %v6322
    %v6324 = vpop.xlane.xlu0 %6323
    %v6325 = vsel %vm6260, %v6321, 0.0
    %6326 = vadd.xlane.f32.xlu0 %v6325
    %v6327 = vpop.xlane.xlu0 %6326
    %v6328 = vrcp.pop %v6318
    %v6329 = vrcp.pop %v6319
    %v6330 = vmul.f32 %v6324, %v6328
    %v6331 = vmul.f32 %v6327, %v6329
    %v6332 = vadd.f32 %v6330, %v6331
    %v6333 = vrot.slane %v6332, 4
    %v6334 = vadd.f32 %v6332, %v6333
    %v6335 = vrot.slane %v6334, 2
    %v6336 = vadd.f32 %v6334, %v6335
    %v6337 = vrot.slane %v6336, 1
    %v6338 = vadd.f32 %v6336, %v6337
    %v6339 = vmul.f32 %v6338, 0.0625
    %v6340 = vmul.f32 %v6339, -1.0
    %6341 = vst [vmem:[#allocation2] sm:$0x1] %v6340
    // Predicated region
    $region38: #{_forward.1} parent=1 // pred_check
      _
    $region39: #{_forward.1} parent=1 // pred_check_branch
      %6343 = sbr.rel (0) target = $region41
    $region40: #{_forward.1} parent=1 // pred_region
      _
    $region41: #{_forward.1} parent=1 // pred_fallthru
      _
    // Predicated region
    $region42: #{_forward.1} parent=1 // pred_check
      _
    $region43: #{_forward.1} parent=1 // pred_check_branch
      %6345 = sbr.rel (0) target = $region45
    $region44: #{_forward.1} parent=1 // pred_region
      %s6347 = ssub.s32 16, 16
      %6348 = vsyncadd [#allocation3], %s6347
      %s6350 = sshll.u32 [#allocation2], 4
      %s6351 = int_to_ptr.vmem [resolvable:$true] %s6350
      %6353 = dma.vmem_to_hbm [thread:$0]  %s6351, 16, %s10, [#allocation3]
    $region45: #{_forward.1} parent=1 // pred_fallthru
      _
    // Predicated region
    $region46: #{_forward.1} parent=1 // pred_check
      _
    $region47: #{_forward.1} parent=1 // pred_check_branch
      %6355 = sbr.rel (0) target = $region49
    $region48: #{_forward.1} parent=1 // pred_region
      _
    $region49: #{_forward.1} parent=1 // pred_fallthru
      _
    // Predicated region
    $region50: #{_forward.1} parent=1 // pred_check
      _
    $region51: #{_forward.1} parent=1 // pred_check_branch
      %6357 = sbr.rel (0) target = $region53
    $region52: #{_forward.1} parent=1 // pred_region
      %6358 = dma.done [#allocation3], 16
    $region53: #{_forward.1} parent=1 // pred_fallthru
      _
    %6359 = vsyncpa [#allocation3], 1

</llo_original>
